<compile_context>
chip_gen: v6e
topology: v6e:2x2x1
jax: 0.10.0
libtpu: 0.0.40
codegen_flags: <defaults>
</compile_context>

<pallas_src>
import jax
import jax.numpy as jnp
from jax.experimental import pallas as pl
from jax.experimental.pallas import tpu as pltpu

H = W = 14          # spatial size from the reference module input [1, 768, 14, 14]
C = 768             # channels (fixed by the module)
KH = KW = 3         # kernel size
WP = 16             # W padded to 16 (2 trailing zero cols), sublane aligned
ROWS = 7            # output rows computed per grid step
GRID = H // ROWS    # 2
CCH = 384           # lane-chunk: split C into halves to keep vreg pressure low


def dwconv3x3_kernel(x_ref, w_ref, o_ref):
    """Depthwise 3x3 conv over one block of 7 output rows.

    x_ref: (H, WP, C)    HWC input, W right-padded with zeros (cols 14/15 == 0),
                         H padding handled in-kernel (border rows zeroed)
    w_ref: (KH*KW, C)    per-channel depthwise taps, t = kh*3 + kw
    o_ref: (ROWS, WP, C) output rows [7*i, 7*i+7); cols 14/15 hold junk and
                         are sliced off in the wrapper
    """
    i = pl.program_id(0)

    for c0 in range(0, C, CCH):                      # static split over lane halves
        # Hoist the 9 taps: one load + one sublane-broadcast each, reused below.
        taps = [jnp.broadcast_to(w_ref[t, c0:c0 + CCH], (WP, CCH))
                for t in range(KH * KW)]

        accs = [None] * ROWS

        # Sliding window over the 9 input rows feeding this 7-output-row block.
        for r in range(ROWS + 2):
            r_in = i * ROWS - 1 + r                  # input row for window slot r
            if r == 0:                               # may be row -1 (block 0)
                idx = jnp.maximum(r_in, 0)
                vf = (r_in >= 0).astype(jnp.float32)
            elif r == ROWS + 1:                      # may be row 14 (last block)
                idx = jnp.minimum(r_in, H - 1)
                vf = (r_in <= H - 1).astype(jnp.float32)
            else:                                    # always in range
                idx = r_in
                vf = None

            row = x_ref[idx, :, c0:c0 + CCH]         # (WP, CCH); cols 14/15 are 0
            if vf is not None:
                row = row * vf                       # zero the out-of-range border row

            # Column shifts via XLU rolls; the trailing zero cols give correct
            # left/right zero padding through the wraparound:
            #   s_l[w] = row[w-1] (s_l[0] = row[15] = 0), s_r[w] = row[w+1]
            #   (s_r[13] = row[14] = 0).
            s_l = pltpu.roll(row, shift=1, axis=0)
            s_r = pltpu.roll(row, shift=WP - 1, axis=0)

            for kh in range(KH):
                h = r - kh                           # output row this slot feeds
                if 0 <= h < ROWS:
                    c = (s_l * taps[kh * KW + 0]
                         + row * taps[kh * KW + 1]
                         + s_r * taps[kh * KW + 2])
                    accs[h] = c if accs[h] is None else accs[h] + c

            h_done = r - (KH - 1)                    # output row finished this step
            if 0 <= h_done < ROWS:
                o_ref[h_done, :, c0:c0 + CCH] = accs[h_done]   # aligned, unmasked store
                accs[h_done] = None


@jax.jit
def depthwise_conv3x3(x_nchw, w_oihw):
    """x_nchw: (1, C, H, W) f32; w_oihw: (C, 1, 3, 3) f32 -> (1, C, H, W) f32."""
    # NCHW -> HWC plus a trailing W pad only; under jit this is one fused copy
    # (no separate fully padded (16,16,768) buffer is materialized).
    x_hwc = jnp.transpose(x_nchw[0], (1, 2, 0))                  # (14, 14, 768)
    x_p = jnp.pad(x_hwc, ((0, 0), (0, WP - W), (0, 0)))          # (14, 16, 768)
    # (C,1,3,3) -> (3,3,C) -> (9, C)
    w_kc = jnp.transpose(w_oihw[:, 0, :, :], (1, 2, 0)).reshape(KH * KW, C)

    flops = 2 * H * W * C * KH * KW
    bytes_accessed = 2 * (H * WP * C * 4) + KH * KW * C * 4

    out_hw16c = pl.pallas_call(
        dwconv3x3_kernel,
        out_shape=jax.ShapeDtypeStruct((H, WP, C), jnp.float32),
        grid=(GRID,),
        in_specs=[
            pl.BlockSpec((H, WP, C), lambda i: (0, 0, 0)),       # full input resident
            pl.BlockSpec((KH * KW, C), lambda i: (0, 0)),        # all taps
        ],
        out_specs=pl.BlockSpec((ROWS, WP, C), lambda i: (i, 0, 0)),
        compiler_params=pltpu.CompilerParams(
            dimension_semantics=("parallel",)),                  # v7x: 2 TCs split rows
        cost_estimate=pl.CostEstimate(flops=flops, transcendentals=0,
                                      bytes_accessed=bytes_accessed),
    )(x_p, w_kc)

    out_hwc = out_hw16c[:, :W, :]                                # drop junk cols (free under jit)
    return jnp.transpose(out_hwc, (2, 0, 1))[None]               # back to (1, C, H, W)
    # TODO(synk): if the surrounding model can run NHWC end-to-end, drop both
    # transposes here for another ~1.5x end-to-end win.


if __name__ == "__main__":
    key = jax.random.PRNGKey(0)
    kx, kw = jax.random.split(key)

    # Input matching the module's forward: NCHW [1, 768, 14, 14]
    x = jax.random.normal(kx, (1, C, H, W), dtype=jnp.float32)

    # Deterministic depthwise weight, PyTorch Conv2d weight shape (C, 1, 3, 3).
    w = jax.random.normal(kw, (C, 1, KH, KW), dtype=jnp.float32) * (1.0 / 3.0)

    out = depthwise_conv3x3(x, w)
    out = jax.block_until_ready(out)

    # Sanity check against XLA's grouped conv.
    ref = jax.lax.conv_general_dilated(
        x, w, window_strides=(1, 1), padding=((1, 1), (1, 1)),
        feature_group_count=C,
        dimension_numbers=("NCHW", "OIHW", "NCHW"))
    ref = jax.block_until_ready(ref)

    assert out.shape == (1, C, H, W)
    assert jnp.allclose(out, ref, atol=1e-4, rtol=1e-4)
    print("KERNEL_OK")
</pallas_src>

<mosaic_0001>
module attributes {stable_mosaic.version = 11 : i64} {
  func.func @dwconv3x3_kernel(%arg0: i32, %arg1: memref<14x16x768xf32, #tpu.memory_space<vmem>>, %arg2: memref<9x768xf32, #tpu.memory_space<vmem>>, %arg3: memref<7x16x768xf32, #tpu.memory_space<vmem>>) attributes {dimension_semantics = [#tpu.dimension_semantics<parallel>], iteration_bounds = array<i64: 2>, scalar_prefetch = 0 : i64, scratch_operands = 0 : i64, tpu.core_type = #tpu.core_type<tc>, window_params = [{pipeline_mode = #tpu.pipeline_mode<synchronous>, transform_indices = @transform_0, window_bounds = array<i64: 14, 16, 768>}, {pipeline_mode = #tpu.pipeline_mode<synchronous>, transform_indices = @transform_1, window_bounds = array<i64: 9, 768>}, {transform_indices = @transform_2, window_bounds = array<i64: 7, 16, 768>}]} {
    %c0 = arith.constant 0 : index
    %c0_0 = arith.constant 0 : index
    %0 = vector.load %arg2[%c0, %c0_0] : memref<9x768xf32, #tpu.memory_space<vmem>>, vector<1x384xf32>
    %1 = vector.shape_cast %0 : vector<1x384xf32> to vector<384xf32>
    %2 = vector.shape_cast %1 : vector<384xf32> to vector<1x384xf32>
    %3 = vector.broadcast %2 : vector<1x384xf32> to vector<16x384xf32>
    %c1 = arith.constant 1 : index
    %c0_1 = arith.constant 0 : index
    %4 = vector.load %arg2[%c1, %c0_1] : memref<9x768xf32, #tpu.memory_space<vmem>>, vector<1x384xf32>
    %5 = vector.shape_cast %4 : vector<1x384xf32> to vector<384xf32>
    %6 = vector.shape_cast %5 : vector<384xf32> to vector<1x384xf32>
    %7 = vector.broadcast %6 : vector<1x384xf32> to vector<16x384xf32>
    %c2 = arith.constant 2 : index
    %c0_2 = arith.constant 0 : index
    %8 = vector.load %arg2[%c2, %c0_2] : memref<9x768xf32, #tpu.memory_space<vmem>>, vector<1x384xf32>
    %9 = vector.shape_cast %8 : vector<1x384xf32> to vector<384xf32>
    %10 = vector.shape_cast %9 : vector<384xf32> to vector<1x384xf32>
    %11 = vector.broadcast %10 : vector<1x384xf32> to vector<16x384xf32>
    %c3 = arith.constant 3 : index
    %c0_3 = arith.constant 0 : index
    %12 = vector.load %arg2[%c3, %c0_3] : memref<9x768xf32, #tpu.memory_space<vmem>>, vector<1x384xf32>
    %13 = vector.shape_cast %12 : vector<1x384xf32> to vector<384xf32>
    %14 = vector.shape_cast %13 : vector<384xf32> to vector<1x384xf32>
    %15 = vector.broadcast %14 : vector<1x384xf32> to vector<16x384xf32>
    %c4 = arith.constant 4 : index
    %c0_4 = arith.constant 0 : index
    %16 = vector.load %arg2[%c4, %c0_4] : memref<9x768xf32, #tpu.memory_space<vmem>>, vector<1x384xf32>
    %17 = vector.shape_cast %16 : vector<1x384xf32> to vector<384xf32>
    %18 = vector.shape_cast %17 : vector<384xf32> to vector<1x384xf32>
    %19 = vector.broadcast %18 : vector<1x384xf32> to vector<16x384xf32>
    %c5 = arith.constant 5 : index
    %c0_5 = arith.constant 0 : index
    %20 = vector.load %arg2[%c5, %c0_5] : memref<9x768xf32, #tpu.memory_space<vmem>>, vector<1x384xf32>
    %21 = vector.shape_cast %20 : vector<1x384xf32> to vector<384xf32>
    %22 = vector.shape_cast %21 : vector<384xf32> to vector<1x384xf32>
    %23 = vector.broadcast %22 : vector<1x384xf32> to vector<16x384xf32>
    %c6 = arith.constant 6 : index
    %c0_6 = arith.constant 0 : index
    %24 = vector.load %arg2[%c6, %c0_6] : memref<9x768xf32, #tpu.memory_space<vmem>>, vector<1x384xf32>
    %25 = vector.shape_cast %24 : vector<1x384xf32> to vector<384xf32>
    %26 = vector.shape_cast %25 : vector<384xf32> to vector<1x384xf32>
    %27 = vector.broadcast %26 : vector<1x384xf32> to vector<16x384xf32>
    %c7 = arith.constant 7 : index
    %c0_7 = arith.constant 0 : index
    %28 = vector.load %arg2[%c7, %c0_7] : memref<9x768xf32, #tpu.memory_space<vmem>>, vector<1x384xf32>
    %29 = vector.shape_cast %28 : vector<1x384xf32> to vector<384xf32>
    %30 = vector.shape_cast %29 : vector<384xf32> to vector<1x384xf32>
    %31 = vector.broadcast %30 : vector<1x384xf32> to vector<16x384xf32>
    %c8 = arith.constant 8 : index
    %c0_8 = arith.constant 0 : index
    %32 = vector.load %arg2[%c8, %c0_8] : memref<9x768xf32, #tpu.memory_space<vmem>>, vector<1x384xf32>
    %33 = vector.shape_cast %32 : vector<1x384xf32> to vector<384xf32>
    %34 = vector.shape_cast %33 : vector<384xf32> to vector<1x384xf32>
    %35 = vector.broadcast %34 : vector<1x384xf32> to vector<16x384xf32>
    %c7_i32 = arith.constant 7 : i32
    %36 = arith.muli %arg0, %c7_i32 : i32
    %c1_i32 = arith.constant 1 : i32
    %37 = arith.subi %36, %c1_i32 : i32
    %c0_i32 = arith.constant 0 : i32
    %38 = arith.addi %37, %c0_i32 : i32
    %c0_i32_9 = arith.constant 0 : i32
    %39 = arith.maxsi %38, %c0_i32_9 : i32
    %c0_i32_10 = arith.constant 0 : i32
    %40 = arith.cmpi sge, %38, %c0_i32_10 : i32
    %41 = arith.extui %40 : i1 to i32
    %42 = arith.sitofp %41 : i32 to f32
    %43 = arith.index_cast %39 : i32 to index
    %c0_11 = arith.constant 0 : index
    %c0_12 = arith.constant 0 : index
    %44 = vector.load %arg1[%43, %c0_11, %c0_12] : memref<14x16x768xf32, #tpu.memory_space<vmem>>, vector<1x16x384xf32>
    %45 = vector.shape_cast %44 : vector<1x16x384xf32> to vector<16x384xf32>
    %46 = vector.broadcast %42 : f32 to vector<16x384xf32>
    %47 = arith.mulf %45, %46 : vector<16x384xf32>
    %c1_i32_13 = arith.constant 1 : i32
    %48 = tpu.dynamic_rotate %47 by %c1_i32_13 dim 0 : vector<16x384xf32>, i32 -> vector<16x384xf32>
    %c15_i32 = arith.constant 15 : i32
    %49 = tpu.dynamic_rotate %47 by %c15_i32 dim 0 : vector<16x384xf32>, i32 -> vector<16x384xf32>
    %50 = arith.mulf %48, %3 : vector<16x384xf32>
    %51 = arith.mulf %47, %7 : vector<16x384xf32>
    %52 = arith.addf %50, %51 : vector<16x384xf32>
    %53 = arith.mulf %49, %11 : vector<16x384xf32>
    %54 = arith.addf %52, %53 : vector<16x384xf32>
    %c7_i32_14 = arith.constant 7 : i32
    %55 = arith.muli %arg0, %c7_i32_14 : i32
    %c1_i32_15 = arith.constant 1 : i32
    %56 = arith.subi %55, %c1_i32_15 : i32
    %c1_i32_16 = arith.constant 1 : i32
    %57 = arith.addi %56, %c1_i32_16 : i32
    %58 = arith.index_cast %57 : i32 to index
    %c0_17 = arith.constant 0 : index
    %c0_18 = arith.constant 0 : index
    %59 = vector.load %arg1[%58, %c0_17, %c0_18] : memref<14x16x768xf32, #tpu.memory_space<vmem>>, vector<1x16x384xf32>
    %60 = vector.shape_cast %59 : vector<1x16x384xf32> to vector<16x384xf32>
    %c1_i32_19 = arith.constant 1 : i32
    %61 = tpu.dynamic_rotate %60 by %c1_i32_19 dim 0 : vector<16x384xf32>, i32 -> vector<16x384xf32>
    %c15_i32_20 = arith.constant 15 : i32
    %62 = tpu.dynamic_rotate %60 by %c15_i32_20 dim 0 : vector<16x384xf32>, i32 -> vector<16x384xf32>
    %63 = arith.mulf %61, %3 : vector<16x384xf32>
    %64 = arith.mulf %60, %7 : vector<16x384xf32>
    %65 = arith.addf %63, %64 : vector<16x384xf32>
    %66 = arith.mulf %62, %11 : vector<16x384xf32>
    %67 = arith.addf %65, %66 : vector<16x384xf32>
    %68 = arith.mulf %61, %15 : vector<16x384xf32>
    %69 = arith.mulf %60, %19 : vector<16x384xf32>
    %70 = arith.addf %68, %69 : vector<16x384xf32>
    %71 = arith.mulf %62, %23 : vector<16x384xf32>
    %72 = arith.addf %70, %71 : vector<16x384xf32>
    %73 = arith.addf %54, %72 : vector<16x384xf32>
    %c7_i32_21 = arith.constant 7 : i32
    %74 = arith.muli %arg0, %c7_i32_21 : i32
    %c1_i32_22 = arith.constant 1 : i32
    %75 = arith.subi %74, %c1_i32_22 : i32
    %c2_i32 = arith.constant 2 : i32
    %76 = arith.addi %75, %c2_i32 : i32
    %77 = arith.index_cast %76 : i32 to index
    %c0_23 = arith.constant 0 : index
    %c0_24 = arith.constant 0 : index
    %78 = vector.load %arg1[%77, %c0_23, %c0_24] : memref<14x16x768xf32, #tpu.memory_space<vmem>>, vector<1x16x384xf32>
    %79 = vector.shape_cast %78 : vector<1x16x384xf32> to vector<16x384xf32>
    %c1_i32_25 = arith.constant 1 : i32
    %80 = tpu.dynamic_rotate %79 by %c1_i32_25 dim 0 : vector<16x384xf32>, i32 -> vector<16x384xf32>
    %c15_i32_26 = arith.constant 15 : i32
    %81 = tpu.dynamic_rotate %79 by %c15_i32_26 dim 0 : vector<16x384xf32>, i32 -> vector<16x384xf32>
    %82 = arith.mulf %80, %3 : vector<16x384xf32>
    %83 = arith.mulf %79, %7 : vector<16x384xf32>
    %84 = arith.addf %82, %83 : vector<16x384xf32>
    %85 = arith.mulf %81, %11 : vector<16x384xf32>
    %86 = arith.addf %84, %85 : vector<16x384xf32>
    %87 = arith.mulf %80, %15 : vector<16x384xf32>
    %88 = arith.mulf %79, %19 : vector<16x384xf32>
    %89 = arith.addf %87, %88 : vector<16x384xf32>
    %90 = arith.mulf %81, %23 : vector<16x384xf32>
    %91 = arith.addf %89, %90 : vector<16x384xf32>
    %92 = arith.addf %67, %91 : vector<16x384xf32>
    %93 = arith.mulf %80, %27 : vector<16x384xf32>
    %94 = arith.mulf %79, %31 : vector<16x384xf32>
    %95 = arith.addf %93, %94 : vector<16x384xf32>
    %96 = arith.mulf %81, %35 : vector<16x384xf32>
    %97 = arith.addf %95, %96 : vector<16x384xf32>
    %98 = arith.addf %73, %97 : vector<16x384xf32>
    %c0_27 = arith.constant 0 : index
    %c0_28 = arith.constant 0 : index
    %c0_29 = arith.constant 0 : index
    %99 = vector.load %arg3[%c0_27, %c0_28, %c0_29] : memref<7x16x768xf32, #tpu.memory_space<vmem>>, vector<1x16x384xf32>
    %100 = vector.shape_cast %99 : vector<1x16x384xf32> to vector<16x384xf32>
    %101 = vector.shape_cast %98 : vector<16x384xf32> to vector<1x16x384xf32>
    tpu.vector_store %arg3[%c0_27, %c0_28, %c0_29], %101 {strides = array<i32>} : memref<7x16x768xf32, #tpu.memory_space<vmem>>, vector<1x16x384xf32>,
    %c7_i32_30 = arith.constant 7 : i32
    %102 = arith.muli %arg0, %c7_i32_30 : i32
    %c1_i32_31 = arith.constant 1 : i32
    %103 = arith.subi %102, %c1_i32_31 : i32
    %c3_i32 = arith.constant 3 : i32
    %104 = arith.addi %103, %c3_i32 : i32
    %105 = arith.index_cast %104 : i32 to index
    %c0_32 = arith.constant 0 : index
    %c0_33 = arith.constant 0 : index
    %106 = vector.load %arg1[%105, %c0_32, %c0_33] : memref<14x16x768xf32, #tpu.memory_space<vmem>>, vector<1x16x384xf32>
    %107 = vector.shape_cast %106 : vector<1x16x384xf32> to vector<16x384xf32>
    %c1_i32_34 = arith.constant 1 : i32
    %108 = tpu.dynamic_rotate %107 by %c1_i32_34 dim 0 : vector<16x384xf32>, i32 -> vector<16x384xf32>
    %c15_i32_35 = arith.constant 15 : i32
    %109 = tpu.dynamic_rotate %107 by %c15_i32_35 dim 0 : vector<16x384xf32>, i32 -> vector<16x384xf32>
    %110 = arith.mulf %108, %3 : vector<16x384xf32>
    %111 = arith.mulf %107, %7 : vector<16x384xf32>
    %112 = arith.addf %110, %111 : vector<16x384xf32>
    %113 = arith.mulf %109, %11 : vector<16x384xf32>
    %114 = arith.addf %112, %113 : vector<16x384xf32>
    %115 = arith.mulf %108, %15 : vector<16x384xf32>
    %116 = arith.mulf %107, %19 : vector<16x384xf32>
    %117 = arith.addf %115, %116 : vector<16x384xf32>
    %118 = arith.mulf %109, %23 : vector<16x384xf32>
    %119 = arith.addf %117, %118 : vector<16x384xf32>
    %120 = arith.addf %86, %119 : vector<16x384xf32>
    %121 = arith.mulf %108, %27 : vector<16x384xf32>
    %122 = arith.mulf %107, %31 : vector<16x384xf32>
    %123 = arith.addf %121, %122 : vector<16x384xf32>
    %124 = arith.mulf %109, %35 : vector<16x384xf32>
    %125 = arith.addf %123, %124 : vector<16x384xf32>
    %126 = arith.addf %92, %125 : vector<16x384xf32>
    %c1_36 = arith.constant 1 : index
    %c0_37 = arith.constant 0 : index
    %c0_38 = arith.constant 0 : index
    %127 = vector.load %arg3[%c1_36, %c0_37, %c0_38] : memref<7x16x768xf32, #tpu.memory_space<vmem>>, vector<1x16x384xf32>
    %128 = vector.shape_cast %127 : vector<1x16x384xf32> to vector<16x384xf32>
    %129 = vector.shape_cast %126 : vector<16x384xf32> to vector<1x16x384xf32>
    tpu.vector_store %arg3[%c1_36, %c0_37, %c0_38], %129 {strides = array<i32>} : memref<7x16x768xf32, #tpu.memory_space<vmem>>, vector<1x16x384xf32>,
    %c7_i32_39 = arith.constant 7 : i32
    %130 = arith.muli %arg0, %c7_i32_39 : i32
    %c1_i32_40 = arith.constant 1 : i32
    %131 = arith.subi %130, %c1_i32_40 : i32
    %c4_i32 = arith.constant 4 : i32
    %132 = arith.addi %131, %c4_i32 : i32
    %133 = arith.index_cast %132 : i32 to index
    %c0_41 = arith.constant 0 : index
    %c0_42 = arith.constant 0 : index
    %134 = vector.load %arg1[%133, %c0_41, %c0_42] : memref<14x16x768xf32, #tpu.memory_space<vmem>>, vector<1x16x384xf32>
    %135 = vector.shape_cast %134 : vector<1x16x384xf32> to vector<16x384xf32>
    %c1_i32_43 = arith.constant 1 : i32
    %136 = tpu.dynamic_rotate %135 by %c1_i32_43 dim 0 : vector<16x384xf32>, i32 -> vector<16x384xf32>
    %c15_i32_44 = arith.constant 15 : i32
    %137 = tpu.dynamic_rotate %135 by %c15_i32_44 dim 0 : vector<16x384xf32>, i32 -> vector<16x384xf32>
    %138 = arith.mulf %136, %3 : vector<16x384xf32>
    %139 = arith.mulf %135, %7 : vector<16x384xf32>
    %140 = arith.addf %138, %139 : vector<16x384xf32>
    %141 = arith.mulf %137, %11 : vector<16x384xf32>
    %142 = arith.addf %140, %141 : vector<16x384xf32>
    %143 = arith.mulf %136, %15 : vector<16x384xf32>
    %144 = arith.mulf %135, %19 : vector<16x384xf32>
    %145 = arith.addf %143, %144 : vector<16x384xf32>
    %146 = arith.mulf %137, %23 : vector<16x384xf32>
    %147 = arith.addf %145, %146 : vector<16x384xf32>
    %148 = arith.addf %114, %147 : vector<16x384xf32>
    %149 = arith.mulf %136, %27 : vector<16x384xf32>
    %150 = arith.mulf %135, %31 : vector<16x384xf32>
    %151 = arith.addf %149, %150 : vector<16x384xf32>
    %152 = arith.mulf %137, %35 : vector<16x384xf32>
    %153 = arith.addf %151, %152 : vector<16x384xf32>
    %154 = arith.addf %120, %153 : vector<16x384xf32>
    %c2_45 = arith.constant 2 : index
    %c0_46 = arith.constant 0 : index
    %c0_47 = arith.constant 0 : index
    %155 = vector.load %arg3[%c2_45, %c0_46, %c0_47] : memref<7x16x768xf32, #tpu.memory_space<vmem>>, vector<1x16x384xf32>
    %156 = vector.shape_cast %155 : vector<1x16x384xf32> to vector<16x384xf32>
    %157 = vector.shape_cast %154 : vector<16x384xf32> to vector<1x16x384xf32>
    tpu.vector_store %arg3[%c2_45, %c0_46, %c0_47], %157 {strides = array<i32>} : memref<7x16x768xf32, #tpu.memory_space<vmem>>, vector<1x16x384xf32>,
    %c7_i32_48 = arith.constant 7 : i32
    %158 = arith.muli %arg0, %c7_i32_48 : i32
    %c1_i32_49 = arith.constant 1 : i32
    %159 = arith.subi %158, %c1_i32_49 : i32
    %c5_i32 = arith.constant 5 : i32
    %160 = arith.addi %159, %c5_i32 : i32
    %161 = arith.index_cast %160 : i32 to index
    %c0_50 = arith.constant 0 : index
    %c0_51 = arith.constant 0 : index
    %162 = vector.load %arg1[%161, %c0_50, %c0_51] : memref<14x16x768xf32, #tpu.memory_space<vmem>>, vector<1x16x384xf32>
    %163 = vector.shape_cast %162 : vector<1x16x384xf32> to vector<16x384xf32>
    %c1_i32_52 = arith.constant 1 : i32
    %164 = tpu.dynamic_rotate %163 by %c1_i32_52 dim 0 : vector<16x384xf32>, i32 -> vector<16x384xf32>
    %c15_i32_53 = arith.constant 15 : i32
    %165 = tpu.dynamic_rotate %163 by %c15_i32_53 dim 0 : vector<16x384xf32>, i32 -> vector<16x384xf32>
    %166 = arith.mulf %164, %3 : vector<16x384xf32>
    %167 = arith.mulf %163, %7 : vector<16x384xf32>
    %168 = arith.addf %166, %167 : vector<16x384xf32>
    %169 = arith.mulf %165, %11 : vector<16x384xf32>
    %170 = arith.addf %168, %169 : vector<16x384xf32>
    %171 = arith.mulf %164, %15 : vector<16x384xf32>
    %172 = arith.mulf %163, %19 : vector<16x384xf32>
    %173 = arith.addf %171, %172 : vector<16x384xf32>
    %174 = arith.mulf %165, %23 : vector<16x384xf32>
    %175 = arith.addf %173, %174 : vector<16x384xf32>
    %176 = arith.addf %142, %175 : vector<16x384xf32>
    %177 = arith.mulf %164, %27 : vector<16x384xf32>
    %178 = arith.mulf %163, %31 : vector<16x384xf32>
    %179 = arith.addf %177, %178 : vector<16x384xf32>
    %180 = arith.mulf %165, %35 : vector<16x384xf32>
    %181 = arith.addf %179, %180 : vector<16x384xf32>
    %182 = arith.addf %148, %181 : vector<16x384xf32>
    %c3_54 = arith.constant 3 : index
    %c0_55 = arith.constant 0 : index
    %c0_56 = arith.constant 0 : index
    %183 = vector.load %arg3[%c3_54, %c0_55, %c0_56] : memref<7x16x768xf32, #tpu.memory_space<vmem>>, vector<1x16x384xf32>
    %184 = vector.shape_cast %183 : vector<1x16x384xf32> to vector<16x384xf32>
    %185 = vector.shape_cast %182 : vector<16x384xf32> to vector<1x16x384xf32>
    tpu.vector_store %arg3[%c3_54, %c0_55, %c0_56], %185 {strides = array<i32>} : memref<7x16x768xf32, #tpu.memory_space<vmem>>, vector<1x16x384xf32>,
    %c7_i32_57 = arith.constant 7 : i32
    %186 = arith.muli %arg0, %c7_i32_57 : i32
    %c1_i32_58 = arith.constant 1 : i32
    %187 = arith.subi %186, %c1_i32_58 : i32
    %c6_i32 = arith.constant 6 : i32
    %188 = arith.addi %187, %c6_i32 : i32
    %189 = arith.index_cast %188 : i32 to index
    %c0_59 = arith.constant 0 : index
    %c0_60 = arith.constant 0 : index
    %190 = vector.load %arg1[%189, %c0_59, %c0_60] : memref<14x16x768xf32, #tpu.memory_space<vmem>>, vector<1x16x384xf32>
    %191 = vector.shape_cast %190 : vector<1x16x384xf32> to vector<16x384xf32>
    %c1_i32_61 = arith.constant 1 : i32
    %192 = tpu.dynamic_rotate %191 by %c1_i32_61 dim 0 : vector<16x384xf32>, i32 -> vector<16x384xf32>
    %c15_i32_62 = arith.constant 15 : i32
    %193 = tpu.dynamic_rotate %191 by %c15_i32_62 dim 0 : vector<16x384xf32>, i32 -> vector<16x384xf32>
    %194 = arith.mulf %192, %3 : vector<16x384xf32>
    %195 = arith.mulf %191, %7 : vector<16x384xf32>
    %196 = arith.addf %194, %195 : vector<16x384xf32>
    %197 = arith.mulf %193, %11 : vector<16x384xf32>
    %198 = arith.addf %196, %197 : vector<16x384xf32>
    %199 = arith.mulf %192, %15 : vector<16x384xf32>
    %200 = arith.mulf %191, %19 : vector<16x384xf32>
    %201 = arith.addf %199, %200 : vector<16x384xf32>
    %202 = arith.mulf %193, %23 : vector<16x384xf32>
    %203 = arith.addf %201, %202 : vector<16x384xf32>
    %204 = arith.addf %170, %203 : vector<16x384xf32>
    %205 = arith.mulf %192, %27 : vector<16x384xf32>
    %206 = arith.mulf %191, %31 : vector<16x384xf32>
    %207 = arith.addf %205, %206 : vector<16x384xf32>
    %208 = arith.mulf %193, %35 : vector<16x384xf32>
    %209 = arith.addf %207, %208 : vector<16x384xf32>
    %210 = arith.addf %176, %209 : vector<16x384xf32>
    %c4_63 = arith.constant 4 : index
    %c0_64 = arith.constant 0 : index
    %c0_65 = arith.constant 0 : index
    %211 = vector.load %arg3[%c4_63, %c0_64, %c0_65] : memref<7x16x768xf32, #tpu.memory_space<vmem>>, vector<1x16x384xf32>
    %212 = vector.shape_cast %211 : vector<1x16x384xf32> to vector<16x384xf32>
    %213 = vector.shape_cast %210 : vector<16x384xf32> to vector<1x16x384xf32>
    tpu.vector_store %arg3[%c4_63, %c0_64, %c0_65], %213 {strides = array<i32>} : memref<7x16x768xf32, #tpu.memory_space<vmem>>, vector<1x16x384xf32>,
    %c7_i32_66 = arith.constant 7 : i32
    %214 = arith.muli %arg0, %c7_i32_66 : i32
    %c1_i32_67 = arith.constant 1 : i32
    %215 = arith.subi %214, %c1_i32_67 : i32
    %c7_i32_68 = arith.constant 7 : i32
    %216 = arith.addi %215, %c7_i32_68 : i32
    %217 = arith.index_cast %216 : i32 to index
    %c0_69 = arith.constant 0 : index
    %c0_70 = arith.constant 0 : index
    %218 = vector.load %arg1[%217, %c0_69, %c0_70] : memref<14x16x768xf32, #tpu.memory_space<vmem>>, vector<1x16x384xf32>
    %219 = vector.shape_cast %218 : vector<1x16x384xf32> to vector<16x384xf32>
    %c1_i32_71 = arith.constant 1 : i32
    %220 = tpu.dynamic_rotate %219 by %c1_i32_71 dim 0 : vector<16x384xf32>, i32 -> vector<16x384xf32>
    %c15_i32_72 = arith.constant 15 : i32
    %221 = tpu.dynamic_rotate %219 by %c15_i32_72 dim 0 : vector<16x384xf32>, i32 -> vector<16x384xf32>
    %222 = arith.mulf %220, %15 : vector<16x384xf32>
    %223 = arith.mulf %219, %19 : vector<16x384xf32>
    %224 = arith.addf %222, %223 : vector<16x384xf32>
    %225 = arith.mulf %221, %23 : vector<16x384xf32>
    %226 = arith.addf %224, %225 : vector<16x384xf32>
    %227 = arith.addf %198, %226 : vector<16x384xf32>
    %228 = arith.mulf %220, %27 : vector<16x384xf32>
    %229 = arith.mulf %219, %31 : vector<16x384xf32>
    %230 = arith.addf %228, %229 : vector<16x384xf32>
    %231 = arith.mulf %221, %35 : vector<16x384xf32>
    %232 = arith.addf %230, %231 : vector<16x384xf32>
    %233 = arith.addf %204, %232 : vector<16x384xf32>
    %c5_73 = arith.constant 5 : index
    %c0_74 = arith.constant 0 : index
    %c0_75 = arith.constant 0 : index
    %234 = vector.load %arg3[%c5_73, %c0_74, %c0_75] : memref<7x16x768xf32, #tpu.memory_space<vmem>>, vector<1x16x384xf32>
    %235 = vector.shape_cast %234 : vector<1x16x384xf32> to vector<16x384xf32>
    %236 = vector.shape_cast %233 : vector<16x384xf32> to vector<1x16x384xf32>
    tpu.vector_store %arg3[%c5_73, %c0_74, %c0_75], %236 {strides = array<i32>} : memref<7x16x768xf32, #tpu.memory_space<vmem>>, vector<1x16x384xf32>,
    %c7_i32_76 = arith.constant 7 : i32
    %237 = arith.muli %arg0, %c7_i32_76 : i32
    %c1_i32_77 = arith.constant 1 : i32
    %238 = arith.subi %237, %c1_i32_77 : i32
    %c8_i32 = arith.constant 8 : i32
    %239 = arith.addi %238, %c8_i32 : i32
    %c13_i32 = arith.constant 13 : i32
    %240 = arith.minsi %239, %c13_i32 : i32
    %c13_i32_78 = arith.constant 13 : i32
    %241 = arith.cmpi sle, %239, %c13_i32_78 : i32
    %242 = arith.extui %241 : i1 to i32
    %243 = arith.sitofp %242 : i32 to f32
    %244 = arith.index_cast %240 : i32 to index
    %c0_79 = arith.constant 0 : index
    %c0_80 = arith.constant 0 : index
    %245 = vector.load %arg1[%244, %c0_79, %c0_80] : memref<14x16x768xf32, #tpu.memory_space<vmem>>, vector<1x16x384xf32>
    %246 = vector.shape_cast %245 : vector<1x16x384xf32> to vector<16x384xf32>
    %247 = vector.broadcast %243 : f32 to vector<16x384xf32>
    %248 = arith.mulf %246, %247 : vector<16x384xf32>
    %c1_i32_81 = arith.constant 1 : i32
    %249 = tpu.dynamic_rotate %248 by %c1_i32_81 dim 0 : vector<16x384xf32>, i32 -> vector<16x384xf32>
    %c15_i32_82 = arith.constant 15 : i32
    %250 = tpu.dynamic_rotate %248 by %c15_i32_82 dim 0 : vector<16x384xf32>, i32 -> vector<16x384xf32>
    %251 = arith.mulf %249, %27 : vector<16x384xf32>
    %252 = arith.mulf %248, %31 : vector<16x384xf32>
    %253 = arith.addf %251, %252 : vector<16x384xf32>
    %254 = arith.mulf %250, %35 : vector<16x384xf32>
    %255 = arith.addf %253, %254 : vector<16x384xf32>
    %256 = arith.addf %227, %255 : vector<16x384xf32>
    %c6_83 = arith.constant 6 : index
    %c0_84 = arith.constant 0 : index
    %c0_85 = arith.constant 0 : index
    %257 = vector.load %arg3[%c6_83, %c0_84, %c0_85] : memref<7x16x768xf32, #tpu.memory_space<vmem>>, vector<1x16x384xf32>
    %258 = vector.shape_cast %257 : vector<1x16x384xf32> to vector<16x384xf32>
    %259 = vector.shape_cast %256 : vector<16x384xf32> to vector<1x16x384xf32>
    tpu.vector_store %arg3[%c6_83, %c0_84, %c0_85], %259 {strides = array<i32>} : memref<7x16x768xf32, #tpu.memory_space<vmem>>, vector<1x16x384xf32>,
    %c0_86 = arith.constant 0 : index
    %c384 = arith.constant 384 : index
    %260 = vector.load %arg2[%c0_86, %c384] : memref<9x768xf32, #tpu.memory_space<vmem>>, vector<1x384xf32>
    %261 = vector.shape_cast %260 : vector<1x384xf32> to vector<384xf32>
    %262 = vector.shape_cast %261 : vector<384xf32> to vector<1x384xf32>
    %263 = vector.broadcast %262 : vector<1x384xf32> to vector<16x384xf32>
    %c1_87 = arith.constant 1 : index
    %c384_88 = arith.constant 384 : index
    %264 = vector.load %arg2[%c1_87, %c384_88] : memref<9x768xf32, #tpu.memory_space<vmem>>, vector<1x384xf32>
    %265 = vector.shape_cast %264 : vector<1x384xf32> to vector<384xf32>
    %266 = vector.shape_cast %265 : vector<384xf32> to vector<1x384xf32>
    %267 = vector.broadcast %266 : vector<1x384xf32> to vector<16x384xf32>
    %c2_89 = arith.constant 2 : index
    %c384_90 = arith.constant 384 : index
    %268 = vector.load %arg2[%c2_89, %c384_90] : memref<9x768xf32, #tpu.memory_space<vmem>>, vector<1x384xf32>
    %269 = vector.shape_cast %268 : vector<1x384xf32> to vector<384xf32>
    %270 = vector.shape_cast %269 : vector<384xf32> to vector<1x384xf32>
    %271 = vector.broadcast %270 : vector<1x384xf32> to vector<16x384xf32>
    %c3_91 = arith.constant 3 : index
    %c384_92 = arith.constant 384 : index
    %272 = vector.load %arg2[%c3_91, %c384_92] : memref<9x768xf32, #tpu.memory_space<vmem>>, vector<1x384xf32>
    %273 = vector.shape_cast %272 : vector<1x384xf32> to vector<384xf32>
    %274 = vector.shape_cast %273 : vector<384xf32> to vector<1x384xf32>
    %275 = vector.broadcast %274 : vector<1x384xf32> to vector<16x384xf32>
    %c4_93 = arith.constant 4 : index
    %c384_94 = arith.constant 384 : index
    %276 = vector.load %arg2[%c4_93, %c384_94] : memref<9x768xf32, #tpu.memory_space<vmem>>, vector<1x384xf32>
    %277 = vector.shape_cast %276 : vector<1x384xf32> to vector<384xf32>
    %278 = vector.shape_cast %277 : vector<384xf32> to vector<1x384xf32>
    %279 = vector.broadcast %278 : vector<1x384xf32> to vector<16x384xf32>
    %c5_95 = arith.constant 5 : index
    %c384_96 = arith.constant 384 : index
    %280 = vector.load %arg2[%c5_95, %c384_96] : memref<9x768xf32, #tpu.memory_space<vmem>>, vector<1x384xf32>
    %281 = vector.shape_cast %280 : vector<1x384xf32> to vector<384xf32>
    %282 = vector.shape_cast %281 : vector<384xf32> to vector<1x384xf32>
    %283 = vector.broadcast %282 : vector<1x384xf32> to vector<16x384xf32>
    %c6_97 = arith.constant 6 : index
    %c384_98 = arith.constant 384 : index
    %284 = vector.load %arg2[%c6_97, %c384_98] : memref<9x768xf32, #tpu.memory_space<vmem>>, vector<1x384xf32>
    %285 = vector.shape_cast %284 : vector<1x384xf32> to vector<384xf32>
    %286 = vector.shape_cast %285 : vector<384xf32> to vector<1x384xf32>
    %287 = vector.broadcast %286 : vector<1x384xf32> to vector<16x384xf32>
    %c7_99 = arith.constant 7 : index
    %c384_100 = arith.constant 384 : index
    %288 = vector.load %arg2[%c7_99, %c384_100] : memref<9x768xf32, #tpu.memory_space<vmem>>, vector<1x384xf32>
    %289 = vector.shape_cast %288 : vector<1x384xf32> to vector<384xf32>
    %290 = vector.shape_cast %289 : vector<384xf32> to vector<1x384xf32>
    %291 = vector.broadcast %290 : vector<1x384xf32> to vector<16x384xf32>
    %c8_101 = arith.constant 8 : index
    %c384_102 = arith.constant 384 : index
    %292 = vector.load %arg2[%c8_101, %c384_102] : memref<9x768xf32, #tpu.memory_space<vmem>>, vector<1x384xf32>
    %293 = vector.shape_cast %292 : vector<1x384xf32> to vector<384xf32>
    %294 = vector.shape_cast %293 : vector<384xf32> to vector<1x384xf32>
    %295 = vector.broadcast %294 : vector<1x384xf32> to vector<16x384xf32>
    %c7_i32_103 = arith.constant 7 : i32
    %296 = arith.muli %arg0, %c7_i32_103 : i32
    %c1_i32_104 = arith.constant 1 : i32
    %297 = arith.subi %296, %c1_i32_104 : i32
    %c0_i32_105 = arith.constant 0 : i32
    %298 = arith.addi %297, %c0_i32_105 : i32
    %c0_i32_106 = arith.constant 0 : i32
    %299 = arith.maxsi %298, %c0_i32_106 : i32
    %c0_i32_107 = arith.constant 0 : i32
    %300 = arith.cmpi sge, %298, %c0_i32_107 : i32
    %301 = arith.extui %300 : i1 to i32
    %302 = arith.sitofp %301 : i32 to f32
    %303 = arith.index_cast %299 : i32 to index
    %c0_108 = arith.constant 0 : index
    %c384_109 = arith.constant 384 : index
    %304 = vector.load %arg1[%303, %c0_108, %c384_109] : memref<14x16x768xf32, #tpu.memory_space<vmem>>, vector<1x16x384xf32>
    %305 = vector.shape_cast %304 : vector<1x16x384xf32> to vector<16x384xf32>
    %306 = vector.broadcast %302 : f32 to vector<16x384xf32>
    %307 = arith.mulf %305, %306 : vector<16x384xf32>
    %c1_i32_110 = arith.constant 1 : i32
    %308 = tpu.dynamic_rotate %307 by %c1_i32_110 dim 0 : vector<16x384xf32>, i32 -> vector<16x384xf32>
    %c15_i32_111 = arith.constant 15 : i32
    %309 = tpu.dynamic_rotate %307 by %c15_i32_111 dim 0 : vector<16x384xf32>, i32 -> vector<16x384xf32>
    %310 = arith.mulf %308, %263 : vector<16x384xf32>
    %311 = arith.mulf %307, %267 : vector<16x384xf32>
    %312 = arith.addf %310, %311 : vector<16x384xf32>
    %313 = arith.mulf %309, %271 : vector<16x384xf32>
    %314 = arith.addf %312, %313 : vector<16x384xf32>
    %c7_i32_112 = arith.constant 7 : i32
    %315 = arith.muli %arg0, %c7_i32_112 : i32
    %c1_i32_113 = arith.constant 1 : i32
    %316 = arith.subi %315, %c1_i32_113 : i32
    %c1_i32_114 = arith.constant 1 : i32
    %317 = arith.addi %316, %c1_i32_114 : i32
    %318 = arith.index_cast %317 : i32 to index
    %c0_115 = arith.constant 0 : index
    %c384_116 = arith.constant 384 : index
    %319 = vector.load %arg1[%318, %c0_115, %c384_116] : memref<14x16x768xf32, #tpu.memory_space<vmem>>, vector<1x16x384xf32>
    %320 = vector.shape_cast %319 : vector<1x16x384xf32> to vector<16x384xf32>
    %c1_i32_117 = arith.constant 1 : i32
    %321 = tpu.dynamic_rotate %320 by %c1_i32_117 dim 0 : vector<16x384xf32>, i32 -> vector<16x384xf32>
    %c15_i32_118 = arith.constant 15 : i32
    %322 = tpu.dynamic_rotate %320 by %c15_i32_118 dim 0 : vector<16x384xf32>, i32 -> vector<16x384xf32>
    %323 = arith.mulf %321, %263 : vector<16x384xf32>
    %324 = arith.mulf %320, %267 : vector<16x384xf32>
    %325 = arith.addf %323, %324 : vector<16x384xf32>
    %326 = arith.mulf %322, %271 : vector<16x384xf32>
    %327 = arith.addf %325, %326 : vector<16x384xf32>
    %328 = arith.mulf %321, %275 : vector<16x384xf32>
    %329 = arith.mulf %320, %279 : vector<16x384xf32>
    %330 = arith.addf %328, %329 : vector<16x384xf32>
    %331 = arith.mulf %322, %283 : vector<16x384xf32>
    %332 = arith.addf %330, %331 : vector<16x384xf32>
    %333 = arith.addf %314, %332 : vector<16x384xf32>
    %c7_i32_119 = arith.constant 7 : i32
    %334 = arith.muli %arg0, %c7_i32_119 : i32
    %c1_i32_120 = arith.constant 1 : i32
    %335 = arith.subi %334, %c1_i32_120 : i32
    %c2_i32_121 = arith.constant 2 : i32
    %336 = arith.addi %335, %c2_i32_121 : i32
    %337 = arith.index_cast %336 : i32 to index
    %c0_122 = arith.constant 0 : index
    %c384_123 = arith.constant 384 : index
    %338 = vector.load %arg1[%337, %c0_122, %c384_123] : memref<14x16x768xf32, #tpu.memory_space<vmem>>, vector<1x16x384xf32>
    %339 = vector.shape_cast %338 : vector<1x16x384xf32> to vector<16x384xf32>
    %c1_i32_124 = arith.constant 1 : i32
    %340 = tpu.dynamic_rotate %339 by %c1_i32_124 dim 0 : vector<16x384xf32>, i32 -> vector<16x384xf32>
    %c15_i32_125 = arith.constant 15 : i32
    %341 = tpu.dynamic_rotate %339 by %c15_i32_125 dim 0 : vector<16x384xf32>, i32 -> vector<16x384xf32>
    %342 = arith.mulf %340, %263 : vector<16x384xf32>
    %343 = arith.mulf %339, %267 : vector<16x384xf32>
    %344 = arith.addf %342, %343 : vector<16x384xf32>
    %345 = arith.mulf %341, %271 : vector<16x384xf32>
    %346 = arith.addf %344, %345 : vector<16x384xf32>
    %347 = arith.mulf %340, %275 : vector<16x384xf32>
    %348 = arith.mulf %339, %279 : vector<16x384xf32>
    %349 = arith.addf %347, %348 : vector<16x384xf32>
    %350 = arith.mulf %341, %283 : vector<16x384xf32>
    %351 = arith.addf %349, %350 : vector<16x384xf32>
    %352 = arith.addf %327, %351 : vector<16x384xf32>
    %353 = arith.mulf %340, %287 : vector<16x384xf32>
    %354 = arith.mulf %339, %291 : vector<16x384xf32>
    %355 = arith.addf %353, %354 : vector<16x384xf32>
    %356 = arith.mulf %341, %295 : vector<16x384xf32>
    %357 = arith.addf %355, %356 : vector<16x384xf32>
    %358 = arith.addf %333, %357 : vector<16x384xf32>
    %c0_126 = arith.constant 0 : index
    %c0_127 = arith.constant 0 : index
    %c384_128 = arith.constant 384 : index
    %359 = vector.load %arg3[%c0_126, %c0_127, %c384_128] : memref<7x16x768xf32, #tpu.memory_space<vmem>>, vector<1x16x384xf32>
    %360 = vector.shape_cast %359 : vector<1x16x384xf32> to vector<16x384xf32>
    %361 = vector.shape_cast %358 : vector<16x384xf32> to vector<1x16x384xf32>
    tpu.vector_store %arg3[%c0_126, %c0_127, %c384_128], %361 {strides = array<i32>} : memref<7x16x768xf32, #tpu.memory_space<vmem>>, vector<1x16x384xf32>,
    %c7_i32_129 = arith.constant 7 : i32
    %362 = arith.muli %arg0, %c7_i32_129 : i32
    %c1_i32_130 = arith.constant 1 : i32
    %363 = arith.subi %362, %c1_i32_130 : i32
    %c3_i32_131 = arith.constant 3 : i32
    %364 = arith.addi %363, %c3_i32_131 : i32
    %365 = arith.index_cast %364 : i32 to index
    %c0_132 = arith.constant 0 : index
    %c384_133 = arith.constant 384 : index
    %366 = vector.load %arg1[%365, %c0_132, %c384_133] : memref<14x16x768xf32, #tpu.memory_space<vmem>>, vector<1x16x384xf32>
    %367 = vector.shape_cast %366 : vector<1x16x384xf32> to vector<16x384xf32>
    %c1_i32_134 = arith.constant 1 : i32
    %368 = tpu.dynamic_rotate %367 by %c1_i32_134 dim 0 : vector<16x384xf32>, i32 -> vector<16x384xf32>
    %c15_i32_135 = arith.constant 15 : i32
    %369 = tpu.dynamic_rotate %367 by %c15_i32_135 dim 0 : vector<16x384xf32>, i32 -> vector<16x384xf32>
    %370 = arith.mulf %368, %263 : vector<16x384xf32>
    %371 = arith.mulf %367, %267 : vector<16x384xf32>
    %372 = arith.addf %370, %371 : vector<16x384xf32>
    %373 = arith.mulf %369, %271 : vector<16x384xf32>
    %374 = arith.addf %372, %373 : vector<16x384xf32>
    %375 = arith.mulf %368, %275 : vector<16x384xf32>
    %376 = arith.mulf %367, %279 : vector<16x384xf32>
    %377 = arith.addf %375, %376 : vector<16x384xf32>
    %378 = arith.mulf %369, %283 : vector<16x384xf32>
    %379 = arith.addf %377, %378 : vector<16x384xf32>
    %380 = arith.addf %346, %379 : vector<16x384xf32>
    %381 = arith.mulf %368, %287 : vector<16x384xf32>
    %382 = arith.mulf %367, %291 : vector<16x384xf32>
    %383 = arith.addf %381, %382 : vector<16x384xf32>
    %384 = arith.mulf %369, %295 : vector<16x384xf32>
    %385 = arith.addf %383, %384 : vector<16x384xf32>
    %386 = arith.addf %352, %385 : vector<16x384xf32>
    %c1_136 = arith.constant 1 : index
    %c0_137 = arith.constant 0 : index
    %c384_138 = arith.constant 384 : index
    %387 = vector.load %arg3[%c1_136, %c0_137, %c384_138] : memref<7x16x768xf32, #tpu.memory_space<vmem>>, vector<1x16x384xf32>
    %388 = vector.shape_cast %387 : vector<1x16x384xf32> to vector<16x384xf32>
    %389 = vector.shape_cast %386 : vector<16x384xf32> to vector<1x16x384xf32>
    tpu.vector_store %arg3[%c1_136, %c0_137, %c384_138], %389 {strides = array<i32>} : memref<7x16x768xf32, #tpu.memory_space<vmem>>, vector<1x16x384xf32>,
    %c7_i32_139 = arith.constant 7 : i32
    %390 = arith.muli %arg0, %c7_i32_139 : i32
    %c1_i32_140 = arith.constant 1 : i32
    %391 = arith.subi %390, %c1_i32_140 : i32
    %c4_i32_141 = arith.constant 4 : i32
    %392 = arith.addi %391, %c4_i32_141 : i32
    %393 = arith.index_cast %392 : i32 to index
    %c0_142 = arith.constant 0 : index
    %c384_143 = arith.constant 384 : index
    %394 = vector.load %arg1[%393, %c0_142, %c384_143] : memref<14x16x768xf32, #tpu.memory_space<vmem>>, vector<1x16x384xf32>
    %395 = vector.shape_cast %394 : vector<1x16x384xf32> to vector<16x384xf32>
    %c1_i32_144 = arith.constant 1 : i32
    %396 = tpu.dynamic_rotate %395 by %c1_i32_144 dim 0 : vector<16x384xf32>, i32 -> vector<16x384xf32>
    %c15_i32_145 = arith.constant 15 : i32
    %397 = tpu.dynamic_rotate %395 by %c15_i32_145 dim 0 : vector<16x384xf32>, i32 -> vector<16x384xf32>
    %398 = arith.mulf %396, %263 : vector<16x384xf32>
    %399 = arith.mulf %395, %267 : vector<16x384xf32>
    %400 = arith.addf %398, %399 : vector<16x384xf32>
    %401 = arith.mulf %397, %271 : vector<16x384xf32>
    %402 = arith.addf %400, %401 : vector<16x384xf32>
    %403 = arith.mulf %396, %275 : vector<16x384xf32>
    %404 = arith.mulf %395, %279 : vector<16x384xf32>
    %405 = arith.addf %403, %404 : vector<16x384xf32>
    %406 = arith.mulf %397, %283 : vector<16x384xf32>
    %407 = arith.addf %405, %406 : vector<16x384xf32>
    %408 = arith.addf %374, %407 : vector<16x384xf32>
    %409 = arith.mulf %396, %287 : vector<16x384xf32>
    %410 = arith.mulf %395, %291 : vector<16x384xf32>
    %411 = arith.addf %409, %410 : vector<16x384xf32>
    %412 = arith.mulf %397, %295 : vector<16x384xf32>
    %413 = arith.addf %411, %412 : vector<16x384xf32>
    %414 = arith.addf %380, %413 : vector<16x384xf32>
    %c2_146 = arith.constant 2 : index
    %c0_147 = arith.constant 0 : index
    %c384_148 = arith.constant 384 : index
    %415 = vector.load %arg3[%c2_146, %c0_147, %c384_148] : memref<7x16x768xf32, #tpu.memory_space<vmem>>, vector<1x16x384xf32>
    %416 = vector.shape_cast %415 : vector<1x16x384xf32> to vector<16x384xf32>
    %417 = vector.shape_cast %414 : vector<16x384xf32> to vector<1x16x384xf32>
    tpu.vector_store %arg3[%c2_146, %c0_147, %c384_148], %417 {strides = array<i32>} : memref<7x16x768xf32, #tpu.memory_space<vmem>>, vector<1x16x384xf32>,
    %c7_i32_149 = arith.constant 7 : i32
    %418 = arith.muli %arg0, %c7_i32_149 : i32
    %c1_i32_150 = arith.constant 1 : i32
    %419 = arith.subi %418, %c1_i32_150 : i32
    %c5_i32_151 = arith.constant 5 : i32
    %420 = arith.addi %419, %c5_i32_151 : i32
    %421 = arith.index_cast %420 : i32 to index
    %c0_152 = arith.constant 0 : index
    %c384_153 = arith.constant 384 : index
    %422 = vector.load %arg1[%421, %c0_152, %c384_153] : memref<14x16x768xf32, #tpu.memory_space<vmem>>, vector<1x16x384xf32>
    %423 = vector.shape_cast %422 : vector<1x16x384xf32> to vector<16x384xf32>
    %c1_i32_154 = arith.constant 1 : i32
    %424 = tpu.dynamic_rotate %423 by %c1_i32_154 dim 0 : vector<16x384xf32>, i32 -> vector<16x384xf32>
    %c15_i32_155 = arith.constant 15 : i32
    %425 = tpu.dynamic_rotate %423 by %c15_i32_155 dim 0 : vector<16x384xf32>, i32 -> vector<16x384xf32>
    %426 = arith.mulf %424, %263 : vector<16x384xf32>
    %427 = arith.mulf %423, %267 : vector<16x384xf32>
    %428 = arith.addf %426, %427 : vector<16x384xf32>
    %429 = arith.mulf %425, %271 : vector<16x384xf32>
    %430 = arith.addf %428, %429 : vector<16x384xf32>
    %431 = arith.mulf %424, %275 : vector<16x384xf32>
    %432 = arith.mulf %423, %279 : vector<16x384xf32>
    %433 = arith.addf %431, %432 : vector<16x384xf32>
    %434 = arith.mulf %425, %283 : vector<16x384xf32>
    %435 = arith.addf %433, %434 : vector<16x384xf32>
    %436 = arith.addf %402, %435 : vector<16x384xf32>
    %437 = arith.mulf %424, %287 : vector<16x384xf32>
    %438 = arith.mulf %423, %291 : vector<16x384xf32>
    %439 = arith.addf %437, %438 : vector<16x384xf32>
    %440 = arith.mulf %425, %295 : vector<16x384xf32>
    %441 = arith.addf %439, %440 : vector<16x384xf32>
    %442 = arith.addf %408, %441 : vector<16x384xf32>
    %c3_156 = arith.constant 3 : index
    %c0_157 = arith.constant 0 : index
    %c384_158 = arith.constant 384 : index
    %443 = vector.load %arg3[%c3_156, %c0_157, %c384_158] : memref<7x16x768xf32, #tpu.memory_space<vmem>>, vector<1x16x384xf32>
    %444 = vector.shape_cast %443 : vector<1x16x384xf32> to vector<16x384xf32>
    %445 = vector.shape_cast %442 : vector<16x384xf32> to vector<1x16x384xf32>
    tpu.vector_store %arg3[%c3_156, %c0_157, %c384_158], %445 {strides = array<i32>} : memref<7x16x768xf32, #tpu.memory_space<vmem>>, vector<1x16x384xf32>,
    %c7_i32_159 = arith.constant 7 : i32
    %446 = arith.muli %arg0, %c7_i32_159 : i32
    %c1_i32_160 = arith.constant 1 : i32
    %447 = arith.subi %446, %c1_i32_160 : i32
    %c6_i32_161 = arith.constant 6 : i32
    %448 = arith.addi %447, %c6_i32_161 : i32
    %449 = arith.index_cast %448 : i32 to index
    %c0_162 = arith.constant 0 : index
    %c384_163 = arith.constant 384 : index
    %450 = vector.load %arg1[%449, %c0_162, %c384_163] : memref<14x16x768xf32, #tpu.memory_space<vmem>>, vector<1x16x384xf32>
    %451 = vector.shape_cast %450 : vector<1x16x384xf32> to vector<16x384xf32>
    %c1_i32_164 = arith.constant 1 : i32
    %452 = tpu.dynamic_rotate %451 by %c1_i32_164 dim 0 : vector<16x384xf32>, i32 -> vector<16x384xf32>
    %c15_i32_165 = arith.constant 15 : i32
    %453 = tpu.dynamic_rotate %451 by %c15_i32_165 dim 0 : vector<16x384xf32>, i32 -> vector<16x384xf32>
    %454 = arith.mulf %452, %263 : vector<16x384xf32>
    %455 = arith.mulf %451, %267 : vector<16x384xf32>
    %456 = arith.addf %454, %455 : vector<16x384xf32>
    %457 = arith.mulf %453, %271 : vector<16x384xf32>
    %458 = arith.addf %456, %457 : vector<16x384xf32>
    %459 = arith.mulf %452, %275 : vector<16x384xf32>
    %460 = arith.mulf %451, %279 : vector<16x384xf32>
    %461 = arith.addf %459, %460 : vector<16x384xf32>
    %462 = arith.mulf %453, %283 : vector<16x384xf32>
    %463 = arith.addf %461, %462 : vector<16x384xf32>
    %464 = arith.addf %430, %463 : vector<16x384xf32>
    %465 = arith.mulf %452, %287 : vector<16x384xf32>
    %466 = arith.mulf %451, %291 : vector<16x384xf32>
    %467 = arith.addf %465, %466 : vector<16x384xf32>
    %468 = arith.mulf %453, %295 : vector<16x384xf32>
    %469 = arith.addf %467, %468 : vector<16x384xf32>
    %470 = arith.addf %436, %469 : vector<16x384xf32>
    %c4_166 = arith.constant 4 : index
    %c0_167 = arith.constant 0 : index
    %c384_168 = arith.constant 384 : index
    %471 = vector.load %arg3[%c4_166, %c0_167, %c384_168] : memref<7x16x768xf32, #tpu.memory_space<vmem>>, vector<1x16x384xf32>
    %472 = vector.shape_cast %471 : vector<1x16x384xf32> to vector<16x384xf32>
    %473 = vector.shape_cast %470 : vector<16x384xf32> to vector<1x16x384xf32>
    tpu.vector_store %arg3[%c4_166, %c0_167, %c384_168], %473 {strides = array<i32>} : memref<7x16x768xf32, #tpu.memory_space<vmem>>, vector<1x16x384xf32>,
    %c7_i32_169 = arith.constant 7 : i32
    %474 = arith.muli %arg0, %c7_i32_169 : i32
    %c1_i32_170 = arith.constant 1 : i32
    %475 = arith.subi %474, %c1_i32_170 : i32
    %c7_i32_171 = arith.constant 7 : i32
    %476 = arith.addi %475, %c7_i32_171 : i32
    %477 = arith.index_cast %476 : i32 to index
    %c0_172 = arith.constant 0 : index
    %c384_173 = arith.constant 384 : index
    %478 = vector.load %arg1[%477, %c0_172, %c384_173] : memref<14x16x768xf32, #tpu.memory_space<vmem>>, vector<1x16x384xf32>
    %479 = vector.shape_cast %478 : vector<1x16x384xf32> to vector<16x384xf32>
    %c1_i32_174 = arith.constant 1 : i32
    %480 = tpu.dynamic_rotate %479 by %c1_i32_174 dim 0 : vector<16x384xf32>, i32 -> vector<16x384xf32>
    %c15_i32_175 = arith.constant 15 : i32
    %481 = tpu.dynamic_rotate %479 by %c15_i32_175 dim 0 : vector<16x384xf32>, i32 -> vector<16x384xf32>
    %482 = arith.mulf %480, %275 : vector<16x384xf32>
    %483 = arith.mulf %479, %279 : vector<16x384xf32>
    %484 = arith.addf %482, %483 : vector<16x384xf32>
    %485 = arith.mulf %481, %283 : vector<16x384xf32>
    %486 = arith.addf %484, %485 : vector<16x384xf32>
    %487 = arith.addf %458, %486 : vector<16x384xf32>
    %488 = arith.mulf %480, %287 : vector<16x384xf32>
    %489 = arith.mulf %479, %291 : vector<16x384xf32>
    %490 = arith.addf %488, %489 : vector<16x384xf32>
    %491 = arith.mulf %481, %295 : vector<16x384xf32>
    %492 = arith.addf %490, %491 : vector<16x384xf32>
    %493 = arith.addf %464, %492 : vector<16x384xf32>
    %c5_176 = arith.constant 5 : index
    %c0_177 = arith.constant 0 : index
    %c384_178 = arith.constant 384 : index
    %494 = vector.load %arg3[%c5_176, %c0_177, %c384_178] : memref<7x16x768xf32, #tpu.memory_space<vmem>>, vector<1x16x384xf32>
    %495 = vector.shape_cast %494 : vector<1x16x384xf32> to vector<16x384xf32>
    %496 = vector.shape_cast %493 : vector<16x384xf32> to vector<1x16x384xf32>
    tpu.vector_store %arg3[%c5_176, %c0_177, %c384_178], %496 {strides = array<i32>} : memref<7x16x768xf32, #tpu.memory_space<vmem>>, vector<1x16x384xf32>,
    %c7_i32_179 = arith.constant 7 : i32
    %497 = arith.muli %arg0, %c7_i32_179 : i32
    %c1_i32_180 = arith.constant 1 : i32
    %498 = arith.subi %497, %c1_i32_180 : i32
    %c8_i32_181 = arith.constant 8 : i32
    %499 = arith.addi %498, %c8_i32_181 : i32
    %c13_i32_182 = arith.constant 13 : i32
    %500 = arith.minsi %499, %c13_i32_182 : i32
    %c13_i32_183 = arith.constant 13 : i32
    %501 = arith.cmpi sle, %499, %c13_i32_183 : i32
    %502 = arith.extui %501 : i1 to i32
    %503 = arith.sitofp %502 : i32 to f32
    %504 = arith.index_cast %500 : i32 to index
    %c0_184 = arith.constant 0 : index
    %c384_185 = arith.constant 384 : index
    %505 = vector.load %arg1[%504, %c0_184, %c384_185] : memref<14x16x768xf32, #tpu.memory_space<vmem>>, vector<1x16x384xf32>
    %506 = vector.shape_cast %505 : vector<1x16x384xf32> to vector<16x384xf32>
    %507 = vector.broadcast %503 : f32 to vector<16x384xf32>
    %508 = arith.mulf %506, %507 : vector<16x384xf32>
    %c1_i32_186 = arith.constant 1 : i32
    %509 = tpu.dynamic_rotate %508 by %c1_i32_186 dim 0 : vector<16x384xf32>, i32 -> vector<16x384xf32>
    %c15_i32_187 = arith.constant 15 : i32
    %510 = tpu.dynamic_rotate %508 by %c15_i32_187 dim 0 : vector<16x384xf32>, i32 -> vector<16x384xf32>
    %511 = arith.mulf %509, %287 : vector<16x384xf32>
    %512 = arith.mulf %508, %291 : vector<16x384xf32>
    %513 = arith.addf %511, %512 : vector<16x384xf32>
    %514 = arith.mulf %510, %295 : vector<16x384xf32>
    %515 = arith.addf %513, %514 : vector<16x384xf32>
    %516 = arith.addf %487, %515 : vector<16x384xf32>
    %c6_188 = arith.constant 6 : index
    %c0_189 = arith.constant 0 : index
    %c384_190 = arith.constant 384 : index
    %517 = vector.load %arg3[%c6_188, %c0_189, %c384_190] : memref<7x16x768xf32, #tpu.memory_space<vmem>>, vector<1x16x384xf32>
    %518 = vector.shape_cast %517 : vector<1x16x384xf32> to vector<16x384xf32>
    %519 = vector.shape_cast %516 : vector<16x384xf32> to vector<1x16x384xf32>
    tpu.vector_store %arg3[%c6_188, %c0_189, %c384_190], %519 {strides = array<i32>} : memref<7x16x768xf32, #tpu.memory_space<vmem>>, vector<1x16x384xf32>,
    return
  }
  func.func @transform_0(%arg0: i32) -> (i32, i32, i32) {
    %c0_i32 = arith.constant 0 : i32
    %c0_i32_0 = arith.constant 0 : i32
    %c0_i32_1 = arith.constant 0 : i32
    %c0_i32_2 = arith.constant 0 : i32
    return %c0_i32, %c0_i32_0, %c0_i32_1 : i32, i32, i32
  }
  func.func @transform_1(%arg0: i32) -> (i32, i32) {
    %c0_i32 = arith.constant 0 : i32
    %c0_i32_0 = arith.constant 0 : i32
    %c0_i32_1 = arith.constant 0 : i32
    return %c0_i32, %c0_i32_0 : i32, i32
  }
  func.func @transform_2(%arg0: i32) -> (i32, i32, i32) {
    %c0_i32 = arith.constant 0 : i32
    %c0_i32_0 = arith.constant 0 : i32
    %c0_i32_1 = arith.constant 0 : i32
    return %arg0, %c0_i32, %c0_i32_0 : i32, i32, i32
  }
}

</mosaic_0001>

<llo_original>
// kernel: depthwise_conv3x3.1
$region0: #{depthwise_conv3x3.1}
  #allocation0 [shape = 'u32[]', space=smem, size = 0x4, offset = 0x4, fixed_abs, tag = 'smem constant byte address 0x4 - core index']
  #allocation1 [shape = 'u32[144,128]{1,0:T(1,128)}', space=vmem, size = 0x12000, scoped, tag = 'internal scratch']
  %s0 = inlined_call_operand.vmem [shape: f32[14,16,768], index: 0, kind: input, shape index: {}]
  %s1 = inlined_call_operand.vmem [shape: f32[9,768], index: 1, kind: input, shape index: {}]
  %s2 = inlined_call_operand.vmem [shape: f32[14,16,768], index: 2, kind: output, shape index: {}]
  %s3 = sld [smem:[#allocation0]]
  $region41: #{depthwise_conv3x3.1} parent=0
    _
  %s5 = ssub.s32 1, %s3
  %s6 = scalar_select 0, %s5, %s3
  loop: start=0, step=1, limit=4
  $region2: #{depthwise_conv3x3.1} parent=0 // loop_pre_header
    _
  $region3: #{depthwise_conv3x3.1} parent=0 // loop_header
    %s8 = sphi 0, %s12
    %p9 = scmp.ge.s32.totalorder %s8, 4
    %s16 = sphi 0, %s16
    %s18 = sphi 0, %s16
    %s19 = sphi 0, %s18
    %s33 = sphi 0, %s19
    %s37 = sphi 0, %s37
    %s39 = sphi 0, %s37
    %s40 = sphi 0, %s39
    %s54 = sphi 0, %s40
    %s60 = sphi 0, %s62
    %s63 = sphi 0, %s60
    %s64 = sphi 0, %s63
    %s80 = sphi 0, %s64
  $region4: #{depthwise_conv3x3.1} parent=0 // loop_header_branch
    %11 = sbr.rel (%p9) target = $region8
  $region5: #{depthwise_conv3x3.1} parent=0 // loop_body
    %s13 = ssub.s32 %s8, 1
    %s14 = ssub.s32 %s8, 2
    %s15 = sadd.s32 %s8, 1
    %s17 = sadd.s32 %s16, 1
    %p20 = scmp.eq.s32.totalorder %s8, 1
    %p21 = scmp.ne.s32.totalorder %s16, %s18
    %p22 = scmp.eq.s32.totalorder %s8, 0
    %p23 = por %p21, %p22
    %p24 = scmp.ne.s32.totalorder %s16, %s18
    %p25 = scmp.eq.s32.totalorder %s13, 1
    %p26 = por %p24, %p25
    %p27 = scmp.ne.s32.totalorder %s18, %s19
    %p28 = scmp.eq.s32.totalorder %s13, 0
    %p29 = por %p27, %p28
    %p30 = scmp.ne.s32.totalorder %s18, %s19
    %p31 = scmp.eq.s32.totalorder %s14, 1
    %p32 = por %p30, %p31
    %p34 = scmp.ne.s32.totalorder %s19, %s33
    %p35 = scmp.eq.s32.totalorder %s14, 0
    %p36 = por %p34, %p35
    %s38 = sadd.s32 %s37, 1
    %p41 = scmp.eq.s32.totalorder %s8, 1
    %p42 = scmp.ne.s32.totalorder %s37, %s39
    %p43 = scmp.eq.s32.totalorder %s8, 0
    %p44 = por %p42, %p43
    %p45 = scmp.ne.s32.totalorder %s37, %s39
    %p46 = scmp.eq.s32.totalorder %s13, 1
    %p47 = por %p45, %p46
    %p48 = scmp.ne.s32.totalorder %s39, %s40
    %p49 = scmp.eq.s32.totalorder %s13, 0
    %p50 = por %p48, %p49
    %p51 = scmp.ne.s32.totalorder %s39, %s40
    %p52 = scmp.eq.s32.totalorder %s14, 1
    %p53 = por %p51, %p52
    %p55 = scmp.ne.s32.totalorder %s40, %s54
    %p56 = scmp.eq.s32.totalorder %s14, 0
    %p57 = por %p55, %p56
    %s58 = ssub.s32 %s8, %s15
    %p59 = scmp.eq.s32.totalorder %s58, 0
    %s61 = sadd.s32 %s60, 1
    %s62 = scalar_select %p59, %s60, %s61
    %p65 = pneg %p59
    %p66 = scmp.eq.s32.totalorder %s8, 1
    %p67 = por %p65, %p66
    %p68 = scmp.ne.s32.totalorder %s60, %s63
    %p69 = scmp.eq.s32.totalorder %s8, 0
    %p70 = por %p68, %p69
    %p71 = scmp.ne.s32.totalorder %s60, %s63
    %p72 = scmp.eq.s32.totalorder %s13, 1
    %p73 = por %p71, %p72
    %p74 = scmp.ne.s32.totalorder %s63, %s64
    %p75 = scmp.eq.s32.totalorder %s13, 0
    %p76 = por %p74, %p75
    %p77 = scmp.ne.s32.totalorder %s63, %s64
    %p78 = scmp.eq.s32.totalorder %s14, 1
    %p79 = por %p77, %p78
    %p81 = scmp.ne.s32.totalorder %s64, %s80
    %p82 = scmp.eq.s32.totalorder %s14, 0
    %p83 = por %p81, %p82
    %p84 = scmp.le.s32.totalorder 1, %s8
    %p85 = scmp.lt.s32.totalorder %s8, 3
    %p86 = pnand %p84, %p85
    %p87 = pneg %p86
    // Predicated region
    $region9: #{depthwise_conv3x3.1} parent=5 // pred_check
      _
    $region10: #{depthwise_conv3x3.1} parent=5 // pred_check_branch
      %89 = sbr.rel (%p86) target = $region12
    $region11: #{depthwise_conv3x3.1} parent=5 // pred_region
      %s90 = ssub.s32 %s8, 1
      // Predicated region
      $region13: #{depthwise_conv3x3.1} parent=11 // pred_check
        %p91 = pneg %p29
      $region14: #{depthwise_conv3x3.1} parent=11 // pred_check_branch
        %93 = sbr.rel (%p91) target = $region16
      $region15: #{depthwise_conv3x3.1} parent=11 // pred_region
        _
      $region16: #{depthwise_conv3x3.1} parent=11 // pred_fallthru
        _
      // Predicated region
      $region17: #{depthwise_conv3x3.1} parent=11 // pred_check
        %p94 = pneg %p50
      $region18: #{depthwise_conv3x3.1} parent=11 // pred_check_branch
        %96 = sbr.rel (%p94) target = $region20
      $region19: #{depthwise_conv3x3.1} parent=11 // pred_region
        _
      $region20: #{depthwise_conv3x3.1} parent=11 // pred_fallthru
        _
    $region12: #{depthwise_conv3x3.1} parent=5 // pred_fallthru
      _
    %p97 = scmp.lt.s32.totalorder %s8, 2
    // Predicated region
    $region21: #{depthwise_conv3x3.1} parent=5 // pred_check
      %p98 = pneg %p97
    $region22: #{depthwise_conv3x3.1} parent=5 // pred_check_branch
      %100 = sbr.rel (%p98) target = $region24
    $region23: #{depthwise_conv3x3.1} parent=5 // pred_region
      _
    $region24: #{depthwise_conv3x3.1} parent=5 // pred_fallthru
      _
    %p101 = scmp.le.s32.totalorder 1, %s8
    %p102 = scmp.lt.s32.totalorder %s8, 3
    %p103 = pnand %p101, %p102
    %p104 = pneg %p103
    // Predicated region
    $region25: #{depthwise_conv3x3.1} parent=5 // pred_check
      _
    $region26: #{depthwise_conv3x3.1} parent=5 // pred_check_branch
      %106 = sbr.rel (%p103) target = $region28
    $region27: #{depthwise_conv3x3.1} parent=5 // pred_region
      %s107 = ssub.s32 %s8, 1
      %p108 = pneg %p29
      %p109 = pneg %p26
      %p110 = pneg %p50
      %p111 = pneg %p47
      %p112 = pneg %p76
      %p113 = pneg %p73
      %s114 = smul.u32 7, %s13
      %p115 = scmp.lt.s32.totalorder %s114, 13
      %s116 = scalar_select %p115, %s114, 13
      %s117 = smul.addr %s116, 12
      %s118 = smul.addr %s117, 8
      %s119 = scalar_lea.vmem %s2, %s118
      %s120 = smul.u32 7, %s13
      %p121 = scmp.lt.s32.totalorder %s120, 13
      %s122 = scalar_select %p121, %s120, 13
      %s123 = smul.addr %s122, 12
      %s124 = smul.addr %s123, 8
      %s125 = scalar_lea.vmem %s2, %s124
      %s126 = smul.u32 7, %s13
      %v127 = vld [vmem:[%s1] ss:$8 sm:$0x7]
      %v129 = vlaneseq
      %v130 = vshrl.u32 %v129, 7
      %v131 = vsub.s32 0, %v130
      %v132 = vrot.slane %v127, %v131
      %v133 = vlaneseq
      %v134 = vshrl.u32 %v133, 7
      %v135 = vsub.s32 1, %v134
      %v136 = vrot.slane %v127, %v135
      %v137 = vlaneseq
      %v138 = vshrl.u32 %v137, 7
      %v139 = vsub.s32 2, %v138
      %v140 = vrot.slane %v127, %v139
      %s144 = scalar_lea.vmem %s1, 1
      %v145 = vld [vmem:[%s144] ss:$8 sm:$0x7]
      %v147 = vlaneseq
      %v148 = vshrl.u32 %v147, 7
      %v149 = vsub.s32 0, %v148
      %v150 = vrot.slane %v145, %v149
      %v151 = vlaneseq
      %v152 = vshrl.u32 %v151, 7
      %v153 = vsub.s32 1, %v152
      %v154 = vrot.slane %v145, %v153
      %v155 = vlaneseq
      %v156 = vshrl.u32 %v155, 7
      %v157 = vsub.s32 2, %v156
      %v158 = vrot.slane %v145, %v157
      %s162 = scalar_lea.vmem %s1, 2
      %v163 = vld [vmem:[%s162] ss:$8 sm:$0x7]
      %v165 = vlaneseq
      %v166 = vshrl.u32 %v165, 7
      %v167 = vsub.s32 0, %v166
      %v168 = vrot.slane %v163, %v167
      %v169 = vlaneseq
      %v170 = vshrl.u32 %v169, 7
      %v171 = vsub.s32 1, %v170
      %v172 = vrot.slane %v163, %v171
      %v173 = vlaneseq
      %v174 = vshrl.u32 %v173, 7
      %v175 = vsub.s32 2, %v174
      %v176 = vrot.slane %v163, %v175
      %s180 = scalar_lea.vmem %s1, 3
      %v181 = vld [vmem:[%s180] ss:$8 sm:$0x7]
      %v183 = vlaneseq
      %v184 = vshrl.u32 %v183, 7
      %v185 = vsub.s32 0, %v184
      %v186 = vrot.slane %v181, %v185
      %v187 = vlaneseq
      %v188 = vshrl.u32 %v187, 7
      %v189 = vsub.s32 1, %v188
      %v190 = vrot.slane %v181, %v189
      %v191 = vlaneseq
      %v192 = vshrl.u32 %v191, 7
      %v193 = vsub.s32 2, %v192
      %v194 = vrot.slane %v181, %v193
      %s198 = scalar_lea.vmem %s1, 4
      %v199 = vld [vmem:[%s198] ss:$8 sm:$0x7]
      %v201 = vlaneseq
      %v202 = vshrl.u32 %v201, 7
      %v203 = vsub.s32 0, %v202
      %v204 = vrot.slane %v199, %v203
      %v205 = vlaneseq
      %v206 = vshrl.u32 %v205, 7
      %v207 = vsub.s32 1, %v206
      %v208 = vrot.slane %v199, %v207
      %v209 = vlaneseq
      %v210 = vshrl.u32 %v209, 7
      %v211 = vsub.s32 2, %v210
      %v212 = vrot.slane %v199, %v211
      %s216 = scalar_lea.vmem %s1, 5
      %v217 = vld [vmem:[%s216] ss:$8 sm:$0x7]
      %v219 = vlaneseq
      %v220 = vshrl.u32 %v219, 7
      %v221 = vsub.s32 0, %v220
      %v222 = vrot.slane %v217, %v221
      %v223 = vlaneseq
      %v224 = vshrl.u32 %v223, 7
      %v225 = vsub.s32 1, %v224
      %v226 = vrot.slane %v217, %v225
      %v227 = vlaneseq
      %v228 = vshrl.u32 %v227, 7
      %v229 = vsub.s32 2, %v228
      %v230 = vrot.slane %v217, %v229
      %s234 = scalar_lea.vmem %s1, 6
      %v235 = vld [vmem:[%s234] ss:$8 sm:$0x7]
      %v237 = vlaneseq
      %v238 = vshrl.u32 %v237, 7
      %v239 = vsub.s32 0, %v238
      %v240 = vrot.slane %v235, %v239
      %v241 = vlaneseq
      %v242 = vshrl.u32 %v241, 7
      %v243 = vsub.s32 1, %v242
      %v244 = vrot.slane %v235, %v243
      %v245 = vlaneseq
      %v246 = vshrl.u32 %v245, 7
      %v247 = vsub.s32 2, %v246
      %v248 = vrot.slane %v235, %v247
      %s252 = scalar_lea.vmem %s1, 7
      %v253 = vld [vmem:[%s252] ss:$8 sm:$0x7]
      %v255 = vlaneseq
      %v256 = vshrl.u32 %v255, 7
      %v257 = vsub.s32 0, %v256
      %v258 = vrot.slane %v253, %v257
      %v259 = vlaneseq
      %v260 = vshrl.u32 %v259, 7
      %v261 = vsub.s32 1, %v260
      %v262 = vrot.slane %v253, %v261
      %v263 = vlaneseq
      %v264 = vshrl.u32 %v263, 7
      %v265 = vsub.s32 2, %v264
      %v266 = vrot.slane %v253, %v265
      %s270 = scalar_lea.vmem %s1, 48
      %v271 = vld [vmem:[%s270] ss:$8 sm:$0x7]
      %v273 = vlaneseq
      %v274 = vshrl.u32 %v273, 7
      %v275 = vsub.s32 0, %v274
      %v276 = vrot.slane %v271, %v275
      %v277 = vlaneseq
      %v278 = vshrl.u32 %v277, 7
      %v279 = vsub.s32 1, %v278
      %v280 = vrot.slane %v271, %v279
      %v281 = vlaneseq
      %v282 = vshrl.u32 %v281, 7
      %v283 = vsub.s32 2, %v282
      %v284 = vrot.slane %v271, %v283
      %s288 = smul.u32 %s13, 7
      %s289 = ssub.s32 %s288, 1
      %p290 = scmp.gt.s32.totalorder %s289, 0
      %s291 = scalar_select %p290, %s289, 0
      %p292 = scmp.ge.s32.totalorder %s289, 0
      %s293 = scalar_select %p292, 1, 0
      %s294 = scvt.s32.f32 %s293
      %s295 = smul.u32 %s291, 12
      %s296 = smul.addr %s295, 8
      %s297 = scalar_lea.vmem %s0, %s296
      %v298 = vld [vmem:[%s297] sm:$0xff]
      %v299 = vld [vmem:[%s297 + $0x8] sm:$0xff]
      %v300 = vld [vmem:[%s297 + $0x10] sm:$0xff]
      %v301 = vld [vmem:[%s297 + $0x30] sm:$0xff]
      %v302 = vld [vmem:[%s297 + $0x38] sm:$0xff]
      %v303 = vld [vmem:[%s297 + $0x40] sm:$0xff]
      %v304 = vstv %s294
      %v305 = vmul.f32 %v298, %v304
      %v306 = vmul.f32 %v299, %v304
      %v307 = vmul.f32 %v300, %v304
      %v308 = vmul.f32 %v301, %v304
      %v309 = vmul.f32 %v302, %v304
      %v310 = vmul.f32 %v303, %v304
      %v311 = vrot.slane %v305, 7
      %v312 = vrot.slane %v306, 7
      %v313 = vrot.slane %v307, 7
      %v314 = vrot.slane %v308, 7
      %v315 = vrot.slane %v309, 7
      %v316 = vrot.slane %v310, 7
      %v317 = vlaneseq
      %v318 = vshrl.u32 %v317, 7
      %vm319 = vcmp.lt.s32.totalorder %v318, 1
      %v320 = vsel %vm319, %v311, %v314
      %v321 = vsel %vm319, %v312, %v315
      %v322 = vsel %vm319, %v313, %v316
      %v323 = vsel %vm319, %v314, %v311
      %v324 = vsel %vm319, %v315, %v312
      %v325 = vsel %vm319, %v316, %v313
      %v326 = vrot.slane %v305, 1
      %v327 = vrot.slane %v306, 1
      %v328 = vrot.slane %v307, 1
      %v329 = vrot.slane %v308, 1
      %v330 = vrot.slane %v309, 1
      %v331 = vrot.slane %v310, 1
      %vm332 = vcmp.lt.s32.totalorder %v318, 7
      %v333 = vsel %vm332, %v326, %v329
      %v334 = vsel %vm332, %v327, %v330
      %v335 = vsel %vm332, %v328, %v331
      %v336 = vsel %vm332, %v329, %v326
      %v337 = vsel %vm332, %v330, %v327
      %v338 = vsel %vm332, %v331, %v328
      %v339 = vmul.f32 %v323, %v132
      %v340 = vmul.f32 %v324, %v136
      %v341 = vmul.f32 %v325, %v140
      %v342 = vmul.f32 %v320, %v132
      %v343 = vmul.f32 %v321, %v136
      %v344 = vmul.f32 %v322, %v140
      %v345 = vmul.f32 %v305, %v150
      %v346 = vmul.f32 %v306, %v154
      %v347 = vmul.f32 %v307, %v158
      %v348 = vmul.f32 %v308, %v150
      %v349 = vmul.f32 %v309, %v154
      %v350 = vmul.f32 %v310, %v158
      %v351 = vadd.f32 %v339, %v345
      %v352 = vadd.f32 %v340, %v346
      %v353 = vadd.f32 %v341, %v347
      %v354 = vadd.f32 %v342, %v348
      %v355 = vadd.f32 %v343, %v349
      %v356 = vadd.f32 %v344, %v350
      %v357 = vmul.f32 %v333, %v168
      %v358 = vmul.f32 %v334, %v172
      %v359 = vmul.f32 %v335, %v176
      %v360 = vmul.f32 %v336, %v168
      %v361 = vmul.f32 %v337, %v172
      %v362 = vmul.f32 %v338, %v176
      %v363 = vadd.f32 %v351, %v357
      %v364 = vadd.f32 %v352, %v358
      %v365 = vadd.f32 %v353, %v359
      %v366 = vadd.f32 %v354, %v360
      %v367 = vadd.f32 %v355, %v361
      %v368 = vadd.f32 %v356, %v362
      %s369 = smul.u32 %s288, 12
      %s370 = smul.addr %s369, 8
      %s371 = scalar_lea.vmem %s0, %s370
      %v372 = vld [vmem:[%s371] sm:$0xff]
      %v373 = vld [vmem:[%s371 + $0x8] sm:$0xff]
      %v374 = vld [vmem:[%s371 + $0x10] sm:$0xff]
      %v375 = vld [vmem:[%s371 + $0x30] sm:$0xff]
      %v376 = vld [vmem:[%s371 + $0x38] sm:$0xff]
      %v377 = vld [vmem:[%s371 + $0x40] sm:$0xff]
      %v378 = vrot.slane %v372, 7
      %v379 = vrot.slane %v373, 7
      %v380 = vrot.slane %v374, 7
      %v381 = vrot.slane %v375, 7
      %v382 = vrot.slane %v376, 7
      %v383 = vrot.slane %v377, 7
      %v384 = vsel %vm319, %v378, %v381
      %v385 = vsel %vm319, %v379, %v382
      %v386 = vsel %vm319, %v380, %v383
      %v387 = vsel %vm319, %v381, %v378
      %v388 = vsel %vm319, %v382, %v379
      %v389 = vsel %vm319, %v383, %v380
      %v390 = vrot.slane %v372, 1
      %v391 = vrot.slane %v373, 1
      %v392 = vrot.slane %v374, 1
      %v393 = vrot.slane %v375, 1
      %v394 = vrot.slane %v376, 1
      %v395 = vrot.slane %v377, 1
      %v396 = vsel %vm332, %v390, %v393
      %v397 = vsel %vm332, %v391, %v394
      %v398 = vsel %vm332, %v392, %v395
      %v399 = vsel %vm332, %v393, %v390
      %v400 = vsel %vm332, %v394, %v391
      %v401 = vsel %vm332, %v395, %v392
      %v402 = vmul.f32 %v387, %v132
      %v403 = vmul.f32 %v388, %v136
      %v404 = vmul.f32 %v389, %v140
      %v405 = vmul.f32 %v384, %v132
      %v406 = vmul.f32 %v385, %v136
      %v407 = vmul.f32 %v386, %v140
      %v408 = vmul.f32 %v372, %v150
      %v409 = vmul.f32 %v373, %v154
      %v410 = vmul.f32 %v374, %v158
      %v411 = vmul.f32 %v375, %v150
      %v412 = vmul.f32 %v376, %v154
      %v413 = vmul.f32 %v377, %v158
      %v414 = vadd.f32 %v402, %v408
      %v415 = vadd.f32 %v403, %v409
      %v416 = vadd.f32 %v404, %v410
      %v417 = vadd.f32 %v405, %v411
      %v418 = vadd.f32 %v406, %v412
      %v419 = vadd.f32 %v407, %v413
      %v420 = vmul.f32 %v396, %v168
      %v421 = vmul.f32 %v397, %v172
      %v422 = vmul.f32 %v398, %v176
      %v423 = vmul.f32 %v399, %v168
      %v424 = vmul.f32 %v400, %v172
      %v425 = vmul.f32 %v401, %v176
      %v426 = vadd.f32 %v414, %v420
      %v427 = vadd.f32 %v415, %v421
      %v428 = vadd.f32 %v416, %v422
      %v429 = vadd.f32 %v417, %v423
      %v430 = vadd.f32 %v418, %v424
      %v431 = vadd.f32 %v419, %v425
      %v432 = vmul.f32 %v387, %v186
      %v433 = vmul.f32 %v388, %v190
      %v434 = vmul.f32 %v389, %v194
      %v435 = vmul.f32 %v384, %v186
      %v436 = vmul.f32 %v385, %v190
      %v437 = vmul.f32 %v386, %v194
      %v438 = vmul.f32 %v372, %v204
      %v439 = vmul.f32 %v373, %v208
      %v440 = vmul.f32 %v374, %v212
      %v441 = vmul.f32 %v375, %v204
      %v442 = vmul.f32 %v376, %v208
      %v443 = vmul.f32 %v377, %v212
      %v444 = vadd.f32 %v432, %v438
      %v445 = vadd.f32 %v433, %v439
      %v446 = vadd.f32 %v434, %v440
      %v447 = vadd.f32 %v435, %v441
      %v448 = vadd.f32 %v436, %v442
      %v449 = vadd.f32 %v437, %v443
      %v450 = vmul.f32 %v396, %v222
      %v451 = vmul.f32 %v397, %v226
      %v452 = vmul.f32 %v398, %v230
      %v453 = vmul.f32 %v399, %v222
      %v454 = vmul.f32 %v400, %v226
      %v455 = vmul.f32 %v401, %v230
      %v456 = vadd.f32 %v444, %v450
      %v457 = vadd.f32 %v445, %v451
      %v458 = vadd.f32 %v446, %v452
      %v459 = vadd.f32 %v447, %v453
      %v460 = vadd.f32 %v448, %v454
      %v461 = vadd.f32 %v449, %v455
      %v462 = vadd.f32 %v363, %v456
      %v463 = vadd.f32 %v364, %v457
      %v464 = vadd.f32 %v365, %v458
      %v465 = vadd.f32 %v366, %v459
      %v466 = vadd.f32 %v367, %v460
      %v467 = vadd.f32 %v368, %v461
      %s468 = sadd.s32 %s288, 1
      %s469 = smul.u32 %s468, 12
      %s470 = smul.addr %s469, 8
      %s471 = scalar_lea.vmem %s0, %s470
      %v472 = vld [vmem:[%s471] sm:$0xff]
      %v473 = vld [vmem:[%s471 + $0x8] sm:$0xff]
      %v474 = vld [vmem:[%s471 + $0x10] sm:$0xff]
      %v475 = vld [vmem:[%s471 + $0x30] sm:$0xff]
      %v476 = vld [vmem:[%s471 + $0x38] sm:$0xff]
      %v477 = vld [vmem:[%s471 + $0x40] sm:$0xff]
      %v478 = vrot.slane %v472, 7
      %v479 = vrot.slane %v473, 7
      %v480 = vrot.slane %v474, 7
      %v481 = vrot.slane %v475, 7
      %v482 = vrot.slane %v476, 7
      %v483 = vrot.slane %v477, 7
      %v484 = vsel %vm319, %v478, %v481
      %v485 = vsel %vm319, %v479, %v482
      %v486 = vsel %vm319, %v480, %v483
      %v487 = vsel %vm319, %v481, %v478
      %v488 = vsel %vm319, %v482, %v479
      %v489 = vsel %vm319, %v483, %v480
      %v490 = vrot.slane %v472, 1
      %v491 = vrot.slane %v473, 1
      %v492 = vrot.slane %v474, 1
      %v493 = vrot.slane %v475, 1
      %v494 = vrot.slane %v476, 1
      %v495 = vrot.slane %v477, 1
      %v496 = vsel %vm332, %v490, %v493
      %v497 = vsel %vm332, %v491, %v494
      %v498 = vsel %vm332, %v492, %v495
      %v499 = vsel %vm332, %v493, %v490
      %v500 = vsel %vm332, %v494, %v491
      %v501 = vsel %vm332, %v495, %v492
      %v502 = vmul.f32 %v487, %v132
      %v503 = vmul.f32 %v488, %v136
      %v504 = vmul.f32 %v489, %v140
      %v505 = vmul.f32 %v484, %v132
      %v506 = vmul.f32 %v485, %v136
      %v507 = vmul.f32 %v486, %v140
      %v508 = vmul.f32 %v472, %v150
      %v509 = vmul.f32 %v473, %v154
      %v510 = vmul.f32 %v474, %v158
      %v511 = vmul.f32 %v475, %v150
      %v512 = vmul.f32 %v476, %v154
      %v513 = vmul.f32 %v477, %v158
      %v514 = vadd.f32 %v502, %v508
      %v515 = vadd.f32 %v503, %v509
      %v516 = vadd.f32 %v504, %v510
      %v517 = vadd.f32 %v505, %v511
      %v518 = vadd.f32 %v506, %v512
      %v519 = vadd.f32 %v507, %v513
      %v520 = vmul.f32 %v496, %v168
      %v521 = vmul.f32 %v497, %v172
      %v522 = vmul.f32 %v498, %v176
      %v523 = vmul.f32 %v499, %v168
      %v524 = vmul.f32 %v500, %v172
      %v525 = vmul.f32 %v501, %v176
      %v526 = vadd.f32 %v514, %v520
      %v527 = vadd.f32 %v515, %v521
      %v528 = vadd.f32 %v516, %v522
      %v529 = vadd.f32 %v517, %v523
      %v530 = vadd.f32 %v518, %v524
      %v531 = vadd.f32 %v519, %v525
      %v532 = vmul.f32 %v487, %v186
      %v533 = vmul.f32 %v488, %v190
      %v534 = vmul.f32 %v489, %v194
      %v535 = vmul.f32 %v484, %v186
      %v536 = vmul.f32 %v485, %v190
      %v537 = vmul.f32 %v486, %v194
      %v538 = vmul.f32 %v472, %v204
      %v539 = vmul.f32 %v473, %v208
      %v540 = vmul.f32 %v474, %v212
      %v541 = vmul.f32 %v475, %v204
      %v542 = vmul.f32 %v476, %v208
      %v543 = vmul.f32 %v477, %v212
      %v544 = vadd.f32 %v532, %v538
      %v545 = vadd.f32 %v533, %v539
      %v546 = vadd.f32 %v534, %v540
      %v547 = vadd.f32 %v535, %v541
      %v548 = vadd.f32 %v536, %v542
      %v549 = vadd.f32 %v537, %v543
      %v550 = vmul.f32 %v496, %v222
      %v551 = vmul.f32 %v497, %v226
      %v552 = vmul.f32 %v498, %v230
      %v553 = vmul.f32 %v499, %v222
      %v554 = vmul.f32 %v500, %v226
      %v555 = vmul.f32 %v501, %v230
      %v556 = vadd.f32 %v544, %v550
      %v557 = vadd.f32 %v545, %v551
      %v558 = vadd.f32 %v546, %v552
      %v559 = vadd.f32 %v547, %v553
      %v560 = vadd.f32 %v548, %v554
      %v561 = vadd.f32 %v549, %v555
      %v562 = vadd.f32 %v426, %v556
      %v563 = vadd.f32 %v427, %v557
      %v564 = vadd.f32 %v428, %v558
      %v565 = vadd.f32 %v429, %v559
      %v566 = vadd.f32 %v430, %v560
      %v567 = vadd.f32 %v431, %v561
      %v568 = vmul.f32 %v487, %v240
      %v569 = vmul.f32 %v488, %v244
      %v570 = vmul.f32 %v489, %v248
      %v571 = vmul.f32 %v484, %v240
      %v572 = vmul.f32 %v485, %v244
      %v573 = vmul.f32 %v486, %v248
      %v574 = vmul.f32 %v472, %v258
      %v575 = vmul.f32 %v473, %v262
      %v576 = vmul.f32 %v474, %v266
      %v577 = vmul.f32 %v475, %v258
      %v578 = vmul.f32 %v476, %v262
      %v579 = vmul.f32 %v477, %v266
      %v580 = vadd.f32 %v568, %v574
      %v581 = vadd.f32 %v569, %v575
      %v582 = vadd.f32 %v570, %v576
      %v583 = vadd.f32 %v571, %v577
      %v584 = vadd.f32 %v572, %v578
      %v585 = vadd.f32 %v573, %v579
      %v586 = vmul.f32 %v496, %v276
      %v587 = vmul.f32 %v497, %v280
      %v588 = vmul.f32 %v498, %v284
      %v589 = vmul.f32 %v499, %v276
      %v590 = vmul.f32 %v500, %v280
      %v591 = vmul.f32 %v501, %v284
      %v592 = vadd.f32 %v580, %v586
      %v593 = vadd.f32 %v581, %v587
      %v594 = vadd.f32 %v582, %v588
      %v595 = vadd.f32 %v583, %v589
      %v596 = vadd.f32 %v584, %v590
      %v597 = vadd.f32 %v585, %v591
      %v598 = vadd.f32 %v462, %v592
      %v599 = vadd.f32 %v463, %v593
      %v600 = vadd.f32 %v464, %v594
      %v601 = vadd.f32 %v465, %v595
      %v602 = vadd.f32 %v466, %v596
      %v603 = vadd.f32 %v467, %v597
      %604 = vst [vmem:[%s125] sm:$0xff] %v598
      %605 = vst [vmem:[%s125 + $0x8] sm:$0xff] %v599
      %606 = vst [vmem:[%s125 + $0x10] sm:$0xff] %v600
      %607 = vst [vmem:[%s125 + $0x30] sm:$0xff] %v601
      %608 = vst [vmem:[%s125 + $0x38] sm:$0xff] %v602
      %609 = vst [vmem:[%s125 + $0x40] sm:$0xff] %v603
      %s610 = sadd.s32 %s288, 2
      %s611 = smul.u32 %s610, 12
      %s612 = smul.addr %s611, 8
      %s613 = scalar_lea.vmem %s0, %s612
      %v614 = vld [vmem:[%s613] sm:$0xff]
      %v615 = vld [vmem:[%s613 + $0x8] sm:$0xff]
      %v616 = vld [vmem:[%s613 + $0x10] sm:$0xff]
      %v617 = vld [vmem:[%s613 + $0x30] sm:$0xff]
      %v618 = vld [vmem:[%s613 + $0x38] sm:$0xff]
      %v619 = vld [vmem:[%s613 + $0x40] sm:$0xff]
      %v620 = vrot.slane %v614, 7
      %v621 = vrot.slane %v615, 7
      %v622 = vrot.slane %v616, 7
      %v623 = vrot.slane %v617, 7
      %v624 = vrot.slane %v618, 7
      %v625 = vrot.slane %v619, 7
      %v626 = vsel %vm319, %v620, %v623
      %v627 = vsel %vm319, %v621, %v624
      %v628 = vsel %vm319, %v622, %v625
      %v629 = vsel %vm319, %v623, %v620
      %v630 = vsel %vm319, %v624, %v621
      %v631 = vsel %vm319, %v625, %v622
      %v632 = vrot.slane %v614, 1
      %v633 = vrot.slane %v615, 1
      %v634 = vrot.slane %v616, 1
      %v635 = vrot.slane %v617, 1
      %v636 = vrot.slane %v618, 1
      %v637 = vrot.slane %v619, 1
      %v638 = vsel %vm332, %v632, %v635
      %v639 = vsel %vm332, %v633, %v636
      %v640 = vsel %vm332, %v634, %v637
      %v641 = vsel %vm332, %v635, %v632
      %v642 = vsel %vm332, %v636, %v633
      %v643 = vsel %vm332, %v637, %v634
      %v644 = vmul.f32 %v629, %v132
      %v645 = vmul.f32 %v630, %v136
      %v646 = vmul.f32 %v631, %v140
      %v647 = vmul.f32 %v626, %v132
      %v648 = vmul.f32 %v627, %v136
      %v649 = vmul.f32 %v628, %v140
      %v650 = vmul.f32 %v614, %v150
      %v651 = vmul.f32 %v615, %v154
      %v652 = vmul.f32 %v616, %v158
      %v653 = vmul.f32 %v617, %v150
      %v654 = vmul.f32 %v618, %v154
      %v655 = vmul.f32 %v619, %v158
      %v656 = vadd.f32 %v644, %v650
      %v657 = vadd.f32 %v645, %v651
      %v658 = vadd.f32 %v646, %v652
      %v659 = vadd.f32 %v647, %v653
      %v660 = vadd.f32 %v648, %v654
      %v661 = vadd.f32 %v649, %v655
      %v662 = vmul.f32 %v638, %v168
      %v663 = vmul.f32 %v639, %v172
      %v664 = vmul.f32 %v640, %v176
      %v665 = vmul.f32 %v641, %v168
      %v666 = vmul.f32 %v642, %v172
      %v667 = vmul.f32 %v643, %v176
      %v668 = vadd.f32 %v656, %v662
      %v669 = vadd.f32 %v657, %v663
      %v670 = vadd.f32 %v658, %v664
      %v671 = vadd.f32 %v659, %v665
      %v672 = vadd.f32 %v660, %v666
      %v673 = vadd.f32 %v661, %v667
      %v674 = vmul.f32 %v629, %v186
      %v675 = vmul.f32 %v630, %v190
      %v676 = vmul.f32 %v631, %v194
      %v677 = vmul.f32 %v626, %v186
      %v678 = vmul.f32 %v627, %v190
      %v679 = vmul.f32 %v628, %v194
      %v680 = vmul.f32 %v614, %v204
      %v681 = vmul.f32 %v615, %v208
      %v682 = vmul.f32 %v616, %v212
      %v683 = vmul.f32 %v617, %v204
      %v684 = vmul.f32 %v618, %v208
      %v685 = vmul.f32 %v619, %v212
      %v686 = vadd.f32 %v674, %v680
      %v687 = vadd.f32 %v675, %v681
      %v688 = vadd.f32 %v676, %v682
      %v689 = vadd.f32 %v677, %v683
      %v690 = vadd.f32 %v678, %v684
      %v691 = vadd.f32 %v679, %v685
      %v692 = vmul.f32 %v638, %v222
      %v693 = vmul.f32 %v639, %v226
      %v694 = vmul.f32 %v640, %v230
      %v695 = vmul.f32 %v641, %v222
      %v696 = vmul.f32 %v642, %v226
      %v697 = vmul.f32 %v643, %v230
      %v698 = vadd.f32 %v686, %v692
      %v699 = vadd.f32 %v687, %v693
      %v700 = vadd.f32 %v688, %v694
      %v701 = vadd.f32 %v689, %v695
      %v702 = vadd.f32 %v690, %v696
      %v703 = vadd.f32 %v691, %v697
      %v704 = vadd.f32 %v526, %v698
      %v705 = vadd.f32 %v527, %v699
      %v706 = vadd.f32 %v528, %v700
      %v707 = vadd.f32 %v529, %v701
      %v708 = vadd.f32 %v530, %v702
      %v709 = vadd.f32 %v531, %v703
      %v710 = vmul.f32 %v629, %v240
      %v711 = vmul.f32 %v630, %v244
      %v712 = vmul.f32 %v631, %v248
      %v713 = vmul.f32 %v626, %v240
      %v714 = vmul.f32 %v627, %v244
      %v715 = vmul.f32 %v628, %v248
      %v716 = vmul.f32 %v614, %v258
      %v717 = vmul.f32 %v615, %v262
      %v718 = vmul.f32 %v616, %v266
      %v719 = vmul.f32 %v617, %v258
      %v720 = vmul.f32 %v618, %v262
      %v721 = vmul.f32 %v619, %v266
      %v722 = vadd.f32 %v710, %v716
      %v723 = vadd.f32 %v711, %v717
      %v724 = vadd.f32 %v712, %v718
      %v725 = vadd.f32 %v713, %v719
      %v726 = vadd.f32 %v714, %v720
      %v727 = vadd.f32 %v715, %v721
      %v728 = vmul.f32 %v638, %v276
      %v729 = vmul.f32 %v639, %v280
      %v730 = vmul.f32 %v640, %v284
      %v731 = vmul.f32 %v641, %v276
      %v732 = vmul.f32 %v642, %v280
      %v733 = vmul.f32 %v643, %v284
      %v734 = vadd.f32 %v722, %v728
      %v735 = vadd.f32 %v723, %v729
      %v736 = vadd.f32 %v724, %v730
      %v737 = vadd.f32 %v725, %v731
      %v738 = vadd.f32 %v726, %v732
      %v739 = vadd.f32 %v727, %v733
      %v740 = vadd.f32 %v562, %v734
      %v741 = vadd.f32 %v563, %v735
      %v742 = vadd.f32 %v564, %v736
      %v743 = vadd.f32 %v565, %v737
      %v744 = vadd.f32 %v566, %v738
      %v745 = vadd.f32 %v567, %v739
      %s746 = scalar_lea.vmem %s125, 96
      %747 = vst [vmem:[%s746] sm:$0xff] %v740
      %748 = vst [vmem:[%s746 + $0x8] sm:$0xff] %v741
      %749 = vst [vmem:[%s746 + $0x10] sm:$0xff] %v742
      %750 = vst [vmem:[%s746 + $0x30] sm:$0xff] %v743
      %751 = vst [vmem:[%s746 + $0x38] sm:$0xff] %v744
      %752 = vst [vmem:[%s746 + $0x40] sm:$0xff] %v745
      %s753 = sadd.s32 %s288, 3
      %s754 = smul.u32 %s753, 12
      %s755 = smul.addr %s754, 8
      %s756 = scalar_lea.vmem %s0, %s755
      %v757 = vld [vmem:[%s756] sm:$0xff]
      %v758 = vld [vmem:[%s756 + $0x8] sm:$0xff]
      %v759 = vld [vmem:[%s756 + $0x10] sm:$0xff]
      %v760 = vld [vmem:[%s756 + $0x30] sm:$0xff]
      %v761 = vld [vmem:[%s756 + $0x38] sm:$0xff]
      %v762 = vld [vmem:[%s756 + $0x40] sm:$0xff]
      %v763 = vrot.slane %v757, 7
      %v764 = vrot.slane %v758, 7
      %v765 = vrot.slane %v759, 7
      %v766 = vrot.slane %v760, 7
      %v767 = vrot.slane %v761, 7
      %v768 = vrot.slane %v762, 7
      %v769 = vsel %vm319, %v763, %v766
      %v770 = vsel %vm319, %v764, %v767
      %v771 = vsel %vm319, %v765, %v768
      %v772 = vsel %vm319, %v766, %v763
      %v773 = vsel %vm319, %v767, %v764
      %v774 = vsel %vm319, %v768, %v765
      %v775 = vrot.slane %v757, 1
      %v776 = vrot.slane %v758, 1
      %v777 = vrot.slane %v759, 1
      %v778 = vrot.slane %v760, 1
      %v779 = vrot.slane %v761, 1
      %v780 = vrot.slane %v762, 1
      %v781 = vsel %vm332, %v775, %v778
      %v782 = vsel %vm332, %v776, %v779
      %v783 = vsel %vm332, %v777, %v780
      %v784 = vsel %vm332, %v778, %v775
      %v785 = vsel %vm332, %v779, %v776
      %v786 = vsel %vm332, %v780, %v777
      %v787 = vmul.f32 %v772, %v132
      %v788 = vmul.f32 %v773, %v136
      %v789 = vmul.f32 %v774, %v140
      %v790 = vmul.f32 %v769, %v132
      %v791 = vmul.f32 %v770, %v136
      %v792 = vmul.f32 %v771, %v140
      %v793 = vmul.f32 %v757, %v150
      %v794 = vmul.f32 %v758, %v154
      %v795 = vmul.f32 %v759, %v158
      %v796 = vmul.f32 %v760, %v150
      %v797 = vmul.f32 %v761, %v154
      %v798 = vmul.f32 %v762, %v158
      %v799 = vadd.f32 %v787, %v793
      %v800 = vadd.f32 %v788, %v794
      %v801 = vadd.f32 %v789, %v795
      %v802 = vadd.f32 %v790, %v796
      %v803 = vadd.f32 %v791, %v797
      %v804 = vadd.f32 %v792, %v798
      %v805 = vmul.f32 %v781, %v168
      %v806 = vmul.f32 %v782, %v172
      %v807 = vmul.f32 %v783, %v176
      %v808 = vmul.f32 %v784, %v168
      %v809 = vmul.f32 %v785, %v172
      %v810 = vmul.f32 %v786, %v176
      %v811 = vadd.f32 %v799, %v805
      %v812 = vadd.f32 %v800, %v806
      %v813 = vadd.f32 %v801, %v807
      %v814 = vadd.f32 %v802, %v808
      %v815 = vadd.f32 %v803, %v809
      %v816 = vadd.f32 %v804, %v810
      %v817 = vmul.f32 %v772, %v186
      %v818 = vmul.f32 %v773, %v190
      %v819 = vmul.f32 %v774, %v194
      %v820 = vmul.f32 %v769, %v186
      %v821 = vmul.f32 %v770, %v190
      %v822 = vmul.f32 %v771, %v194
      %v823 = vmul.f32 %v757, %v204
      %v824 = vmul.f32 %v758, %v208
      %v825 = vmul.f32 %v759, %v212
      %v826 = vmul.f32 %v760, %v204
      %v827 = vmul.f32 %v761, %v208
      %v828 = vmul.f32 %v762, %v212
      %v829 = vadd.f32 %v817, %v823
      %v830 = vadd.f32 %v818, %v824
      %v831 = vadd.f32 %v819, %v825
      %v832 = vadd.f32 %v820, %v826
      %v833 = vadd.f32 %v821, %v827
      %v834 = vadd.f32 %v822, %v828
      %v835 = vmul.f32 %v781, %v222
      %v836 = vmul.f32 %v782, %v226
      %v837 = vmul.f32 %v783, %v230
      %v838 = vmul.f32 %v784, %v222
      %v839 = vmul.f32 %v785, %v226
      %v840 = vmul.f32 %v786, %v230
      %v841 = vadd.f32 %v829, %v835
      %v842 = vadd.f32 %v830, %v836
      %v843 = vadd.f32 %v831, %v837
      %v844 = vadd.f32 %v832, %v838
      %v845 = vadd.f32 %v833, %v839
      %v846 = vadd.f32 %v834, %v840
      %v847 = vadd.f32 %v668, %v841
      %v848 = vadd.f32 %v669, %v842
      %v849 = vadd.f32 %v670, %v843
      %v850 = vadd.f32 %v671, %v844
      %v851 = vadd.f32 %v672, %v845
      %v852 = vadd.f32 %v673, %v846
      %v853 = vmul.f32 %v772, %v240
      %v854 = vmul.f32 %v773, %v244
      %v855 = vmul.f32 %v774, %v248
      %v856 = vmul.f32 %v769, %v240
      %v857 = vmul.f32 %v770, %v244
      %v858 = vmul.f32 %v771, %v248
      %v859 = vmul.f32 %v757, %v258
      %v860 = vmul.f32 %v758, %v262
      %v861 = vmul.f32 %v759, %v266
      %v862 = vmul.f32 %v760, %v258
      %v863 = vmul.f32 %v761, %v262
      %v864 = vmul.f32 %v762, %v266
      %v865 = vadd.f32 %v853, %v859
      %v866 = vadd.f32 %v854, %v860
      %v867 = vadd.f32 %v855, %v861
      %v868 = vadd.f32 %v856, %v862
      %v869 = vadd.f32 %v857, %v863
      %v870 = vadd.f32 %v858, %v864
      %v871 = vmul.f32 %v781, %v276
      %v872 = vmul.f32 %v782, %v280
      %v873 = vmul.f32 %v783, %v284
      %v874 = vmul.f32 %v784, %v276
      %v875 = vmul.f32 %v785, %v280
      %v876 = vmul.f32 %v786, %v284
      %v877 = vadd.f32 %v865, %v871
      %v878 = vadd.f32 %v866, %v872
      %v879 = vadd.f32 %v867, %v873
      %v880 = vadd.f32 %v868, %v874
      %v881 = vadd.f32 %v869, %v875
      %v882 = vadd.f32 %v870, %v876
      %v883 = vadd.f32 %v704, %v877
      %v884 = vadd.f32 %v705, %v878
      %v885 = vadd.f32 %v706, %v879
      %v886 = vadd.f32 %v707, %v880
      %v887 = vadd.f32 %v708, %v881
      %v888 = vadd.f32 %v709, %v882
      %s889 = scalar_lea.vmem %s125, 192
      %890 = vst [vmem:[%s889] sm:$0xff] %v883
      %891 = vst [vmem:[%s889 + $0x8] sm:$0xff] %v884
      %892 = vst [vmem:[%s889 + $0x10] sm:$0xff] %v885
      %893 = vst [vmem:[%s889 + $0x30] sm:$0xff] %v886
      %894 = vst [vmem:[%s889 + $0x38] sm:$0xff] %v887
      %895 = vst [vmem:[%s889 + $0x40] sm:$0xff] %v888
      %s896 = sadd.s32 %s288, 4
      %s897 = smul.u32 %s896, 12
      %s898 = smul.addr %s897, 8
      %s899 = scalar_lea.vmem %s0, %s898
      %v900 = vld [vmem:[%s899] sm:$0xff]
      %v901 = vld [vmem:[%s899 + $0x8] sm:$0xff]
      %v902 = vld [vmem:[%s899 + $0x10] sm:$0xff]
      %v903 = vld [vmem:[%s899 + $0x30] sm:$0xff]
      %v904 = vld [vmem:[%s899 + $0x38] sm:$0xff]
      %v905 = vld [vmem:[%s899 + $0x40] sm:$0xff]
      %v906 = vrot.slane %v900, 7
      %v907 = vrot.slane %v901, 7
      %v908 = vrot.slane %v902, 7
      %v909 = vrot.slane %v903, 7
      %v910 = vrot.slane %v904, 7
      %v911 = vrot.slane %v905, 7
      %v912 = vsel %vm319, %v906, %v909
      %v913 = vsel %vm319, %v907, %v910
      %v914 = vsel %vm319, %v908, %v911
      %v915 = vsel %vm319, %v909, %v906
      %v916 = vsel %vm319, %v910, %v907
      %v917 = vsel %vm319, %v911, %v908
      %v918 = vrot.slane %v900, 1
      %v919 = vrot.slane %v901, 1
      %v920 = vrot.slane %v902, 1
      %v921 = vrot.slane %v903, 1
      %v922 = vrot.slane %v904, 1
      %v923 = vrot.slane %v905, 1
      %v924 = vsel %vm332, %v918, %v921
      %v925 = vsel %vm332, %v919, %v922
      %v926 = vsel %vm332, %v920, %v923
      %v927 = vsel %vm332, %v921, %v918
      %v928 = vsel %vm332, %v922, %v919
      %v929 = vsel %vm332, %v923, %v920
      %v930 = vmul.f32 %v915, %v132
      %v931 = vmul.f32 %v916, %v136
      %v932 = vmul.f32 %v917, %v140
      %v933 = vmul.f32 %v912, %v132
      %v934 = vmul.f32 %v913, %v136
      %v935 = vmul.f32 %v914, %v140
      %v936 = vmul.f32 %v900, %v150
      %v937 = vmul.f32 %v901, %v154
      %v938 = vmul.f32 %v902, %v158
      %v939 = vmul.f32 %v903, %v150
      %v940 = vmul.f32 %v904, %v154
      %v941 = vmul.f32 %v905, %v158
      %v942 = vadd.f32 %v930, %v936
      %v943 = vadd.f32 %v931, %v937
      %v944 = vadd.f32 %v932, %v938
      %v945 = vadd.f32 %v933, %v939
      %v946 = vadd.f32 %v934, %v940
      %v947 = vadd.f32 %v935, %v941
      %v948 = vmul.f32 %v924, %v168
      %v949 = vmul.f32 %v925, %v172
      %v950 = vmul.f32 %v926, %v176
      %v951 = vmul.f32 %v927, %v168
      %v952 = vmul.f32 %v928, %v172
      %v953 = vmul.f32 %v929, %v176
      %v954 = vadd.f32 %v942, %v948
      %v955 = vadd.f32 %v943, %v949
      %v956 = vadd.f32 %v944, %v950
      %v957 = vadd.f32 %v945, %v951
      %v958 = vadd.f32 %v946, %v952
      %v959 = vadd.f32 %v947, %v953
      %v960 = vmul.f32 %v915, %v186
      %v961 = vmul.f32 %v916, %v190
      %v962 = vmul.f32 %v917, %v194
      %v963 = vmul.f32 %v912, %v186
      %v964 = vmul.f32 %v913, %v190
      %v965 = vmul.f32 %v914, %v194
      %v966 = vmul.f32 %v900, %v204
      %v967 = vmul.f32 %v901, %v208
      %v968 = vmul.f32 %v902, %v212
      %v969 = vmul.f32 %v903, %v204
      %v970 = vmul.f32 %v904, %v208
      %v971 = vmul.f32 %v905, %v212
      %v972 = vadd.f32 %v960, %v966
      %v973 = vadd.f32 %v961, %v967
      %v974 = vadd.f32 %v962, %v968
      %v975 = vadd.f32 %v963, %v969
      %v976 = vadd.f32 %v964, %v970
      %v977 = vadd.f32 %v965, %v971
      %v978 = vmul.f32 %v924, %v222
      %v979 = vmul.f32 %v925, %v226
      %v980 = vmul.f32 %v926, %v230
      %v981 = vmul.f32 %v927, %v222
      %v982 = vmul.f32 %v928, %v226
      %v983 = vmul.f32 %v929, %v230
      %v984 = vadd.f32 %v972, %v978
      %v985 = vadd.f32 %v973, %v979
      %v986 = vadd.f32 %v974, %v980
      %v987 = vadd.f32 %v975, %v981
      %v988 = vadd.f32 %v976, %v982
      %v989 = vadd.f32 %v977, %v983
      %v990 = vadd.f32 %v811, %v984
      %v991 = vadd.f32 %v812, %v985
      %v992 = vadd.f32 %v813, %v986
      %v993 = vadd.f32 %v814, %v987
      %v994 = vadd.f32 %v815, %v988
      %v995 = vadd.f32 %v816, %v989
      %v996 = vmul.f32 %v915, %v240
      %v997 = vmul.f32 %v916, %v244
      %v998 = vmul.f32 %v917, %v248
      %v999 = vmul.f32 %v912, %v240
      %v1000 = vmul.f32 %v913, %v244
      %v1001 = vmul.f32 %v914, %v248
      %v1002 = vmul.f32 %v900, %v258
      %v1003 = vmul.f32 %v901, %v262
      %v1004 = vmul.f32 %v902, %v266
      %v1005 = vmul.f32 %v903, %v258
      %v1006 = vmul.f32 %v904, %v262
      %v1007 = vmul.f32 %v905, %v266
      %v1008 = vadd.f32 %v996, %v1002
      %v1009 = vadd.f32 %v997, %v1003
      %v1010 = vadd.f32 %v998, %v1004
      %v1011 = vadd.f32 %v999, %v1005
      %v1012 = vadd.f32 %v1000, %v1006
      %v1013 = vadd.f32 %v1001, %v1007
      %v1014 = vmul.f32 %v924, %v276
      %v1015 = vmul.f32 %v925, %v280
      %v1016 = vmul.f32 %v926, %v284
      %v1017 = vmul.f32 %v927, %v276
      %v1018 = vmul.f32 %v928, %v280
      %v1019 = vmul.f32 %v929, %v284
      %v1020 = vadd.f32 %v1008, %v1014
      %v1021 = vadd.f32 %v1009, %v1015
      %v1022 = vadd.f32 %v1010, %v1016
      %v1023 = vadd.f32 %v1011, %v1017
      %v1024 = vadd.f32 %v1012, %v1018
      %v1025 = vadd.f32 %v1013, %v1019
      %v1026 = vadd.f32 %v847, %v1020
      %v1027 = vadd.f32 %v848, %v1021
      %v1028 = vadd.f32 %v849, %v1022
      %v1029 = vadd.f32 %v850, %v1023
      %v1030 = vadd.f32 %v851, %v1024
      %v1031 = vadd.f32 %v852, %v1025
      %s1032 = scalar_lea.vmem %s125, 288
      %1033 = vst [vmem:[%s1032] sm:$0xff] %v1026
      %1034 = vst [vmem:[%s1032 + $0x8] sm:$0xff] %v1027
      %1035 = vst [vmem:[%s1032 + $0x10] sm:$0xff] %v1028
      %1036 = vst [vmem:[%s1032 + $0x30] sm:$0xff] %v1029
      %1037 = vst [vmem:[%s1032 + $0x38] sm:$0xff] %v1030
      %1038 = vst [vmem:[%s1032 + $0x40] sm:$0xff] %v1031
      %s1039 = sadd.s32 %s288, 5
      %s1040 = smul.u32 %s1039, 12
      %s1041 = smul.addr %s1040, 8
      %s1042 = scalar_lea.vmem %s0, %s1041
      %v1043 = vld [vmem:[%s1042] sm:$0xff]
      %v1044 = vld [vmem:[%s1042 + $0x8] sm:$0xff]
      %v1045 = vld [vmem:[%s1042 + $0x10] sm:$0xff]
      %v1046 = vld [vmem:[%s1042 + $0x30] sm:$0xff]
      %v1047 = vld [vmem:[%s1042 + $0x38] sm:$0xff]
      %v1048 = vld [vmem:[%s1042 + $0x40] sm:$0xff]
      %v1049 = vrot.slane %v1043, 7
      %v1050 = vrot.slane %v1044, 7
      %v1051 = vrot.slane %v1045, 7
      %v1052 = vrot.slane %v1046, 7
      %v1053 = vrot.slane %v1047, 7
      %v1054 = vrot.slane %v1048, 7
      %v1055 = vsel %vm319, %v1049, %v1052
      %v1056 = vsel %vm319, %v1050, %v1053
      %v1057 = vsel %vm319, %v1051, %v1054
      %v1058 = vsel %vm319, %v1052, %v1049
      %v1059 = vsel %vm319, %v1053, %v1050
      %v1060 = vsel %vm319, %v1054, %v1051
      %v1061 = vrot.slane %v1043, 1
      %v1062 = vrot.slane %v1044, 1
      %v1063 = vrot.slane %v1045, 1
      %v1064 = vrot.slane %v1046, 1
      %v1065 = vrot.slane %v1047, 1
      %v1066 = vrot.slane %v1048, 1
      %v1067 = vsel %vm332, %v1061, %v1064
      %v1068 = vsel %vm332, %v1062, %v1065
      %v1069 = vsel %vm332, %v1063, %v1066
      %v1070 = vsel %vm332, %v1064, %v1061
      %v1071 = vsel %vm332, %v1065, %v1062
      %v1072 = vsel %vm332, %v1066, %v1063
      %v1073 = vmul.f32 %v1058, %v132
      %v1074 = vmul.f32 %v1059, %v136
      %v1075 = vmul.f32 %v1060, %v140
      %v1076 = vmul.f32 %v1055, %v132
      %v1077 = vmul.f32 %v1056, %v136
      %v1078 = vmul.f32 %v1057, %v140
      %v1079 = vmul.f32 %v1043, %v150
      %v1080 = vmul.f32 %v1044, %v154
      %v1081 = vmul.f32 %v1045, %v158
      %v1082 = vmul.f32 %v1046, %v150
      %v1083 = vmul.f32 %v1047, %v154
      %v1084 = vmul.f32 %v1048, %v158
      %v1085 = vadd.f32 %v1073, %v1079
      %v1086 = vadd.f32 %v1074, %v1080
      %v1087 = vadd.f32 %v1075, %v1081
      %v1088 = vadd.f32 %v1076, %v1082
      %v1089 = vadd.f32 %v1077, %v1083
      %v1090 = vadd.f32 %v1078, %v1084
      %v1091 = vmul.f32 %v1067, %v168
      %v1092 = vmul.f32 %v1068, %v172
      %v1093 = vmul.f32 %v1069, %v176
      %v1094 = vmul.f32 %v1070, %v168
      %v1095 = vmul.f32 %v1071, %v172
      %v1096 = vmul.f32 %v1072, %v176
      %v1097 = vadd.f32 %v1085, %v1091
      %v1098 = vadd.f32 %v1086, %v1092
      %v1099 = vadd.f32 %v1087, %v1093
      %v1100 = vadd.f32 %v1088, %v1094
      %v1101 = vadd.f32 %v1089, %v1095
      %v1102 = vadd.f32 %v1090, %v1096
      %v1103 = vmul.f32 %v1058, %v186
      %v1104 = vmul.f32 %v1059, %v190
      %v1105 = vmul.f32 %v1060, %v194
      %v1106 = vmul.f32 %v1055, %v186
      %v1107 = vmul.f32 %v1056, %v190
      %v1108 = vmul.f32 %v1057, %v194
      %v1109 = vmul.f32 %v1043, %v204
      %v1110 = vmul.f32 %v1044, %v208
      %v1111 = vmul.f32 %v1045, %v212
      %v1112 = vmul.f32 %v1046, %v204
      %v1113 = vmul.f32 %v1047, %v208
      %v1114 = vmul.f32 %v1048, %v212
      %v1115 = vadd.f32 %v1103, %v1109
      %v1116 = vadd.f32 %v1104, %v1110
      %v1117 = vadd.f32 %v1105, %v1111
      %v1118 = vadd.f32 %v1106, %v1112
      %v1119 = vadd.f32 %v1107, %v1113
      %v1120 = vadd.f32 %v1108, %v1114
      %v1121 = vmul.f32 %v1067, %v222
      %v1122 = vmul.f32 %v1068, %v226
      %v1123 = vmul.f32 %v1069, %v230
      %v1124 = vmul.f32 %v1070, %v222
      %v1125 = vmul.f32 %v1071, %v226
      %v1126 = vmul.f32 %v1072, %v230
      %v1127 = vadd.f32 %v1115, %v1121
      %v1128 = vadd.f32 %v1116, %v1122
      %v1129 = vadd.f32 %v1117, %v1123
      %v1130 = vadd.f32 %v1118, %v1124
      %v1131 = vadd.f32 %v1119, %v1125
      %v1132 = vadd.f32 %v1120, %v1126
      %v1133 = vadd.f32 %v954, %v1127
      %v1134 = vadd.f32 %v955, %v1128
      %v1135 = vadd.f32 %v956, %v1129
      %v1136 = vadd.f32 %v957, %v1130
      %v1137 = vadd.f32 %v958, %v1131
      %v1138 = vadd.f32 %v959, %v1132
      %v1139 = vmul.f32 %v1058, %v240
      %v1140 = vmul.f32 %v1059, %v244
      %v1141 = vmul.f32 %v1060, %v248
      %v1142 = vmul.f32 %v1055, %v240
      %v1143 = vmul.f32 %v1056, %v244
      %v1144 = vmul.f32 %v1057, %v248
      %v1145 = vmul.f32 %v1043, %v258
      %v1146 = vmul.f32 %v1044, %v262
      %v1147 = vmul.f32 %v1045, %v266
      %v1148 = vmul.f32 %v1046, %v258
      %v1149 = vmul.f32 %v1047, %v262
      %v1150 = vmul.f32 %v1048, %v266
      %v1151 = vadd.f32 %v1139, %v1145
      %v1152 = vadd.f32 %v1140, %v1146
      %v1153 = vadd.f32 %v1141, %v1147
      %v1154 = vadd.f32 %v1142, %v1148
      %v1155 = vadd.f32 %v1143, %v1149
      %v1156 = vadd.f32 %v1144, %v1150
      %v1157 = vmul.f32 %v1067, %v276
      %v1158 = vmul.f32 %v1068, %v280
      %v1159 = vmul.f32 %v1069, %v284
      %v1160 = vmul.f32 %v1070, %v276
      %v1161 = vmul.f32 %v1071, %v280
      %v1162 = vmul.f32 %v1072, %v284
      %v1163 = vadd.f32 %v1151, %v1157
      %v1164 = vadd.f32 %v1152, %v1158
      %v1165 = vadd.f32 %v1153, %v1159
      %v1166 = vadd.f32 %v1154, %v1160
      %v1167 = vadd.f32 %v1155, %v1161
      %v1168 = vadd.f32 %v1156, %v1162
      %v1169 = vadd.f32 %v990, %v1163
      %v1170 = vadd.f32 %v991, %v1164
      %v1171 = vadd.f32 %v992, %v1165
      %v1172 = vadd.f32 %v993, %v1166
      %v1173 = vadd.f32 %v994, %v1167
      %v1174 = vadd.f32 %v995, %v1168
      %s1175 = scalar_lea.vmem %s125, 384
      %1176 = vst [vmem:[%s1175] sm:$0xff] %v1169
      %1177 = vst [vmem:[%s1175 + $0x8] sm:$0xff] %v1170
      %1178 = vst [vmem:[%s1175 + $0x10] sm:$0xff] %v1171
      %1179 = vst [vmem:[%s1175 + $0x30] sm:$0xff] %v1172
      %1180 = vst [vmem:[%s1175 + $0x38] sm:$0xff] %v1173
      %1181 = vst [vmem:[%s1175 + $0x40] sm:$0xff] %v1174
      %s1182 = sadd.s32 %s288, 6
      %s1183 = smul.u32 %s1182, 12
      %s1184 = smul.addr %s1183, 8
      %s1185 = scalar_lea.vmem %s0, %s1184
      %v1186 = vld [vmem:[%s1185] sm:$0xff]
      %v1187 = vld [vmem:[%s1185 + $0x8] sm:$0xff]
      %v1188 = vld [vmem:[%s1185 + $0x10] sm:$0xff]
      %v1189 = vld [vmem:[%s1185 + $0x30] sm:$0xff]
      %v1190 = vld [vmem:[%s1185 + $0x38] sm:$0xff]
      %v1191 = vld [vmem:[%s1185 + $0x40] sm:$0xff]
      %v1192 = vrot.slane %v1186, 7
      %v1193 = vrot.slane %v1187, 7
      %v1194 = vrot.slane %v1188, 7
      %v1195 = vrot.slane %v1189, 7
      %v1196 = vrot.slane %v1190, 7
      %v1197 = vrot.slane %v1191, 7
      %v1198 = vsel %vm319, %v1192, %v1195
      %v1199 = vsel %vm319, %v1193, %v1196
      %v1200 = vsel %vm319, %v1194, %v1197
      %v1201 = vsel %vm319, %v1195, %v1192
      %v1202 = vsel %vm319, %v1196, %v1193
      %v1203 = vsel %vm319, %v1197, %v1194
      %v1204 = vrot.slane %v1186, 1
      %v1205 = vrot.slane %v1187, 1
      %v1206 = vrot.slane %v1188, 1
      %v1207 = vrot.slane %v1189, 1
      %v1208 = vrot.slane %v1190, 1
      %v1209 = vrot.slane %v1191, 1
      %v1210 = vsel %vm332, %v1204, %v1207
      %v1211 = vsel %vm332, %v1205, %v1208
      %v1212 = vsel %vm332, %v1206, %v1209
      %v1213 = vsel %vm332, %v1207, %v1204
      %v1214 = vsel %vm332, %v1208, %v1205
      %v1215 = vsel %vm332, %v1209, %v1206
      %v1216 = vmul.f32 %v1201, %v186
      %v1217 = vmul.f32 %v1202, %v190
      %v1218 = vmul.f32 %v1203, %v194
      %v1219 = vmul.f32 %v1198, %v186
      %v1220 = vmul.f32 %v1199, %v190
      %v1221 = vmul.f32 %v1200, %v194
      %v1222 = vmul.f32 %v1186, %v204
      %v1223 = vmul.f32 %v1187, %v208
      %v1224 = vmul.f32 %v1188, %v212
      %v1225 = vmul.f32 %v1189, %v204
      %v1226 = vmul.f32 %v1190, %v208
      %v1227 = vmul.f32 %v1191, %v212
      %v1228 = vadd.f32 %v1216, %v1222
      %v1229 = vadd.f32 %v1217, %v1223
      %v1230 = vadd.f32 %v1218, %v1224
      %v1231 = vadd.f32 %v1219, %v1225
      %v1232 = vadd.f32 %v1220, %v1226
      %v1233 = vadd.f32 %v1221, %v1227
      %v1234 = vmul.f32 %v1210, %v222
      %v1235 = vmul.f32 %v1211, %v226
      %v1236 = vmul.f32 %v1212, %v230
      %v1237 = vmul.f32 %v1213, %v222
      %v1238 = vmul.f32 %v1214, %v226
      %v1239 = vmul.f32 %v1215, %v230
      %v1240 = vadd.f32 %v1228, %v1234
      %v1241 = vadd.f32 %v1229, %v1235
      %v1242 = vadd.f32 %v1230, %v1236
      %v1243 = vadd.f32 %v1231, %v1237
      %v1244 = vadd.f32 %v1232, %v1238
      %v1245 = vadd.f32 %v1233, %v1239
      %v1246 = vadd.f32 %v1097, %v1240
      %v1247 = vadd.f32 %v1098, %v1241
      %v1248 = vadd.f32 %v1099, %v1242
      %v1249 = vadd.f32 %v1100, %v1243
      %v1250 = vadd.f32 %v1101, %v1244
      %v1251 = vadd.f32 %v1102, %v1245
      %v1252 = vmul.f32 %v1201, %v240
      %v1253 = vmul.f32 %v1202, %v244
      %v1254 = vmul.f32 %v1203, %v248
      %v1255 = vmul.f32 %v1198, %v240
      %v1256 = vmul.f32 %v1199, %v244
      %v1257 = vmul.f32 %v1200, %v248
      %v1258 = vmul.f32 %v1186, %v258
      %v1259 = vmul.f32 %v1187, %v262
      %v1260 = vmul.f32 %v1188, %v266
      %v1261 = vmul.f32 %v1189, %v258
      %v1262 = vmul.f32 %v1190, %v262
      %v1263 = vmul.f32 %v1191, %v266
      %v1264 = vadd.f32 %v1252, %v1258
      %v1265 = vadd.f32 %v1253, %v1259
      %v1266 = vadd.f32 %v1254, %v1260
      %v1267 = vadd.f32 %v1255, %v1261
      %v1268 = vadd.f32 %v1256, %v1262
      %v1269 = vadd.f32 %v1257, %v1263
      %v1270 = vmul.f32 %v1210, %v276
      %v1271 = vmul.f32 %v1211, %v280
      %v1272 = vmul.f32 %v1212, %v284
      %v1273 = vmul.f32 %v1213, %v276
      %v1274 = vmul.f32 %v1214, %v280
      %v1275 = vmul.f32 %v1215, %v284
      %v1276 = vadd.f32 %v1264, %v1270
      %v1277 = vadd.f32 %v1265, %v1271
      %v1278 = vadd.f32 %v1266, %v1272
      %v1279 = vadd.f32 %v1267, %v1273
      %v1280 = vadd.f32 %v1268, %v1274
      %v1281 = vadd.f32 %v1269, %v1275
      %v1282 = vadd.f32 %v1133, %v1276
      %v1283 = vadd.f32 %v1134, %v1277
      %v1284 = vadd.f32 %v1135, %v1278
      %v1285 = vadd.f32 %v1136, %v1279
      %v1286 = vadd.f32 %v1137, %v1280
      %v1287 = vadd.f32 %v1138, %v1281
      %s1288 = scalar_lea.vmem %s125, 480
      %1289 = vst [vmem:[%s1288] sm:$0xff] %v1282
      %1290 = vst [vmem:[%s1288 + $0x8] sm:$0xff] %v1283
      %1291 = vst [vmem:[%s1288 + $0x10] sm:$0xff] %v1284
      %1292 = vst [vmem:[%s1288 + $0x30] sm:$0xff] %v1285
      %1293 = vst [vmem:[%s1288 + $0x38] sm:$0xff] %v1286
      %1294 = vst [vmem:[%s1288 + $0x40] sm:$0xff] %v1287
      %s1295 = sadd.s32 %s288, 7
      %p1296 = scmp.lt.s32.totalorder %s1295, 13
      %s1297 = scalar_select %p1296, %s1295, 13
      %p1298 = scmp.le.s32.totalorder %s1295, 13
      %s1299 = scalar_select %p1298, 1, 0
      %s1300 = scvt.s32.f32 %s1299
      %s1301 = smul.u32 %s1297, 12
      %s1302 = smul.addr %s1301, 8
      %s1303 = scalar_lea.vmem %s0, %s1302
      %v1304 = vld [vmem:[%s1303] sm:$0xff]
      %v1305 = vld [vmem:[%s1303 + $0x8] sm:$0xff]
      %v1306 = vld [vmem:[%s1303 + $0x10] sm:$0xff]
      %v1307 = vld [vmem:[%s1303 + $0x30] sm:$0xff]
      %v1308 = vld [vmem:[%s1303 + $0x38] sm:$0xff]
      %v1309 = vld [vmem:[%s1303 + $0x40] sm:$0xff]
      %v1310 = vstv %s1300
      %v1311 = vmul.f32 %v1304, %v1310
      %v1312 = vmul.f32 %v1305, %v1310
      %v1313 = vmul.f32 %v1306, %v1310
      %v1314 = vmul.f32 %v1307, %v1310
      %v1315 = vmul.f32 %v1308, %v1310
      %v1316 = vmul.f32 %v1309, %v1310
      %v1317 = vrot.slane %v1311, 7
      %v1318 = vrot.slane %v1312, 7
      %v1319 = vrot.slane %v1313, 7
      %v1320 = vrot.slane %v1314, 7
      %v1321 = vrot.slane %v1315, 7
      %v1322 = vrot.slane %v1316, 7
      %v1323 = vsel %vm319, %v1317, %v1320
      %v1324 = vsel %vm319, %v1318, %v1321
      %v1325 = vsel %vm319, %v1319, %v1322
      %v1326 = vsel %vm319, %v1320, %v1317
      %v1327 = vsel %vm319, %v1321, %v1318
      %v1328 = vsel %vm319, %v1322, %v1319
      %v1329 = vrot.slane %v1311, 1
      %v1330 = vrot.slane %v1312, 1
      %v1331 = vrot.slane %v1313, 1
      %v1332 = vrot.slane %v1314, 1
      %v1333 = vrot.slane %v1315, 1
      %v1334 = vrot.slane %v1316, 1
      %v1335 = vsel %vm332, %v1329, %v1332
      %v1336 = vsel %vm332, %v1330, %v1333
      %v1337 = vsel %vm332, %v1331, %v1334
      %v1338 = vsel %vm332, %v1332, %v1329
      %v1339 = vsel %vm332, %v1333, %v1330
      %v1340 = vsel %vm332, %v1334, %v1331
      %v1341 = vmul.f32 %v1326, %v240
      %v1342 = vmul.f32 %v1327, %v244
      %v1343 = vmul.f32 %v1328, %v248
      %v1344 = vmul.f32 %v1323, %v240
      %v1345 = vmul.f32 %v1324, %v244
      %v1346 = vmul.f32 %v1325, %v248
      %v1347 = vmul.f32 %v1311, %v258
      %v1348 = vmul.f32 %v1312, %v262
      %v1349 = vmul.f32 %v1313, %v266
      %v1350 = vmul.f32 %v1314, %v258
      %v1351 = vmul.f32 %v1315, %v262
      %v1352 = vmul.f32 %v1316, %v266
      %v1353 = vadd.f32 %v1341, %v1347
      %v1354 = vadd.f32 %v1342, %v1348
      %v1355 = vadd.f32 %v1343, %v1349
      %v1356 = vadd.f32 %v1344, %v1350
      %v1357 = vadd.f32 %v1345, %v1351
      %v1358 = vadd.f32 %v1346, %v1352
      %v1359 = vmul.f32 %v1335, %v276
      %v1360 = vmul.f32 %v1336, %v280
      %v1361 = vmul.f32 %v1337, %v284
      %v1362 = vmul.f32 %v1338, %v276
      %v1363 = vmul.f32 %v1339, %v280
      %v1364 = vmul.f32 %v1340, %v284
      %v1365 = vadd.f32 %v1353, %v1359
      %v1366 = vadd.f32 %v1354, %v1360
      %v1367 = vadd.f32 %v1355, %v1361
      %v1368 = vadd.f32 %v1356, %v1362
      %v1369 = vadd.f32 %v1357, %v1363
      %v1370 = vadd.f32 %v1358, %v1364
      %v1371 = vadd.f32 %v1246, %v1365
      %v1372 = vadd.f32 %v1247, %v1366
      %v1373 = vadd.f32 %v1248, %v1367
      %v1374 = vadd.f32 %v1249, %v1368
      %v1375 = vadd.f32 %v1250, %v1369
      %v1376 = vadd.f32 %v1251, %v1370
      %s1377 = scalar_lea.vmem %s125, 576
      %1378 = vst [vmem:[%s1377] sm:$0xff] %v1371
      %1379 = vst [vmem:[%s1377 + $0x8] sm:$0xff] %v1372
      %1380 = vst [vmem:[%s1377 + $0x10] sm:$0xff] %v1373
      %1381 = vst [vmem:[%s1377 + $0x30] sm:$0xff] %v1374
      %1382 = vst [vmem:[%s1377 + $0x38] sm:$0xff] %v1375
      %1383 = vst [vmem:[%s1377 + $0x40] sm:$0xff] %v1376
      %s1384 = scalar_lea.vmem %s1, 24
      %v1385 = vld [vmem:[%s1384] ss:$8 sm:$0x7]
      %v1387 = vlaneseq
      %v1388 = vshrl.u32 %v1387, 7
      %v1389 = vsub.s32 0, %v1388
      %v1390 = vrot.slane %v1385, %v1389
      %v1391 = vlaneseq
      %v1392 = vshrl.u32 %v1391, 7
      %v1393 = vsub.s32 1, %v1392
      %v1394 = vrot.slane %v1385, %v1393
      %v1395 = vlaneseq
      %v1396 = vshrl.u32 %v1395, 7
      %v1397 = vsub.s32 2, %v1396
      %v1398 = vrot.slane %v1385, %v1397
      %s1402 = scalar_lea.vmem %s1, 25
      %v1403 = vld [vmem:[%s1402] ss:$8 sm:$0x7]
      %v1405 = vlaneseq
      %v1406 = vshrl.u32 %v1405, 7
      %v1407 = vsub.s32 0, %v1406
      %v1408 = vrot.slane %v1403, %v1407
      %v1409 = vlaneseq
      %v1410 = vshrl.u32 %v1409, 7
      %v1411 = vsub.s32 1, %v1410
      %v1412 = vrot.slane %v1403, %v1411
      %v1413 = vlaneseq
      %v1414 = vshrl.u32 %v1413, 7
      %v1415 = vsub.s32 2, %v1414
      %v1416 = vrot.slane %v1403, %v1415
      %s1420 = scalar_lea.vmem %s1, 26
      %v1421 = vld [vmem:[%s1420] ss:$8 sm:$0x7]
      %v1423 = vlaneseq
      %v1424 = vshrl.u32 %v1423, 7
      %v1425 = vsub.s32 0, %v1424
      %v1426 = vrot.slane %v1421, %v1425
      %v1427 = vlaneseq
      %v1428 = vshrl.u32 %v1427, 7
      %v1429 = vsub.s32 1, %v1428
      %v1430 = vrot.slane %v1421, %v1429
      %v1431 = vlaneseq
      %v1432 = vshrl.u32 %v1431, 7
      %v1433 = vsub.s32 2, %v1432
      %v1434 = vrot.slane %v1421, %v1433
      %s1438 = scalar_lea.vmem %s1, 27
      %v1439 = vld [vmem:[%s1438] ss:$8 sm:$0x7]
      %v1441 = vlaneseq
      %v1442 = vshrl.u32 %v1441, 7
      %v1443 = vsub.s32 0, %v1442
      %v1444 = vrot.slane %v1439, %v1443
      %v1445 = vlaneseq
      %v1446 = vshrl.u32 %v1445, 7
      %v1447 = vsub.s32 1, %v1446
      %v1448 = vrot.slane %v1439, %v1447
      %v1449 = vlaneseq
      %v1450 = vshrl.u32 %v1449, 7
      %v1451 = vsub.s32 2, %v1450
      %v1452 = vrot.slane %v1439, %v1451
      %s1456 = scalar_lea.vmem %s1, 28
      %v1457 = vld [vmem:[%s1456] ss:$8 sm:$0x7]
      %v1459 = vlaneseq
      %v1460 = vshrl.u32 %v1459, 7
      %v1461 = vsub.s32 0, %v1460
      %v1462 = vrot.slane %v1457, %v1461
      %v1463 = vlaneseq
      %v1464 = vshrl.u32 %v1463, 7
      %v1465 = vsub.s32 1, %v1464
      %v1466 = vrot.slane %v1457, %v1465
      %v1467 = vlaneseq
      %v1468 = vshrl.u32 %v1467, 7
      %v1469 = vsub.s32 2, %v1468
      %v1470 = vrot.slane %v1457, %v1469
      %s1474 = scalar_lea.vmem %s1, 29
      %v1475 = vld [vmem:[%s1474] ss:$8 sm:$0x7]
      %v1477 = vlaneseq
      %v1478 = vshrl.u32 %v1477, 7
      %v1479 = vsub.s32 0, %v1478
      %v1480 = vrot.slane %v1475, %v1479
      %v1481 = vlaneseq
      %v1482 = vshrl.u32 %v1481, 7
      %v1483 = vsub.s32 1, %v1482
      %v1484 = vrot.slane %v1475, %v1483
      %v1485 = vlaneseq
      %v1486 = vshrl.u32 %v1485, 7
      %v1487 = vsub.s32 2, %v1486
      %v1488 = vrot.slane %v1475, %v1487
      %s1492 = scalar_lea.vmem %s1, 30
      %v1493 = vld [vmem:[%s1492] ss:$8 sm:$0x7]
      %v1495 = vlaneseq
      %v1496 = vshrl.u32 %v1495, 7
      %v1497 = vsub.s32 0, %v1496
      %v1498 = vrot.slane %v1493, %v1497
      %v1499 = vlaneseq
      %v1500 = vshrl.u32 %v1499, 7
      %v1501 = vsub.s32 1, %v1500
      %v1502 = vrot.slane %v1493, %v1501
      %v1503 = vlaneseq
      %v1504 = vshrl.u32 %v1503, 7
      %v1505 = vsub.s32 2, %v1504
      %v1506 = vrot.slane %v1493, %v1505
      %s1510 = scalar_lea.vmem %s1, 31
      %v1511 = vld [vmem:[%s1510] ss:$8 sm:$0x7]
      %v1513 = vlaneseq
      %v1514 = vshrl.u32 %v1513, 7
      %v1515 = vsub.s32 0, %v1514
      %v1516 = vrot.slane %v1511, %v1515
      %v1517 = vlaneseq
      %v1518 = vshrl.u32 %v1517, 7
      %v1519 = vsub.s32 1, %v1518
      %v1520 = vrot.slane %v1511, %v1519
      %v1521 = vlaneseq
      %v1522 = vshrl.u32 %v1521, 7
      %v1523 = vsub.s32 2, %v1522
      %v1524 = vrot.slane %v1511, %v1523
      %s1528 = scalar_lea.vmem %s1, 72
      %v1529 = vld [vmem:[%s1528] ss:$8 sm:$0x7]
      %v1531 = vlaneseq
      %v1532 = vshrl.u32 %v1531, 7
      %v1533 = vsub.s32 0, %v1532
      %v1534 = vrot.slane %v1529, %v1533
      %v1535 = vlaneseq
      %v1536 = vshrl.u32 %v1535, 7
      %v1537 = vsub.s32 1, %v1536
      %v1538 = vrot.slane %v1529, %v1537
      %v1539 = vlaneseq
      %v1540 = vshrl.u32 %v1539, 7
      %v1541 = vsub.s32 2, %v1540
      %v1542 = vrot.slane %v1529, %v1541
      %v1546 = vld [vmem:[%s297 + $0x18] sm:$0xff]
      %v1547 = vld [vmem:[%s297 + $0x20] sm:$0xff]
      %v1548 = vld [vmem:[%s297 + $0x28] sm:$0xff]
      %v1549 = vld [vmem:[%s297 + $0x48] sm:$0xff]
      %v1550 = vld [vmem:[%s297 + $0x50] sm:$0xff]
      %v1551 = vld [vmem:[%s297 + $0x58] sm:$0xff]
      %v1552 = vmul.f32 %v1546, %v304
      %v1553 = vmul.f32 %v1547, %v304
      %v1554 = vmul.f32 %v1548, %v304
      %v1555 = vmul.f32 %v1549, %v304
      %v1556 = vmul.f32 %v1550, %v304
      %v1557 = vmul.f32 %v1551, %v304
      %v1558 = vrot.slane %v1552, 7
      %v1559 = vrot.slane %v1553, 7
      %v1560 = vrot.slane %v1554, 7
      %v1561 = vrot.slane %v1555, 7
      %v1562 = vrot.slane %v1556, 7
      %v1563 = vrot.slane %v1557, 7
      %v1564 = vsel %vm319, %v1558, %v1561
      %v1565 = vsel %vm319, %v1559, %v1562
      %v1566 = vsel %vm319, %v1560, %v1563
      %v1567 = vsel %vm319, %v1561, %v1558
      %v1568 = vsel %vm319, %v1562, %v1559
      %v1569 = vsel %vm319, %v1563, %v1560
      %v1570 = vrot.slane %v1552, 1
      %v1571 = vrot.slane %v1553, 1
      %v1572 = vrot.slane %v1554, 1
      %v1573 = vrot.slane %v1555, 1
      %v1574 = vrot.slane %v1556, 1
      %v1575 = vrot.slane %v1557, 1
      %v1576 = vsel %vm332, %v1570, %v1573
      %v1577 = vsel %vm332, %v1571, %v1574
      %v1578 = vsel %vm332, %v1572, %v1575
      %v1579 = vsel %vm332, %v1573, %v1570
      %v1580 = vsel %vm332, %v1574, %v1571
      %v1581 = vsel %vm332, %v1575, %v1572
      %v1582 = vmul.f32 %v1567, %v1390
      %v1583 = vmul.f32 %v1568, %v1394
      %v1584 = vmul.f32 %v1569, %v1398
      %v1585 = vmul.f32 %v1564, %v1390
      %v1586 = vmul.f32 %v1565, %v1394
      %v1587 = vmul.f32 %v1566, %v1398
      %v1588 = vmul.f32 %v1552, %v1408
      %v1589 = vmul.f32 %v1553, %v1412
      %v1590 = vmul.f32 %v1554, %v1416
      %v1591 = vmul.f32 %v1555, %v1408
      %v1592 = vmul.f32 %v1556, %v1412
      %v1593 = vmul.f32 %v1557, %v1416
      %v1594 = vadd.f32 %v1582, %v1588
      %v1595 = vadd.f32 %v1583, %v1589
      %v1596 = vadd.f32 %v1584, %v1590
      %v1597 = vadd.f32 %v1585, %v1591
      %v1598 = vadd.f32 %v1586, %v1592
      %v1599 = vadd.f32 %v1587, %v1593
      %v1600 = vmul.f32 %v1576, %v1426
      %v1601 = vmul.f32 %v1577, %v1430
      %v1602 = vmul.f32 %v1578, %v1434
      %v1603 = vmul.f32 %v1579, %v1426
      %v1604 = vmul.f32 %v1580, %v1430
      %v1605 = vmul.f32 %v1581, %v1434
      %v1606 = vadd.f32 %v1594, %v1600
      %v1607 = vadd.f32 %v1595, %v1601
      %v1608 = vadd.f32 %v1596, %v1602
      %v1609 = vadd.f32 %v1597, %v1603
      %v1610 = vadd.f32 %v1598, %v1604
      %v1611 = vadd.f32 %v1599, %v1605
      %v1612 = vld [vmem:[%s371 + $0x18] sm:$0xff]
      %v1613 = vld [vmem:[%s371 + $0x20] sm:$0xff]
      %v1614 = vld [vmem:[%s371 + $0x28] sm:$0xff]
      %v1615 = vld [vmem:[%s371 + $0x48] sm:$0xff]
      %v1616 = vld [vmem:[%s371 + $0x50] sm:$0xff]
      %v1617 = vld [vmem:[%s371 + $0x58] sm:$0xff]
      %v1618 = vrot.slane %v1612, 7
      %v1619 = vrot.slane %v1613, 7
      %v1620 = vrot.slane %v1614, 7
      %v1621 = vrot.slane %v1615, 7
      %v1622 = vrot.slane %v1616, 7
      %v1623 = vrot.slane %v1617, 7
      %v1624 = vsel %vm319, %v1618, %v1621
      %v1625 = vsel %vm319, %v1619, %v1622
      %v1626 = vsel %vm319, %v1620, %v1623
      %v1627 = vsel %vm319, %v1621, %v1618
      %v1628 = vsel %vm319, %v1622, %v1619
      %v1629 = vsel %vm319, %v1623, %v1620
      %v1630 = vrot.slane %v1612, 1
      %v1631 = vrot.slane %v1613, 1
      %v1632 = vrot.slane %v1614, 1
      %v1633 = vrot.slane %v1615, 1
      %v1634 = vrot.slane %v1616, 1
      %v1635 = vrot.slane %v1617, 1
      %v1636 = vsel %vm332, %v1630, %v1633
      %v1637 = vsel %vm332, %v1631, %v1634
      %v1638 = vsel %vm332, %v1632, %v1635
      %v1639 = vsel %vm332, %v1633, %v1630
      %v1640 = vsel %vm332, %v1634, %v1631
      %v1641 = vsel %vm332, %v1635, %v1632
      %v1642 = vmul.f32 %v1627, %v1390
      %v1643 = vmul.f32 %v1628, %v1394
      %v1644 = vmul.f32 %v1629, %v1398
      %v1645 = vmul.f32 %v1624, %v1390
      %v1646 = vmul.f32 %v1625, %v1394
      %v1647 = vmul.f32 %v1626, %v1398
      %v1648 = vmul.f32 %v1612, %v1408
      %v1649 = vmul.f32 %v1613, %v1412
      %v1650 = vmul.f32 %v1614, %v1416
      %v1651 = vmul.f32 %v1615, %v1408
      %v1652 = vmul.f32 %v1616, %v1412
      %v1653 = vmul.f32 %v1617, %v1416
      %v1654 = vadd.f32 %v1642, %v1648
      %v1655 = vadd.f32 %v1643, %v1649
      %v1656 = vadd.f32 %v1644, %v1650
      %v1657 = vadd.f32 %v1645, %v1651
      %v1658 = vadd.f32 %v1646, %v1652
      %v1659 = vadd.f32 %v1647, %v1653
      %v1660 = vmul.f32 %v1636, %v1426
      %v1661 = vmul.f32 %v1637, %v1430
      %v1662 = vmul.f32 %v1638, %v1434
      %v1663 = vmul.f32 %v1639, %v1426
      %v1664 = vmul.f32 %v1640, %v1430
      %v1665 = vmul.f32 %v1641, %v1434
      %v1666 = vadd.f32 %v1654, %v1660
      %v1667 = vadd.f32 %v1655, %v1661
      %v1668 = vadd.f32 %v1656, %v1662
      %v1669 = vadd.f32 %v1657, %v1663
      %v1670 = vadd.f32 %v1658, %v1664
      %v1671 = vadd.f32 %v1659, %v1665
      %v1672 = vmul.f32 %v1627, %v1444
      %v1673 = vmul.f32 %v1628, %v1448
      %v1674 = vmul.f32 %v1629, %v1452
      %v1675 = vmul.f32 %v1624, %v1444
      %v1676 = vmul.f32 %v1625, %v1448
      %v1677 = vmul.f32 %v1626, %v1452
      %v1678 = vmul.f32 %v1612, %v1462
      %v1679 = vmul.f32 %v1613, %v1466
      %v1680 = vmul.f32 %v1614, %v1470
      %v1681 = vmul.f32 %v1615, %v1462
      %v1682 = vmul.f32 %v1616, %v1466
      %v1683 = vmul.f32 %v1617, %v1470
      %v1684 = vadd.f32 %v1672, %v1678
      %v1685 = vadd.f32 %v1673, %v1679
      %v1686 = vadd.f32 %v1674, %v1680
      %v1687 = vadd.f32 %v1675, %v1681
      %v1688 = vadd.f32 %v1676, %v1682
      %v1689 = vadd.f32 %v1677, %v1683
      %v1690 = vmul.f32 %v1636, %v1480
      %v1691 = vmul.f32 %v1637, %v1484
      %v1692 = vmul.f32 %v1638, %v1488
      %v1693 = vmul.f32 %v1639, %v1480
      %v1694 = vmul.f32 %v1640, %v1484
      %v1695 = vmul.f32 %v1641, %v1488
      %v1696 = vadd.f32 %v1684, %v1690
      %v1697 = vadd.f32 %v1685, %v1691
      %v1698 = vadd.f32 %v1686, %v1692
      %v1699 = vadd.f32 %v1687, %v1693
      %v1700 = vadd.f32 %v1688, %v1694
      %v1701 = vadd.f32 %v1689, %v1695
      %v1702 = vadd.f32 %v1606, %v1696
      %v1703 = vadd.f32 %v1607, %v1697
      %v1704 = vadd.f32 %v1608, %v1698
      %v1705 = vadd.f32 %v1609, %v1699
      %v1706 = vadd.f32 %v1610, %v1700
      %v1707 = vadd.f32 %v1611, %v1701
      %v1708 = vld [vmem:[%s471 + $0x18] sm:$0xff]
      %v1709 = vld [vmem:[%s471 + $0x20] sm:$0xff]
      %v1710 = vld [vmem:[%s471 + $0x28] sm:$0xff]
      %v1711 = vld [vmem:[%s471 + $0x48] sm:$0xff]
      %v1712 = vld [vmem:[%s471 + $0x50] sm:$0xff]
      %v1713 = vld [vmem:[%s471 + $0x58] sm:$0xff]
      %v1714 = vrot.slane %v1708, 7
      %v1715 = vrot.slane %v1709, 7
      %v1716 = vrot.slane %v1710, 7
      %v1717 = vrot.slane %v1711, 7
      %v1718 = vrot.slane %v1712, 7
      %v1719 = vrot.slane %v1713, 7
      %v1720 = vsel %vm319, %v1714, %v1717
      %v1721 = vsel %vm319, %v1715, %v1718
      %v1722 = vsel %vm319, %v1716, %v1719
      %v1723 = vsel %vm319, %v1717, %v1714
      %v1724 = vsel %vm319, %v1718, %v1715
      %v1725 = vsel %vm319, %v1719, %v1716
      %v1726 = vrot.slane %v1708, 1
      %v1727 = vrot.slane %v1709, 1
      %v1728 = vrot.slane %v1710, 1
      %v1729 = vrot.slane %v1711, 1
      %v1730 = vrot.slane %v1712, 1
      %v1731 = vrot.slane %v1713, 1
      %v1732 = vsel %vm332, %v1726, %v1729
      %v1733 = vsel %vm332, %v1727, %v1730
      %v1734 = vsel %vm332, %v1728, %v1731
      %v1735 = vsel %vm332, %v1729, %v1726
      %v1736 = vsel %vm332, %v1730, %v1727
      %v1737 = vsel %vm332, %v1731, %v1728
      %v1738 = vmul.f32 %v1723, %v1390
      %v1739 = vmul.f32 %v1724, %v1394
      %v1740 = vmul.f32 %v1725, %v1398
      %v1741 = vmul.f32 %v1720, %v1390
      %v1742 = vmul.f32 %v1721, %v1394
      %v1743 = vmul.f32 %v1722, %v1398
      %v1744 = vmul.f32 %v1708, %v1408
      %v1745 = vmul.f32 %v1709, %v1412
      %v1746 = vmul.f32 %v1710, %v1416
      %v1747 = vmul.f32 %v1711, %v1408
      %v1748 = vmul.f32 %v1712, %v1412
      %v1749 = vmul.f32 %v1713, %v1416
      %v1750 = vadd.f32 %v1738, %v1744
      %v1751 = vadd.f32 %v1739, %v1745
      %v1752 = vadd.f32 %v1740, %v1746
      %v1753 = vadd.f32 %v1741, %v1747
      %v1754 = vadd.f32 %v1742, %v1748
      %v1755 = vadd.f32 %v1743, %v1749
      %v1756 = vmul.f32 %v1732, %v1426
      %v1757 = vmul.f32 %v1733, %v1430
      %v1758 = vmul.f32 %v1734, %v1434
      %v1759 = vmul.f32 %v1735, %v1426
      %v1760 = vmul.f32 %v1736, %v1430
      %v1761 = vmul.f32 %v1737, %v1434
      %v1762 = vadd.f32 %v1750, %v1756
      %v1763 = vadd.f32 %v1751, %v1757
      %v1764 = vadd.f32 %v1752, %v1758
      %v1765 = vadd.f32 %v1753, %v1759
      %v1766 = vadd.f32 %v1754, %v1760
      %v1767 = vadd.f32 %v1755, %v1761
      %v1768 = vmul.f32 %v1723, %v1444
      %v1769 = vmul.f32 %v1724, %v1448
      %v1770 = vmul.f32 %v1725, %v1452
      %v1771 = vmul.f32 %v1720, %v1444
      %v1772 = vmul.f32 %v1721, %v1448
      %v1773 = vmul.f32 %v1722, %v1452
      %v1774 = vmul.f32 %v1708, %v1462
      %v1775 = vmul.f32 %v1709, %v1466
      %v1776 = vmul.f32 %v1710, %v1470
      %v1777 = vmul.f32 %v1711, %v1462
      %v1778 = vmul.f32 %v1712, %v1466
      %v1779 = vmul.f32 %v1713, %v1470
      %v1780 = vadd.f32 %v1768, %v1774
      %v1781 = vadd.f32 %v1769, %v1775
      %v1782 = vadd.f32 %v1770, %v1776
      %v1783 = vadd.f32 %v1771, %v1777
      %v1784 = vadd.f32 %v1772, %v1778
      %v1785 = vadd.f32 %v1773, %v1779
      %v1786 = vmul.f32 %v1732, %v1480
      %v1787 = vmul.f32 %v1733, %v1484
      %v1788 = vmul.f32 %v1734, %v1488
      %v1789 = vmul.f32 %v1735, %v1480
      %v1790 = vmul.f32 %v1736, %v1484
      %v1791 = vmul.f32 %v1737, %v1488
      %v1792 = vadd.f32 %v1780, %v1786
      %v1793 = vadd.f32 %v1781, %v1787
      %v1794 = vadd.f32 %v1782, %v1788
      %v1795 = vadd.f32 %v1783, %v1789
      %v1796 = vadd.f32 %v1784, %v1790
      %v1797 = vadd.f32 %v1785, %v1791
      %v1798 = vadd.f32 %v1666, %v1792
      %v1799 = vadd.f32 %v1667, %v1793
      %v1800 = vadd.f32 %v1668, %v1794
      %v1801 = vadd.f32 %v1669, %v1795
      %v1802 = vadd.f32 %v1670, %v1796
      %v1803 = vadd.f32 %v1671, %v1797
      %v1804 = vmul.f32 %v1723, %v1498
      %v1805 = vmul.f32 %v1724, %v1502
      %v1806 = vmul.f32 %v1725, %v1506
      %v1807 = vmul.f32 %v1720, %v1498
      %v1808 = vmul.f32 %v1721, %v1502
      %v1809 = vmul.f32 %v1722, %v1506
      %v1810 = vmul.f32 %v1708, %v1516
      %v1811 = vmul.f32 %v1709, %v1520
      %v1812 = vmul.f32 %v1710, %v1524
      %v1813 = vmul.f32 %v1711, %v1516
      %v1814 = vmul.f32 %v1712, %v1520
      %v1815 = vmul.f32 %v1713, %v1524
      %v1816 = vadd.f32 %v1804, %v1810
      %v1817 = vadd.f32 %v1805, %v1811
      %v1818 = vadd.f32 %v1806, %v1812
      %v1819 = vadd.f32 %v1807, %v1813
      %v1820 = vadd.f32 %v1808, %v1814
      %v1821 = vadd.f32 %v1809, %v1815
      %v1822 = vmul.f32 %v1732, %v1534
      %v1823 = vmul.f32 %v1733, %v1538
      %v1824 = vmul.f32 %v1734, %v1542
      %v1825 = vmul.f32 %v1735, %v1534
      %v1826 = vmul.f32 %v1736, %v1538
      %v1827 = vmul.f32 %v1737, %v1542
      %v1828 = vadd.f32 %v1816, %v1822
      %v1829 = vadd.f32 %v1817, %v1823
      %v1830 = vadd.f32 %v1818, %v1824
      %v1831 = vadd.f32 %v1819, %v1825
      %v1832 = vadd.f32 %v1820, %v1826
      %v1833 = vadd.f32 %v1821, %v1827
      %v1834 = vadd.f32 %v1702, %v1828
      %v1835 = vadd.f32 %v1703, %v1829
      %v1836 = vadd.f32 %v1704, %v1830
      %v1837 = vadd.f32 %v1705, %v1831
      %v1838 = vadd.f32 %v1706, %v1832
      %v1839 = vadd.f32 %v1707, %v1833
      %1840 = vst [vmem:[%s125 + $0x18] sm:$0xff] %v1834
      %1841 = vst [vmem:[%s125 + $0x20] sm:$0xff] %v1835
      %1842 = vst [vmem:[%s125 + $0x28] sm:$0xff] %v1836
      %1843 = vst [vmem:[%s125 + $0x48] sm:$0xff] %v1837
      %1844 = vst [vmem:[%s125 + $0x50] sm:$0xff] %v1838
      %1845 = vst [vmem:[%s125 + $0x58] sm:$0xff] %v1839
      %v1846 = vld [vmem:[%s613 + $0x18] sm:$0xff]
      %v1847 = vld [vmem:[%s613 + $0x20] sm:$0xff]
      %v1848 = vld [vmem:[%s613 + $0x28] sm:$0xff]
      %v1849 = vld [vmem:[%s613 + $0x48] sm:$0xff]
      %v1850 = vld [vmem:[%s613 + $0x50] sm:$0xff]
      %v1851 = vld [vmem:[%s613 + $0x58] sm:$0xff]
      %v1852 = vrot.slane %v1846, 7
      %v1853 = vrot.slane %v1847, 7
      %v1854 = vrot.slane %v1848, 7
      %v1855 = vrot.slane %v1849, 7
      %v1856 = vrot.slane %v1850, 7
      %v1857 = vrot.slane %v1851, 7
      %v1858 = vsel %vm319, %v1852, %v1855
      %v1859 = vsel %vm319, %v1853, %v1856
      %v1860 = vsel %vm319, %v1854, %v1857
      %v1861 = vsel %vm319, %v1855, %v1852
      %v1862 = vsel %vm319, %v1856, %v1853
      %v1863 = vsel %vm319, %v1857, %v1854
      %v1864 = vrot.slane %v1846, 1
      %v1865 = vrot.slane %v1847, 1
      %v1866 = vrot.slane %v1848, 1
      %v1867 = vrot.slane %v1849, 1
      %v1868 = vrot.slane %v1850, 1
      %v1869 = vrot.slane %v1851, 1
      %v1870 = vsel %vm332, %v1864, %v1867
      %v1871 = vsel %vm332, %v1865, %v1868
      %v1872 = vsel %vm332, %v1866, %v1869
      %v1873 = vsel %vm332, %v1867, %v1864
      %v1874 = vsel %vm332, %v1868, %v1865
      %v1875 = vsel %vm332, %v1869, %v1866
      %v1876 = vmul.f32 %v1861, %v1390
      %v1877 = vmul.f32 %v1862, %v1394
      %v1878 = vmul.f32 %v1863, %v1398
      %v1879 = vmul.f32 %v1858, %v1390
      %v1880 = vmul.f32 %v1859, %v1394
      %v1881 = vmul.f32 %v1860, %v1398
      %v1882 = vmul.f32 %v1846, %v1408
      %v1883 = vmul.f32 %v1847, %v1412
      %v1884 = vmul.f32 %v1848, %v1416
      %v1885 = vmul.f32 %v1849, %v1408
      %v1886 = vmul.f32 %v1850, %v1412
      %v1887 = vmul.f32 %v1851, %v1416
      %v1888 = vadd.f32 %v1876, %v1882
      %v1889 = vadd.f32 %v1877, %v1883
      %v1890 = vadd.f32 %v1878, %v1884
      %v1891 = vadd.f32 %v1879, %v1885
      %v1892 = vadd.f32 %v1880, %v1886
      %v1893 = vadd.f32 %v1881, %v1887
      %v1894 = vmul.f32 %v1870, %v1426
      %v1895 = vmul.f32 %v1871, %v1430
      %v1896 = vmul.f32 %v1872, %v1434
      %v1897 = vmul.f32 %v1873, %v1426
      %v1898 = vmul.f32 %v1874, %v1430
      %v1899 = vmul.f32 %v1875, %v1434
      %v1900 = vadd.f32 %v1888, %v1894
      %v1901 = vadd.f32 %v1889, %v1895
      %v1902 = vadd.f32 %v1890, %v1896
      %v1903 = vadd.f32 %v1891, %v1897
      %v1904 = vadd.f32 %v1892, %v1898
      %v1905 = vadd.f32 %v1893, %v1899
      %v1906 = vmul.f32 %v1861, %v1444
      %v1907 = vmul.f32 %v1862, %v1448
      %v1908 = vmul.f32 %v1863, %v1452
      %v1909 = vmul.f32 %v1858, %v1444
      %v1910 = vmul.f32 %v1859, %v1448
      %v1911 = vmul.f32 %v1860, %v1452
      %v1912 = vmul.f32 %v1846, %v1462
      %v1913 = vmul.f32 %v1847, %v1466
      %v1914 = vmul.f32 %v1848, %v1470
      %v1915 = vmul.f32 %v1849, %v1462
      %v1916 = vmul.f32 %v1850, %v1466
      %v1917 = vmul.f32 %v1851, %v1470
      %v1918 = vadd.f32 %v1906, %v1912
      %v1919 = vadd.f32 %v1907, %v1913
      %v1920 = vadd.f32 %v1908, %v1914
      %v1921 = vadd.f32 %v1909, %v1915
      %v1922 = vadd.f32 %v1910, %v1916
      %v1923 = vadd.f32 %v1911, %v1917
      %v1924 = vmul.f32 %v1870, %v1480
      %v1925 = vmul.f32 %v1871, %v1484
      %v1926 = vmul.f32 %v1872, %v1488
      %v1927 = vmul.f32 %v1873, %v1480
      %v1928 = vmul.f32 %v1874, %v1484
      %v1929 = vmul.f32 %v1875, %v1488
      %v1930 = vadd.f32 %v1918, %v1924
      %v1931 = vadd.f32 %v1919, %v1925
      %v1932 = vadd.f32 %v1920, %v1926
      %v1933 = vadd.f32 %v1921, %v1927
      %v1934 = vadd.f32 %v1922, %v1928
      %v1935 = vadd.f32 %v1923, %v1929
      %v1936 = vadd.f32 %v1762, %v1930
      %v1937 = vadd.f32 %v1763, %v1931
      %v1938 = vadd.f32 %v1764, %v1932
      %v1939 = vadd.f32 %v1765, %v1933
      %v1940 = vadd.f32 %v1766, %v1934
      %v1941 = vadd.f32 %v1767, %v1935
      %v1942 = vmul.f32 %v1861, %v1498
      %v1943 = vmul.f32 %v1862, %v1502
      %v1944 = vmul.f32 %v1863, %v1506
      %v1945 = vmul.f32 %v1858, %v1498
      %v1946 = vmul.f32 %v1859, %v1502
      %v1947 = vmul.f32 %v1860, %v1506
      %v1948 = vmul.f32 %v1846, %v1516
      %v1949 = vmul.f32 %v1847, %v1520
      %v1950 = vmul.f32 %v1848, %v1524
      %v1951 = vmul.f32 %v1849, %v1516
      %v1952 = vmul.f32 %v1850, %v1520
      %v1953 = vmul.f32 %v1851, %v1524
      %v1954 = vadd.f32 %v1942, %v1948
      %v1955 = vadd.f32 %v1943, %v1949
      %v1956 = vadd.f32 %v1944, %v1950
      %v1957 = vadd.f32 %v1945, %v1951
      %v1958 = vadd.f32 %v1946, %v1952
      %v1959 = vadd.f32 %v1947, %v1953
      %v1960 = vmul.f32 %v1870, %v1534
      %v1961 = vmul.f32 %v1871, %v1538
      %v1962 = vmul.f32 %v1872, %v1542
      %v1963 = vmul.f32 %v1873, %v1534
      %v1964 = vmul.f32 %v1874, %v1538
      %v1965 = vmul.f32 %v1875, %v1542
      %v1966 = vadd.f32 %v1954, %v1960
      %v1967 = vadd.f32 %v1955, %v1961
      %v1968 = vadd.f32 %v1956, %v1962
      %v1969 = vadd.f32 %v1957, %v1963
      %v1970 = vadd.f32 %v1958, %v1964
      %v1971 = vadd.f32 %v1959, %v1965
      %v1972 = vadd.f32 %v1798, %v1966
      %v1973 = vadd.f32 %v1799, %v1967
      %v1974 = vadd.f32 %v1800, %v1968
      %v1975 = vadd.f32 %v1801, %v1969
      %v1976 = vadd.f32 %v1802, %v1970
      %v1977 = vadd.f32 %v1803, %v1971
      %1978 = vst [vmem:[%s746 + $0x18] sm:$0xff] %v1972
      %1979 = vst [vmem:[%s746 + $0x20] sm:$0xff] %v1973
      %1980 = vst [vmem:[%s746 + $0x28] sm:$0xff] %v1974
      %1981 = vst [vmem:[%s746 + $0x48] sm:$0xff] %v1975
      %1982 = vst [vmem:[%s746 + $0x50] sm:$0xff] %v1976
      %1983 = vst [vmem:[%s746 + $0x58] sm:$0xff] %v1977
      %v1984 = vld [vmem:[%s756 + $0x18] sm:$0xff]
      %v1985 = vld [vmem:[%s756 + $0x20] sm:$0xff]
      %v1986 = vld [vmem:[%s756 + $0x28] sm:$0xff]
      %v1987 = vld [vmem:[%s756 + $0x48] sm:$0xff]
      %v1988 = vld [vmem:[%s756 + $0x50] sm:$0xff]
      %v1989 = vld [vmem:[%s756 + $0x58] sm:$0xff]
      %v1990 = vrot.slane %v1984, 7
      %v1991 = vrot.slane %v1985, 7
      %v1992 = vrot.slane %v1986, 7
      %v1993 = vrot.slane %v1987, 7
      %v1994 = vrot.slane %v1988, 7
      %v1995 = vrot.slane %v1989, 7
      %v1996 = vsel %vm319, %v1990, %v1993
      %v1997 = vsel %vm319, %v1991, %v1994
      %v1998 = vsel %vm319, %v1992, %v1995
      %v1999 = vsel %vm319, %v1993, %v1990
      %v2000 = vsel %vm319, %v1994, %v1991
      %v2001 = vsel %vm319, %v1995, %v1992
      %v2002 = vrot.slane %v1984, 1
      %v2003 = vrot.slane %v1985, 1
      %v2004 = vrot.slane %v1986, 1
      %v2005 = vrot.slane %v1987, 1
      %v2006 = vrot.slane %v1988, 1
      %v2007 = vrot.slane %v1989, 1
      %v2008 = vsel %vm332, %v2002, %v2005
      %v2009 = vsel %vm332, %v2003, %v2006
      %v2010 = vsel %vm332, %v2004, %v2007
      %v2011 = vsel %vm332, %v2005, %v2002
      %v2012 = vsel %vm332, %v2006, %v2003
      %v2013 = vsel %vm332, %v2007, %v2004
      %v2014 = vmul.f32 %v1999, %v1390
      %v2015 = vmul.f32 %v2000, %v1394
      %v2016 = vmul.f32 %v2001, %v1398
      %v2017 = vmul.f32 %v1996, %v1390
      %v2018 = vmul.f32 %v1997, %v1394
      %v2019 = vmul.f32 %v1998, %v1398
      %v2020 = vmul.f32 %v1984, %v1408
      %v2021 = vmul.f32 %v1985, %v1412
      %v2022 = vmul.f32 %v1986, %v1416
      %v2023 = vmul.f32 %v1987, %v1408
      %v2024 = vmul.f32 %v1988, %v1412
      %v2025 = vmul.f32 %v1989, %v1416
      %v2026 = vadd.f32 %v2014, %v2020
      %v2027 = vadd.f32 %v2015, %v2021
      %v2028 = vadd.f32 %v2016, %v2022
      %v2029 = vadd.f32 %v2017, %v2023
      %v2030 = vadd.f32 %v2018, %v2024
      %v2031 = vadd.f32 %v2019, %v2025
      %v2032 = vmul.f32 %v2008, %v1426
      %v2033 = vmul.f32 %v2009, %v1430
      %v2034 = vmul.f32 %v2010, %v1434
      %v2035 = vmul.f32 %v2011, %v1426
      %v2036 = vmul.f32 %v2012, %v1430
      %v2037 = vmul.f32 %v2013, %v1434
      %v2038 = vadd.f32 %v2026, %v2032
      %v2039 = vadd.f32 %v2027, %v2033
      %v2040 = vadd.f32 %v2028, %v2034
      %v2041 = vadd.f32 %v2029, %v2035
      %v2042 = vadd.f32 %v2030, %v2036
      %v2043 = vadd.f32 %v2031, %v2037
      %v2044 = vmul.f32 %v1999, %v1444
      %v2045 = vmul.f32 %v2000, %v1448
      %v2046 = vmul.f32 %v2001, %v1452
      %v2047 = vmul.f32 %v1996, %v1444
      %v2048 = vmul.f32 %v1997, %v1448
      %v2049 = vmul.f32 %v1998, %v1452
      %v2050 = vmul.f32 %v1984, %v1462
      %v2051 = vmul.f32 %v1985, %v1466
      %v2052 = vmul.f32 %v1986, %v1470
      %v2053 = vmul.f32 %v1987, %v1462
      %v2054 = vmul.f32 %v1988, %v1466
      %v2055 = vmul.f32 %v1989, %v1470
      %v2056 = vadd.f32 %v2044, %v2050
      %v2057 = vadd.f32 %v2045, %v2051
      %v2058 = vadd.f32 %v2046, %v2052
      %v2059 = vadd.f32 %v2047, %v2053
      %v2060 = vadd.f32 %v2048, %v2054
      %v2061 = vadd.f32 %v2049, %v2055
      %v2062 = vmul.f32 %v2008, %v1480
      %v2063 = vmul.f32 %v2009, %v1484
      %v2064 = vmul.f32 %v2010, %v1488
      %v2065 = vmul.f32 %v2011, %v1480
      %v2066 = vmul.f32 %v2012, %v1484
      %v2067 = vmul.f32 %v2013, %v1488
      %v2068 = vadd.f32 %v2056, %v2062
      %v2069 = vadd.f32 %v2057, %v2063
      %v2070 = vadd.f32 %v2058, %v2064
      %v2071 = vadd.f32 %v2059, %v2065
      %v2072 = vadd.f32 %v2060, %v2066
      %v2073 = vadd.f32 %v2061, %v2067
      %v2074 = vadd.f32 %v1900, %v2068
      %v2075 = vadd.f32 %v1901, %v2069
      %v2076 = vadd.f32 %v1902, %v2070
      %v2077 = vadd.f32 %v1903, %v2071
      %v2078 = vadd.f32 %v1904, %v2072
      %v2079 = vadd.f32 %v1905, %v2073
      %v2080 = vmul.f32 %v1999, %v1498
      %v2081 = vmul.f32 %v2000, %v1502
      %v2082 = vmul.f32 %v2001, %v1506
      %v2083 = vmul.f32 %v1996, %v1498
      %v2084 = vmul.f32 %v1997, %v1502
      %v2085 = vmul.f32 %v1998, %v1506
      %v2086 = vmul.f32 %v1984, %v1516
      %v2087 = vmul.f32 %v1985, %v1520
      %v2088 = vmul.f32 %v1986, %v1524
      %v2089 = vmul.f32 %v1987, %v1516
      %v2090 = vmul.f32 %v1988, %v1520
      %v2091 = vmul.f32 %v1989, %v1524
      %v2092 = vadd.f32 %v2080, %v2086
      %v2093 = vadd.f32 %v2081, %v2087
      %v2094 = vadd.f32 %v2082, %v2088
      %v2095 = vadd.f32 %v2083, %v2089
      %v2096 = vadd.f32 %v2084, %v2090
      %v2097 = vadd.f32 %v2085, %v2091
      %v2098 = vmul.f32 %v2008, %v1534
      %v2099 = vmul.f32 %v2009, %v1538
      %v2100 = vmul.f32 %v2010, %v1542
      %v2101 = vmul.f32 %v2011, %v1534
      %v2102 = vmul.f32 %v2012, %v1538
      %v2103 = vmul.f32 %v2013, %v1542
      %v2104 = vadd.f32 %v2092, %v2098
      %v2105 = vadd.f32 %v2093, %v2099
      %v2106 = vadd.f32 %v2094, %v2100
      %v2107 = vadd.f32 %v2095, %v2101
      %v2108 = vadd.f32 %v2096, %v2102
      %v2109 = vadd.f32 %v2097, %v2103
      %v2110 = vadd.f32 %v1936, %v2104
      %v2111 = vadd.f32 %v1937, %v2105
      %v2112 = vadd.f32 %v1938, %v2106
      %v2113 = vadd.f32 %v1939, %v2107
      %v2114 = vadd.f32 %v1940, %v2108
      %v2115 = vadd.f32 %v1941, %v2109
      %2116 = vst [vmem:[%s889 + $0x18] sm:$0xff] %v2110
      %2117 = vst [vmem:[%s889 + $0x20] sm:$0xff] %v2111
      %2118 = vst [vmem:[%s889 + $0x28] sm:$0xff] %v2112
      %2119 = vst [vmem:[%s889 + $0x48] sm:$0xff] %v2113
      %2120 = vst [vmem:[%s889 + $0x50] sm:$0xff] %v2114
      %2121 = vst [vmem:[%s889 + $0x58] sm:$0xff] %v2115
      %v2122 = vld [vmem:[%s899 + $0x18] sm:$0xff]
      %v2123 = vld [vmem:[%s899 + $0x20] sm:$0xff]
      %v2124 = vld [vmem:[%s899 + $0x28] sm:$0xff]
      %v2125 = vld [vmem:[%s899 + $0x48] sm:$0xff]
      %v2126 = vld [vmem:[%s899 + $0x50] sm:$0xff]
      %v2127 = vld [vmem:[%s899 + $0x58] sm:$0xff]
      %v2128 = vrot.slane %v2122, 7
      %v2129 = vrot.slane %v2123, 7
      %v2130 = vrot.slane %v2124, 7
      %v2131 = vrot.slane %v2125, 7
      %v2132 = vrot.slane %v2126, 7
      %v2133 = vrot.slane %v2127, 7
      %v2134 = vsel %vm319, %v2128, %v2131
      %v2135 = vsel %vm319, %v2129, %v2132
      %v2136 = vsel %vm319, %v2130, %v2133
      %v2137 = vsel %vm319, %v2131, %v2128
      %v2138 = vsel %vm319, %v2132, %v2129
      %v2139 = vsel %vm319, %v2133, %v2130
      %v2140 = vrot.slane %v2122, 1
      %v2141 = vrot.slane %v2123, 1
      %v2142 = vrot.slane %v2124, 1
      %v2143 = vrot.slane %v2125, 1
      %v2144 = vrot.slane %v2126, 1
      %v2145 = vrot.slane %v2127, 1
      %v2146 = vsel %vm332, %v2140, %v2143
      %v2147 = vsel %vm332, %v2141, %v2144
      %v2148 = vsel %vm332, %v2142, %v2145
      %v2149 = vsel %vm332, %v2143, %v2140
      %v2150 = vsel %vm332, %v2144, %v2141
      %v2151 = vsel %vm332, %v2145, %v2142
      %v2152 = vmul.f32 %v2137, %v1390
      %v2153 = vmul.f32 %v2138, %v1394
      %v2154 = vmul.f32 %v2139, %v1398
      %v2155 = vmul.f32 %v2134, %v1390
      %v2156 = vmul.f32 %v2135, %v1394
      %v2157 = vmul.f32 %v2136, %v1398
      %v2158 = vmul.f32 %v2122, %v1408
      %v2159 = vmul.f32 %v2123, %v1412
      %v2160 = vmul.f32 %v2124, %v1416
      %v2161 = vmul.f32 %v2125, %v1408
      %v2162 = vmul.f32 %v2126, %v1412
      %v2163 = vmul.f32 %v2127, %v1416
      %v2164 = vadd.f32 %v2152, %v2158
      %v2165 = vadd.f32 %v2153, %v2159
      %v2166 = vadd.f32 %v2154, %v2160
      %v2167 = vadd.f32 %v2155, %v2161
      %v2168 = vadd.f32 %v2156, %v2162
      %v2169 = vadd.f32 %v2157, %v2163
      %v2170 = vmul.f32 %v2146, %v1426
      %v2171 = vmul.f32 %v2147, %v1430
      %v2172 = vmul.f32 %v2148, %v1434
      %v2173 = vmul.f32 %v2149, %v1426
      %v2174 = vmul.f32 %v2150, %v1430
      %v2175 = vmul.f32 %v2151, %v1434
      %v2176 = vadd.f32 %v2164, %v2170
      %v2177 = vadd.f32 %v2165, %v2171
      %v2178 = vadd.f32 %v2166, %v2172
      %v2179 = vadd.f32 %v2167, %v2173
      %v2180 = vadd.f32 %v2168, %v2174
      %v2181 = vadd.f32 %v2169, %v2175
      %v2182 = vmul.f32 %v2137, %v1444
      %v2183 = vmul.f32 %v2138, %v1448
      %v2184 = vmul.f32 %v2139, %v1452
      %v2185 = vmul.f32 %v2134, %v1444
      %v2186 = vmul.f32 %v2135, %v1448
      %v2187 = vmul.f32 %v2136, %v1452
      %v2188 = vmul.f32 %v2122, %v1462
      %v2189 = vmul.f32 %v2123, %v1466
      %v2190 = vmul.f32 %v2124, %v1470
      %v2191 = vmul.f32 %v2125, %v1462
      %v2192 = vmul.f32 %v2126, %v1466
      %v2193 = vmul.f32 %v2127, %v1470
      %v2194 = vadd.f32 %v2182, %v2188
      %v2195 = vadd.f32 %v2183, %v2189
      %v2196 = vadd.f32 %v2184, %v2190
      %v2197 = vadd.f32 %v2185, %v2191
      %v2198 = vadd.f32 %v2186, %v2192
      %v2199 = vadd.f32 %v2187, %v2193
      %v2200 = vmul.f32 %v2146, %v1480
      %v2201 = vmul.f32 %v2147, %v1484
      %v2202 = vmul.f32 %v2148, %v1488
      %v2203 = vmul.f32 %v2149, %v1480
      %v2204 = vmul.f32 %v2150, %v1484
      %v2205 = vmul.f32 %v2151, %v1488
      %v2206 = vadd.f32 %v2194, %v2200
      %v2207 = vadd.f32 %v2195, %v2201
      %v2208 = vadd.f32 %v2196, %v2202
      %v2209 = vadd.f32 %v2197, %v2203
      %v2210 = vadd.f32 %v2198, %v2204
      %v2211 = vadd.f32 %v2199, %v2205
      %v2212 = vadd.f32 %v2038, %v2206
      %v2213 = vadd.f32 %v2039, %v2207
      %v2214 = vadd.f32 %v2040, %v2208
      %v2215 = vadd.f32 %v2041, %v2209
      %v2216 = vadd.f32 %v2042, %v2210
      %v2217 = vadd.f32 %v2043, %v2211
      %v2218 = vmul.f32 %v2137, %v1498
      %v2219 = vmul.f32 %v2138, %v1502
      %v2220 = vmul.f32 %v2139, %v1506
      %v2221 = vmul.f32 %v2134, %v1498
      %v2222 = vmul.f32 %v2135, %v1502
      %v2223 = vmul.f32 %v2136, %v1506
      %v2224 = vmul.f32 %v2122, %v1516
      %v2225 = vmul.f32 %v2123, %v1520
      %v2226 = vmul.f32 %v2124, %v1524
      %v2227 = vmul.f32 %v2125, %v1516
      %v2228 = vmul.f32 %v2126, %v1520
      %v2229 = vmul.f32 %v2127, %v1524
      %v2230 = vadd.f32 %v2218, %v2224
      %v2231 = vadd.f32 %v2219, %v2225
      %v2232 = vadd.f32 %v2220, %v2226
      %v2233 = vadd.f32 %v2221, %v2227
      %v2234 = vadd.f32 %v2222, %v2228
      %v2235 = vadd.f32 %v2223, %v2229
      %v2236 = vmul.f32 %v2146, %v1534
      %v2237 = vmul.f32 %v2147, %v1538
      %v2238 = vmul.f32 %v2148, %v1542
      %v2239 = vmul.f32 %v2149, %v1534
      %v2240 = vmul.f32 %v2150, %v1538
      %v2241 = vmul.f32 %v2151, %v1542
      %v2242 = vadd.f32 %v2230, %v2236
      %v2243 = vadd.f32 %v2231, %v2237
      %v2244 = vadd.f32 %v2232, %v2238
      %v2245 = vadd.f32 %v2233, %v2239
      %v2246 = vadd.f32 %v2234, %v2240
      %v2247 = vadd.f32 %v2235, %v2241
      %v2248 = vadd.f32 %v2074, %v2242
      %v2249 = vadd.f32 %v2075, %v2243
      %v2250 = vadd.f32 %v2076, %v2244
      %v2251 = vadd.f32 %v2077, %v2245
      %v2252 = vadd.f32 %v2078, %v2246
      %v2253 = vadd.f32 %v2079, %v2247
      %2254 = vst [vmem:[%s1032 + $0x18] sm:$0xff] %v2248
      %2255 = vst [vmem:[%s1032 + $0x20] sm:$0xff] %v2249
      %2256 = vst [vmem:[%s1032 + $0x28] sm:$0xff] %v2250
      %2257 = vst [vmem:[%s1032 + $0x48] sm:$0xff] %v2251
      %2258 = vst [vmem:[%s1032 + $0x50] sm:$0xff] %v2252
      %2259 = vst [vmem:[%s1032 + $0x58] sm:$0xff] %v2253
      %v2260 = vld [vmem:[%s1042 + $0x18] sm:$0xff]
      %v2261 = vld [vmem:[%s1042 + $0x20] sm:$0xff]
      %v2262 = vld [vmem:[%s1042 + $0x28] sm:$0xff]
      %v2263 = vld [vmem:[%s1042 + $0x48] sm:$0xff]
      %v2264 = vld [vmem:[%s1042 + $0x50] sm:$0xff]
      %v2265 = vld [vmem:[%s1042 + $0x58] sm:$0xff]
      %v2266 = vrot.slane %v2260, 7
      %v2267 = vrot.slane %v2261, 7
      %v2268 = vrot.slane %v2262, 7
      %v2269 = vrot.slane %v2263, 7
      %v2270 = vrot.slane %v2264, 7
      %v2271 = vrot.slane %v2265, 7
      %v2272 = vsel %vm319, %v2266, %v2269
      %v2273 = vsel %vm319, %v2267, %v2270
      %v2274 = vsel %vm319, %v2268, %v2271
      %v2275 = vsel %vm319, %v2269, %v2266
      %v2276 = vsel %vm319, %v2270, %v2267
      %v2277 = vsel %vm319, %v2271, %v2268
      %v2278 = vrot.slane %v2260, 1
      %v2279 = vrot.slane %v2261, 1
      %v2280 = vrot.slane %v2262, 1
      %v2281 = vrot.slane %v2263, 1
      %v2282 = vrot.slane %v2264, 1
      %v2283 = vrot.slane %v2265, 1
      %v2284 = vsel %vm332, %v2278, %v2281
      %v2285 = vsel %vm332, %v2279, %v2282
      %v2286 = vsel %vm332, %v2280, %v2283
      %v2287 = vsel %vm332, %v2281, %v2278
      %v2288 = vsel %vm332, %v2282, %v2279
      %v2289 = vsel %vm332, %v2283, %v2280
      %v2290 = vmul.f32 %v2275, %v1390
      %v2291 = vmul.f32 %v2276, %v1394
      %v2292 = vmul.f32 %v2277, %v1398
      %v2293 = vmul.f32 %v2272, %v1390
      %v2294 = vmul.f32 %v2273, %v1394
      %v2295 = vmul.f32 %v2274, %v1398
      %v2296 = vmul.f32 %v2260, %v1408
      %v2297 = vmul.f32 %v2261, %v1412
      %v2298 = vmul.f32 %v2262, %v1416
      %v2299 = vmul.f32 %v2263, %v1408
      %v2300 = vmul.f32 %v2264, %v1412
      %v2301 = vmul.f32 %v2265, %v1416
      %v2302 = vadd.f32 %v2290, %v2296
      %v2303 = vadd.f32 %v2291, %v2297
      %v2304 = vadd.f32 %v2292, %v2298
      %v2305 = vadd.f32 %v2293, %v2299
      %v2306 = vadd.f32 %v2294, %v2300
      %v2307 = vadd.f32 %v2295, %v2301
      %v2308 = vmul.f32 %v2284, %v1426
      %v2309 = vmul.f32 %v2285, %v1430
      %v2310 = vmul.f32 %v2286, %v1434
      %v2311 = vmul.f32 %v2287, %v1426
      %v2312 = vmul.f32 %v2288, %v1430
      %v2313 = vmul.f32 %v2289, %v1434
      %v2314 = vadd.f32 %v2302, %v2308
      %v2315 = vadd.f32 %v2303, %v2309
      %v2316 = vadd.f32 %v2304, %v2310
      %v2317 = vadd.f32 %v2305, %v2311
      %v2318 = vadd.f32 %v2306, %v2312
      %v2319 = vadd.f32 %v2307, %v2313
      %v2320 = vmul.f32 %v2275, %v1444
      %v2321 = vmul.f32 %v2276, %v1448
      %v2322 = vmul.f32 %v2277, %v1452
      %v2323 = vmul.f32 %v2272, %v1444
      %v2324 = vmul.f32 %v2273, %v1448
      %v2325 = vmul.f32 %v2274, %v1452
      %v2326 = vmul.f32 %v2260, %v1462
      %v2327 = vmul.f32 %v2261, %v1466
      %v2328 = vmul.f32 %v2262, %v1470
      %v2329 = vmul.f32 %v2263, %v1462
      %v2330 = vmul.f32 %v2264, %v1466
      %v2331 = vmul.f32 %v2265, %v1470
      %v2332 = vadd.f32 %v2320, %v2326
      %v2333 = vadd.f32 %v2321, %v2327
      %v2334 = vadd.f32 %v2322, %v2328
      %v2335 = vadd.f32 %v2323, %v2329
      %v2336 = vadd.f32 %v2324, %v2330
      %v2337 = vadd.f32 %v2325, %v2331
      %v2338 = vmul.f32 %v2284, %v1480
      %v2339 = vmul.f32 %v2285, %v1484
      %v2340 = vmul.f32 %v2286, %v1488
      %v2341 = vmul.f32 %v2287, %v1480
      %v2342 = vmul.f32 %v2288, %v1484
      %v2343 = vmul.f32 %v2289, %v1488
      %v2344 = vadd.f32 %v2332, %v2338
      %v2345 = vadd.f32 %v2333, %v2339
      %v2346 = vadd.f32 %v2334, %v2340
      %v2347 = vadd.f32 %v2335, %v2341
      %v2348 = vadd.f32 %v2336, %v2342
      %v2349 = vadd.f32 %v2337, %v2343
      %v2350 = vadd.f32 %v2176, %v2344
      %v2351 = vadd.f32 %v2177, %v2345
      %v2352 = vadd.f32 %v2178, %v2346
      %v2353 = vadd.f32 %v2179, %v2347
      %v2354 = vadd.f32 %v2180, %v2348
      %v2355 = vadd.f32 %v2181, %v2349
      %v2356 = vmul.f32 %v2275, %v1498
      %v2357 = vmul.f32 %v2276, %v1502
      %v2358 = vmul.f32 %v2277, %v1506
      %v2359 = vmul.f32 %v2272, %v1498
      %v2360 = vmul.f32 %v2273, %v1502
      %v2361 = vmul.f32 %v2274, %v1506
      %v2362 = vmul.f32 %v2260, %v1516
      %v2363 = vmul.f32 %v2261, %v1520
      %v2364 = vmul.f32 %v2262, %v1524
      %v2365 = vmul.f32 %v2263, %v1516
      %v2366 = vmul.f32 %v2264, %v1520
      %v2367 = vmul.f32 %v2265, %v1524
      %v2368 = vadd.f32 %v2356, %v2362
      %v2369 = vadd.f32 %v2357, %v2363
      %v2370 = vadd.f32 %v2358, %v2364
      %v2371 = vadd.f32 %v2359, %v2365
      %v2372 = vadd.f32 %v2360, %v2366
      %v2373 = vadd.f32 %v2361, %v2367
      %v2374 = vmul.f32 %v2284, %v1534
      %v2375 = vmul.f32 %v2285, %v1538
      %v2376 = vmul.f32 %v2286, %v1542
      %v2377 = vmul.f32 %v2287, %v1534
      %v2378 = vmul.f32 %v2288, %v1538
      %v2379 = vmul.f32 %v2289, %v1542
      %v2380 = vadd.f32 %v2368, %v2374
      %v2381 = vadd.f32 %v2369, %v2375
      %v2382 = vadd.f32 %v2370, %v2376
      %v2383 = vadd.f32 %v2371, %v2377
      %v2384 = vadd.f32 %v2372, %v2378
      %v2385 = vadd.f32 %v2373, %v2379
      %v2386 = vadd.f32 %v2212, %v2380
      %v2387 = vadd.f32 %v2213, %v2381
      %v2388 = vadd.f32 %v2214, %v2382
      %v2389 = vadd.f32 %v2215, %v2383
      %v2390 = vadd.f32 %v2216, %v2384
      %v2391 = vadd.f32 %v2217, %v2385
      %2392 = vst [vmem:[%s1175 + $0x18] sm:$0xff] %v2386
      %2393 = vst [vmem:[%s1175 + $0x20] sm:$0xff] %v2387
      %2394 = vst [vmem:[%s1175 + $0x28] sm:$0xff] %v2388
      %2395 = vst [vmem:[%s1175 + $0x48] sm:$0xff] %v2389
      %2396 = vst [vmem:[%s1175 + $0x50] sm:$0xff] %v2390
      %2397 = vst [vmem:[%s1175 + $0x58] sm:$0xff] %v2391
      %v2398 = vld [vmem:[%s1185 + $0x18] sm:$0xff]
      %v2399 = vld [vmem:[%s1185 + $0x20] sm:$0xff]
      %v2400 = vld [vmem:[%s1185 + $0x28] sm:$0xff]
      %v2401 = vld [vmem:[%s1185 + $0x48] sm:$0xff]
      %v2402 = vld [vmem:[%s1185 + $0x50] sm:$0xff]
      %v2403 = vld [vmem:[%s1185 + $0x58] sm:$0xff]
      %v2404 = vrot.slane %v2398, 7
      %v2405 = vrot.slane %v2399, 7
      %v2406 = vrot.slane %v2400, 7
      %v2407 = vrot.slane %v2401, 7
      %v2408 = vrot.slane %v2402, 7
      %v2409 = vrot.slane %v2403, 7
      %v2410 = vsel %vm319, %v2404, %v2407
      %v2411 = vsel %vm319, %v2405, %v2408
      %v2412 = vsel %vm319, %v2406, %v2409
      %v2413 = vsel %vm319, %v2407, %v2404
      %v2414 = vsel %vm319, %v2408, %v2405
      %v2415 = vsel %vm319, %v2409, %v2406
      %v2416 = vrot.slane %v2398, 1
      %v2417 = vrot.slane %v2399, 1
      %v2418 = vrot.slane %v2400, 1
      %v2419 = vrot.slane %v2401, 1
      %v2420 = vrot.slane %v2402, 1
      %v2421 = vrot.slane %v2403, 1
      %v2422 = vsel %vm332, %v2416, %v2419
      %v2423 = vsel %vm332, %v2417, %v2420
      %v2424 = vsel %vm332, %v2418, %v2421
      %v2425 = vsel %vm332, %v2419, %v2416
      %v2426 = vsel %vm332, %v2420, %v2417
      %v2427 = vsel %vm332, %v2421, %v2418
      %v2428 = vmul.f32 %v2413, %v1444
      %v2429 = vmul.f32 %v2414, %v1448
      %v2430 = vmul.f32 %v2415, %v1452
      %v2431 = vmul.f32 %v2410, %v1444
      %v2432 = vmul.f32 %v2411, %v1448
      %v2433 = vmul.f32 %v2412, %v1452
      %v2434 = vmul.f32 %v2398, %v1462
      %v2435 = vmul.f32 %v2399, %v1466
      %v2436 = vmul.f32 %v2400, %v1470
      %v2437 = vmul.f32 %v2401, %v1462
      %v2438 = vmul.f32 %v2402, %v1466
      %v2439 = vmul.f32 %v2403, %v1470
      %v2440 = vadd.f32 %v2428, %v2434
      %v2441 = vadd.f32 %v2429, %v2435
      %v2442 = vadd.f32 %v2430, %v2436
      %v2443 = vadd.f32 %v2431, %v2437
      %v2444 = vadd.f32 %v2432, %v2438
      %v2445 = vadd.f32 %v2433, %v2439
      %v2446 = vmul.f32 %v2422, %v1480
      %v2447 = vmul.f32 %v2423, %v1484
      %v2448 = vmul.f32 %v2424, %v1488
      %v2449 = vmul.f32 %v2425, %v1480
      %v2450 = vmul.f32 %v2426, %v1484
      %v2451 = vmul.f32 %v2427, %v1488
      %v2452 = vadd.f32 %v2440, %v2446
      %v2453 = vadd.f32 %v2441, %v2447
      %v2454 = vadd.f32 %v2442, %v2448
      %v2455 = vadd.f32 %v2443, %v2449
      %v2456 = vadd.f32 %v2444, %v2450
      %v2457 = vadd.f32 %v2445, %v2451
      %v2458 = vadd.f32 %v2314, %v2452
      %v2459 = vadd.f32 %v2315, %v2453
      %v2460 = vadd.f32 %v2316, %v2454
      %v2461 = vadd.f32 %v2317, %v2455
      %v2462 = vadd.f32 %v2318, %v2456
      %v2463 = vadd.f32 %v2319, %v2457
      %v2464 = vmul.f32 %v2413, %v1498
      %v2465 = vmul.f32 %v2414, %v1502
      %v2466 = vmul.f32 %v2415, %v1506
      %v2467 = vmul.f32 %v2410, %v1498
      %v2468 = vmul.f32 %v2411, %v1502
      %v2469 = vmul.f32 %v2412, %v1506
      %v2470 = vmul.f32 %v2398, %v1516
      %v2471 = vmul.f32 %v2399, %v1520
      %v2472 = vmul.f32 %v2400, %v1524
      %v2473 = vmul.f32 %v2401, %v1516
      %v2474 = vmul.f32 %v2402, %v1520
      %v2475 = vmul.f32 %v2403, %v1524
      %v2476 = vadd.f32 %v2464, %v2470
      %v2477 = vadd.f32 %v2465, %v2471
      %v2478 = vadd.f32 %v2466, %v2472
      %v2479 = vadd.f32 %v2467, %v2473
      %v2480 = vadd.f32 %v2468, %v2474
      %v2481 = vadd.f32 %v2469, %v2475
      %v2482 = vmul.f32 %v2422, %v1534
      %v2483 = vmul.f32 %v2423, %v1538
      %v2484 = vmul.f32 %v2424, %v1542
      %v2485 = vmul.f32 %v2425, %v1534
      %v2486 = vmul.f32 %v2426, %v1538
      %v2487 = vmul.f32 %v2427, %v1542
      %v2488 = vadd.f32 %v2476, %v2482
      %v2489 = vadd.f32 %v2477, %v2483
      %v2490 = vadd.f32 %v2478, %v2484
      %v2491 = vadd.f32 %v2479, %v2485
      %v2492 = vadd.f32 %v2480, %v2486
      %v2493 = vadd.f32 %v2481, %v2487
      %v2494 = vadd.f32 %v2350, %v2488
      %v2495 = vadd.f32 %v2351, %v2489
      %v2496 = vadd.f32 %v2352, %v2490
      %v2497 = vadd.f32 %v2353, %v2491
      %v2498 = vadd.f32 %v2354, %v2492
      %v2499 = vadd.f32 %v2355, %v2493
      %2500 = vst [vmem:[%s1288 + $0x18] sm:$0xff] %v2494
      %2501 = vst [vmem:[%s1288 + $0x20] sm:$0xff] %v2495
      %2502 = vst [vmem:[%s1288 + $0x28] sm:$0xff] %v2496
      %2503 = vst [vmem:[%s1288 + $0x48] sm:$0xff] %v2497
      %2504 = vst [vmem:[%s1288 + $0x50] sm:$0xff] %v2498
      %2505 = vst [vmem:[%s1288 + $0x58] sm:$0xff] %v2499
      %v2506 = vld [vmem:[%s1303 + $0x18] sm:$0xff]
      %v2507 = vld [vmem:[%s1303 + $0x20] sm:$0xff]
      %v2508 = vld [vmem:[%s1303 + $0x28] sm:$0xff]
      %v2509 = vld [vmem:[%s1303 + $0x48] sm:$0xff]
      %v2510 = vld [vmem:[%s1303 + $0x50] sm:$0xff]
      %v2511 = vld [vmem:[%s1303 + $0x58] sm:$0xff]
      %v2512 = vmul.f32 %v2506, %v1310
      %v2513 = vmul.f32 %v2507, %v1310
      %v2514 = vmul.f32 %v2508, %v1310
      %v2515 = vmul.f32 %v2509, %v1310
      %v2516 = vmul.f32 %v2510, %v1310
      %v2517 = vmul.f32 %v2511, %v1310
      %v2518 = vrot.slane %v2512, 7
      %v2519 = vrot.slane %v2513, 7
      %v2520 = vrot.slane %v2514, 7
      %v2521 = vrot.slane %v2515, 7
      %v2522 = vrot.slane %v2516, 7
      %v2523 = vrot.slane %v2517, 7
      %v2524 = vsel %vm319, %v2518, %v2521
      %v2525 = vsel %vm319, %v2519, %v2522
      %v2526 = vsel %vm319, %v2520, %v2523
      %v2527 = vsel %vm319, %v2521, %v2518
      %v2528 = vsel %vm319, %v2522, %v2519
      %v2529 = vsel %vm319, %v2523, %v2520
      %v2530 = vrot.slane %v2512, 1
      %v2531 = vrot.slane %v2513, 1
      %v2532 = vrot.slane %v2514, 1
      %v2533 = vrot.slane %v2515, 1
      %v2534 = vrot.slane %v2516, 1
      %v2535 = vrot.slane %v2517, 1
      %v2536 = vsel %vm332, %v2530, %v2533
      %v2537 = vsel %vm332, %v2531, %v2534
      %v2538 = vsel %vm332, %v2532, %v2535
      %v2539 = vsel %vm332, %v2533, %v2530
      %v2540 = vsel %vm332, %v2534, %v2531
      %v2541 = vsel %vm332, %v2535, %v2532
      %v2542 = vmul.f32 %v2527, %v1498
      %v2543 = vmul.f32 %v2528, %v1502
      %v2544 = vmul.f32 %v2529, %v1506
      %v2545 = vmul.f32 %v2524, %v1498
      %v2546 = vmul.f32 %v2525, %v1502
      %v2547 = vmul.f32 %v2526, %v1506
      %v2548 = vmul.f32 %v2512, %v1516
      %v2549 = vmul.f32 %v2513, %v1520
      %v2550 = vmul.f32 %v2514, %v1524
      %v2551 = vmul.f32 %v2515, %v1516
      %v2552 = vmul.f32 %v2516, %v1520
      %v2553 = vmul.f32 %v2517, %v1524
      %v2554 = vadd.f32 %v2542, %v2548
      %v2555 = vadd.f32 %v2543, %v2549
      %v2556 = vadd.f32 %v2544, %v2550
      %v2557 = vadd.f32 %v2545, %v2551
      %v2558 = vadd.f32 %v2546, %v2552
      %v2559 = vadd.f32 %v2547, %v2553
      %v2560 = vmul.f32 %v2536, %v1534
      %v2561 = vmul.f32 %v2537, %v1538
      %v2562 = vmul.f32 %v2538, %v1542
      %v2563 = vmul.f32 %v2539, %v1534
      %v2564 = vmul.f32 %v2540, %v1538
      %v2565 = vmul.f32 %v2541, %v1542
      %v2566 = vadd.f32 %v2554, %v2560
      %v2567 = vadd.f32 %v2555, %v2561
      %v2568 = vadd.f32 %v2556, %v2562
      %v2569 = vadd.f32 %v2557, %v2563
      %v2570 = vadd.f32 %v2558, %v2564
      %v2571 = vadd.f32 %v2559, %v2565
      %v2572 = vadd.f32 %v2458, %v2566
      %v2573 = vadd.f32 %v2459, %v2567
      %v2574 = vadd.f32 %v2460, %v2568
      %v2575 = vadd.f32 %v2461, %v2569
      %v2576 = vadd.f32 %v2462, %v2570
      %v2577 = vadd.f32 %v2463, %v2571
      %2578 = vst [vmem:[%s1377 + $0x18] sm:$0xff] %v2572
      %2579 = vst [vmem:[%s1377 + $0x20] sm:$0xff] %v2573
      %2580 = vst [vmem:[%s1377 + $0x28] sm:$0xff] %v2574
      %2581 = vst [vmem:[%s1377 + $0x48] sm:$0xff] %v2575
      %2582 = vst [vmem:[%s1377 + $0x50] sm:$0xff] %v2576
      %2583 = vst [vmem:[%s1377 + $0x58] sm:$0xff] %v2577
      %s2584 = smul.u32 7, %s13
      %p2585 = scmp.lt.s32.totalorder %s2584, 13
      %s2586 = scalar_select %p2585, %s2584, 13
      %s2587 = smul.addr %s2586, 12
      %s2588 = smul.addr %s2587, 8
      %s2589 = scalar_lea.vmem %s2, %s2588
      // Predicated region
      $region29: #{depthwise_conv3x3.1} parent=27 // pred_check
        %p2590 = pneg %p73
      $region30: #{depthwise_conv3x3.1} parent=27 // pred_check_branch
        %2592 = sbr.rel (%p2590) target = $region32
      $region31: #{depthwise_conv3x3.1} parent=27 // pred_region
        %s2593 = smul.u32 7, %s13
      $region32: #{depthwise_conv3x3.1} parent=27 // pred_fallthru
        _
    $region28: #{depthwise_conv3x3.1} parent=5 // pred_fallthru
      _
    %p2594 = scmp.le.s32.totalorder 2, %s8
    // Predicated region
    $region33: #{depthwise_conv3x3.1} parent=5 // pred_check
      %p2595 = pneg %p2594
    $region34: #{depthwise_conv3x3.1} parent=5 // pred_check_branch
      %2597 = sbr.rel (%p2595) target = $region36
    $region35: #{depthwise_conv3x3.1} parent=5 // pred_region
      %s2598 = ssub.s32 %s8, 2
      // Predicated region
      $region37: #{depthwise_conv3x3.1} parent=35 // pred_check
        %p2599 = pneg %p79
      $region38: #{depthwise_conv3x3.1} parent=35 // pred_check_branch
        %2601 = sbr.rel (%p2599) target = $region40
      $region39: #{depthwise_conv3x3.1} parent=35 // pred_region
        %s2602 = smul.u32 7, %s14
        %p2603 = scmp.lt.s32.totalorder %s2602, 13
        %s2604 = scalar_select %p2603, %s2602, 13
        %s2605 = smul.addr %s2604, 12
        %s2606 = smul.addr %s2605, 8
        %s2607 = scalar_lea.vmem %s2, %s2606
      $region40: #{depthwise_conv3x3.1} parent=35 // pred_fallthru
        _
    $region36: #{depthwise_conv3x3.1} parent=5 // pred_fallthru
      _
  $region6: #{depthwise_conv3x3.1} parent=0 // loop_footer
    %s12 = sadd.s32 1, %s8
  $region7: #{depthwise_conv3x3.1} parent=0 // loop_footer_branch
    %7 = sbr.rel target = $region3
  $region8: #{depthwise_conv3x3.1} parent=0 // loop_exit
    _

</llo_original>
